<compile_context>
chip_gen: v7x
topology: tpu7x:2x2x1
jax: 0.10.0
libtpu: 0.0.40
codegen_flags: <defaults>
</compile_context>

<pallas_src>
import math
from functools import partial, lru_cache

import jax
import jax.numpy as jnp
from jax.experimental import pallas as pl
from jax.experimental.pallas import tpu as pltpu


# ----------------------------- helpers -----------------------------

def _gelu(y):
    # tanh-approximate GELU ("gelu_new"), f32
    return 0.5 * y * (1.0 + jnp.tanh(0.7978845608028654 *
                                     (y + 0.044715 * y * y * y)))


def _tile(dim, target, align):
    """Largest tile <= target that divides dim and is `align`-aligned, else full dim."""
    if dim <= target or dim % align:
        return dim
    t = (target // align) * align
    while t > 0 and dim % t:
        t -= align
    return t if t > 0 else dim


@lru_cache(maxsize=1)
def _vmem_limit_bytes():
    """~75% of physical VMEM: ~96 MiB on v5e/v6e (128 MiB), ~48 MiB on v7x (64 MiB)."""
    try:
        cap = pltpu.get_tpu_info().vmem_capacity_bytes
        return int(min(cap * 3 // 4, 100 * 1024 * 1024))
    except Exception:  # pragma: no cover - conservative fallback
        return 64 * 1024 * 1024


# ----------------------------- layernorm (embeddings) -----------------------------

def _layernorm_kernel(x_ref, g_ref, b_ref, o_ref):
    x = x_ref[...].astype(jnp.float32)
    mu = jnp.mean(x, axis=-1, keepdims=True)
    var = jnp.mean((x - mu) ** 2, axis=-1, keepdims=True)
    o_ref[...] = ((x - mu) * jax.lax.rsqrt(var + 1e-12) * g_ref[...]
                  + b_ref[...]).astype(o_ref.dtype)


def pallas_layernorm(x, g, b, out_dtype=jnp.float32):
    M, H = x.shape
    tm = _tile(M, 512, 8)
    return pl.pallas_call(
        _layernorm_kernel,
        out_shape=jax.ShapeDtypeStruct((M, H), out_dtype),
        grid=(M // tm,),
        in_specs=[pl.BlockSpec((tm, H), lambda i: (i, 0)),
                  pl.BlockSpec((1, H), lambda i: (0, 0)),
                  pl.BlockSpec((1, H), lambda i: (0, 0))],
        out_specs=pl.BlockSpec((tm, H), lambda i: (i, 0)),
        compiler_params=pltpu.CompilerParams(dimension_semantics=("parallel",)),
    )(x, g, b)


# --------------- fused attention block (QKV + MHA + out-proj + LN) ---------------

def _attn_block_kernel(x_ref, mask_ref, wqkv_ref, bqkv_ref, wo_ref, bo_ref,
                       g_ref, be_ref, o_ref, *, num_heads):
    x = x_ref[0]                                  # (S, H) bf16 full sequence (K/V side)
    S, H = x.shape
    dh = H // num_heads
    scale = 1.0 / math.sqrt(dh)
    tq = o_ref.shape[1]                           # query-tile rows
    qi = pl.program_id(1)

    if tq == S:
        xq = x                                    # single query tile (no slice)
    else:
        q0 = pl.multiple_of(qi * tq, tq) if tq % 8 == 0 else qi * tq
        xq = x_ref[0, pl.ds(q0, tq), :]           # (tq, H)

    wqkv = wqkv_ref[...]                          # (H, 3H) bf16
    bqkv = bqkv_ref[...]                          # (1, 3H) f32

    # Q only for this query tile, K/V for the full sequence.
    q = jnp.dot(xq, wqkv[:, 0:H], preferred_element_type=jnp.float32) + bqkv[:, 0:H]
    kv = jnp.dot(x, wqkv[:, H:3 * H], preferred_element_type=jnp.float32) + bqkv[:, H:3 * H]

    # Head split via static lane slices -> leading head axis; ONE batched matmul each.
    qh = jnp.stack([q[:, h * dh:(h + 1) * dh] for h in range(num_heads)],
                   axis=0).astype(jnp.bfloat16)                       # (nh, tq, dh)
    kh = jnp.stack([kv[:, h * dh:(h + 1) * dh] for h in range(num_heads)],
                   axis=0).astype(jnp.bfloat16)                       # (nh, S, dh)
    vh = jnp.stack([kv[:, H + h * dh:H + (h + 1) * dh] for h in range(num_heads)],
                   axis=0).astype(jnp.bfloat16)                       # (nh, S, dh)

    neg = (1.0 - mask_ref[0]) * -1e9                                  # (1, S) key mask
    s = jax.lax.dot_general(qh, kh, (((2,), (2,)), ((0,), (0,))),
                            preferred_element_type=jnp.float32) * scale   # (nh, tq, S)
    s = s + neg[None, :, :]
    s = s - jnp.max(s, axis=-1, keepdims=True)
    p = jnp.exp(s)
    p = p * pl.reciprocal(jnp.sum(p, axis=-1, keepdims=True), approx=True)

    ctx = jax.lax.dot_general(p.astype(jnp.bfloat16), vh,
                              (((2,), (1,)), ((0,), (0,))),
                              preferred_element_type=jnp.float32)     # (nh, tq, dh)

    # Concat heads, then ONE full-K output projection (S,H)@(H,H).
    ctx_cat = jnp.concatenate([ctx[h] for h in range(num_heads)], axis=-1)   # (tq, H)
    attn = jnp.dot(ctx_cat.astype(jnp.bfloat16), wo_ref[...],
                   preferred_element_type=jnp.float32)

    # fused: bias + residual + LayerNorm
    y = attn + bo_ref[...] + xq.astype(jnp.float32)
    mu = jnp.mean(y, axis=-1, keepdims=True)
    var = jnp.mean((y - mu) ** 2, axis=-1, keepdims=True)
    o_ref[0] = ((y - mu) * jax.lax.rsqrt(var + 1e-12) * g_ref[...]
                + be_ref[...]).astype(o_ref.dtype)


def pallas_attention_block(x, mask3, lp, num_heads):
    B, S, H = x.shape
    tq = _tile(S, 256, 16)                       # bf16 rows -> 16-sublane aligned
    n_q = S // tq
    # TODO(synk): for very long sequences, a flash-style KV-block loop would
    # avoid materializing the (nh, tq, S) score buffer (relevant on v7x VMEM).
    return pl.pallas_call(
        partial(_attn_block_kernel, num_heads=num_heads),
        out_shape=jax.ShapeDtypeStruct((B, S, H), jnp.bfloat16),
        grid=(B, n_q),
        in_specs=[pl.BlockSpec((1, S, H), lambda b, q: (b, 0, 0)),
                  pl.BlockSpec((1, 1, S), lambda b, q: (b, 0, 0)),
                  pl.BlockSpec((H, 3 * H), lambda b, q: (0, 0),
                               pipeline_mode=pl.Buffered(1)),
                  pl.BlockSpec((1, 3 * H), lambda b, q: (0, 0)),
                  pl.BlockSpec((H, H), lambda b, q: (0, 0),
                               pipeline_mode=pl.Buffered(1)),
                  pl.BlockSpec((1, H), lambda b, q: (0, 0)),
                  pl.BlockSpec((1, H), lambda b, q: (0, 0)),
                  pl.BlockSpec((1, H), lambda b, q: (0, 0))],
        out_specs=pl.BlockSpec((1, tq, H), lambda b, q: (b, q, 0)),
        compiler_params=pltpu.CompilerParams(
            dimension_semantics=("parallel", "parallel"),
            vmem_limit_bytes=_vmem_limit_bytes()),
    )(x, mask3, lp["wqkv"], lp["bqkv"], lp["wo"], lp["bo"],
      lp["ln1_g"], lp["ln1_b"])


# --------------- fused FFN block (w1 + GELU + w2 + residual + LN) ---------------

def _ffn_block_kernel(x_ref, w1_ref, b1_ref, w2_ref, b2_ref, g_ref, be_ref, o_ref):
    x = x_ref[...]                                # (tm, H) bf16
    h = jnp.dot(x, w1_ref[...], preferred_element_type=jnp.float32) + b1_ref[...]
    h = _gelu(h)
    y = jnp.dot(h.astype(jnp.bfloat16), w2_ref[...],
                preferred_element_type=jnp.float32) + b2_ref[...]
    y = y + x.astype(jnp.float32)                 # residual
    mu = jnp.mean(y, axis=-1, keepdims=True)
    var = jnp.mean((y - mu) ** 2, axis=-1, keepdims=True)
    o_ref[...] = ((y - mu) * jax.lax.rsqrt(var + 1e-12) * g_ref[...]
                  + be_ref[...]).astype(o_ref.dtype)


def pallas_ffn_block(x, lp):
    M, H = x.shape
    F = lp["w1"].shape[1]
    tm = _tile(M, 256, 16)                        # bf16 rows -> 16-sublane aligned
    return pl.pallas_call(
        _ffn_block_kernel,
        out_shape=jax.ShapeDtypeStruct((M, H), jnp.bfloat16),
        grid=(M // tm,),
        in_specs=[pl.BlockSpec((tm, H), lambda i: (i, 0)),
                  pl.BlockSpec((H, F), lambda i: (0, 0),
                               pipeline_mode=pl.Buffered(1)),
                  pl.BlockSpec((1, F), lambda i: (0, 0)),
                  pl.BlockSpec((F, H), lambda i: (0, 0),
                               pipeline_mode=pl.Buffered(1)),
                  pl.BlockSpec((1, H), lambda i: (0, 0)),
                  pl.BlockSpec((1, H), lambda i: (0, 0)),
                  pl.BlockSpec((1, H), lambda i: (0, 0))],
        out_specs=pl.BlockSpec((tm, H), lambda i: (i, 0)),
        compiler_params=pltpu.CompilerParams(
            dimension_semantics=("parallel",),
            vmem_limit_bytes=_vmem_limit_bytes()),
    )(x, lp["w1"], lp["b1"], lp["w2"], lp["b2"], lp["ln2_g"], lp["ln2_b"])


# ------------- fused tail: pooler (tanh) + bidirectional LSTM + fc -------------
# Gate-column layout (width Hl each): [i_f, i_b, f_f, f_b, g_f, g_b, o_f, o_b]
# States are concatenated [fwd | bwd] of width 2*Hl; the recurrent weight is a
# block-diagonal (2Hl, 8Hl) matrix so both directions share one matmul per step.

def _tail_kernel(cls_ref, pw_ref, pb_ref, wih_ref, whh_ref, b_ref, fm_ref,
                 fcw_ref, fcb_ref, o_ref, gi_scr, h_scr, c_scr, out_scr):
    T = cls_ref.shape[0]             # "sequence" length = batch (unbatched-LSTM quirk)
    Hl2 = h_scr.shape[1]             # 2 * Hl
    Hl = Hl2 // 2

    # --- pooler prologue: tanh(cls @ Wp + bp) ---
    pooled = jnp.tanh(jnp.dot(cls_ref[...], pw_ref[...],
                              preferred_element_type=jnp.float32) + pb_ref[...])

    # --- hoisted input projection for all timesteps & both directions (T, 8*Hl) ---
    gi = (jnp.dot(pooled.astype(jnp.bfloat16), wih_ref[...],
                  preferred_element_type=jnp.float32) + b_ref[...])

    # --- hoisted fwd/bwd gate selection (one vectorized pass, off the serial path).
    # Antidiagonal permutation matmul reverses rows exactly (products are x*1 / x*0).
    ridx = jax.lax.broadcasted_iota(jnp.int32, (T, T), 0)
    cidx = jax.lax.broadcasted_iota(jnp.int32, (T, T), 1)
    revP = (ridx + cidx == T - 1).astype(jnp.float32)                 # (T, T)
    gi_rev = jnp.dot(revP, gi, preferred_element_type=jnp.float32)    # rows reversed
    fm = fm_ref[...]                                                  # 1.0 on fwd cols
    gi_scr[...] = fm * gi + (1.0 - fm) * gi_rev

    h_scr[...] = jnp.zeros_like(h_scr)
    c_scr[...] = jnp.zeros_like(c_scr)

    # --- strictly serial recurrence ---
    # TODO(synk): W_hh could be pinned in MXU weight registers across steps via
    # pltpu.matmul_push_rhs / matmul_acc_lhs; kept as jnp.dot for robustness.
    @pl.loop(0, T)
    def _(t):
        gates = gi_scr[pl.ds(t, 1), :] + jnp.dot(
            h_scr[...].astype(jnp.bfloat16), whh_ref[...],
            preferred_element_type=jnp.float32)                       # (1, 8*Hl)
        i = jax.nn.sigmoid(gates[:, 0:Hl2])
        f = jax.nn.sigmoid(gates[:, Hl2:2 * Hl2])
        g = jnp.tanh(gates[:, 2 * Hl2:3 * Hl2])
        o = jax.nn.sigmoid(gates[:, 3 * Hl2:4 * Hl2])
        c_new = f * c_scr[...] + i * g                                # [c_f | c_b]
        h_new = o * jnp.tanh(c_new)                                   # [h_f | h_b]
        c_scr[...] = c_new
        h_scr[...] = h_new
        out_scr[pl.ds(t, 1), :] = h_new        # one dense (1, 2*Hl) VMEM store per step

    # --- epilogue: reorder bwd half to time order, dropout = identity (eval), fc ---
    hs = out_scr[...]                                                 # (T, 2*Hl) step order
    hs_rev = jnp.dot(revP, hs, preferred_element_type=jnp.float32)
    lane = jax.lax.broadcasted_iota(jnp.int32, (1, Hl2), 1)
    keep_fwd = (lane < Hl).astype(jnp.float32)
    lstm_out = keep_fwd * hs + (1.0 - keep_fwd) * hs_rev              # PyTorch [fwd|bwd]
    logits = (jnp.dot(lstm_out.astype(jnp.bfloat16), fcw_ref[...],
                      preferred_element_type=jnp.float32) + fcb_ref[...])
    o_ref[...] = logits


def pallas_bert_tail(cls, rp):
    T, _ = cls.shape
    Hl2 = rp["lstm"]["w_hh"].shape[0]            # 2 * Hl
    C = rp["fc_w"].shape[1]
    return pl.pallas_call(
        _tail_kernel,
        out_shape=jax.ShapeDtypeStruct((T, C), jnp.float32),
        in_specs=[pl.BlockSpec(memory_space=pltpu.MemorySpace.VMEM)] * 9,
        out_specs=pl.BlockSpec(memory_space=pltpu.MemorySpace.VMEM),
        scratch_shapes=[pltpu.VMEM((T, 4 * Hl2), jnp.float32),   # selected gate inputs
                        pltpu.VMEM((1, Hl2), jnp.float32),       # h state [fwd|bwd]
                        pltpu.VMEM((1, Hl2), jnp.float32),       # c state [fwd|bwd]
                        pltpu.VMEM((T, Hl2), jnp.float32)],      # step-order outputs
    )(cls, rp["pool_w"], rp["pool_b"], rp["lstm"]["w_ih"], rp["lstm"]["w_hh"],
      rp["lstm"]["bias"], rp["lstm"]["fwd_mask"], rp["fc_w"], rp["fc_b"])


# ----------------------------- model (glue) -----------------------------

def bert_lstm_forward(rp, input_ids, attention_mask, num_heads):
    B, S = input_ids.shape
    H = rp["word_emb"].shape[1]

    emb = (rp["word_emb"][input_ids]
           + rp["pos_emb"][:S][None, :, :]
           + rp["type_emb"][0][None, None, :])                      # (B, S, H) f32
    x = pallas_layernorm(emb.reshape(B * S, H), rp["emb_ln_g"], rp["emb_ln_b"],
                         out_dtype=jnp.bfloat16).reshape(B, S, H)
    mask3 = attention_mask.astype(jnp.float32).reshape(B, 1, S)

    for lp in rp["layers"]:
        x = pallas_attention_block(x, mask3, lp, num_heads)          # (B,S,H) bf16
        x = pallas_ffn_block(x.reshape(B * S, H), lp).reshape(B, S, H)

    cls = x[:, 0, :]                                                 # (B, H) bf16
    # pooler (tanh) + unbatched bidirectional LSTM over the batch axis +
    # dropout(identity, eval) + fc — all fused in one kernel.
    logits = pallas_bert_tail(cls, rp)                               # (B, C) f32
    return logits


# ----------------------------- params -----------------------------

def init_params(key, cfg):
    H, F, V, P = cfg["hidden"], cfg["ffn"], cfg["vocab"], cfg["max_pos"]
    Hl, L, C = cfg["lstm_hidden"], cfg["num_layers"], cfg["num_labels"]
    keys = iter(jax.random.split(key, 160))

    def dense(din, dout):
        return 0.02 * jax.random.normal(next(keys), (din, dout), jnp.float32)

    def vec(d):
        return 0.02 * jax.random.normal(next(keys), (d,), jnp.float32)

    bert = {
        "word_emb": 0.02 * jax.random.normal(next(keys), (V, H), jnp.float32),
        "pos_emb": 0.02 * jax.random.normal(next(keys), (P, H), jnp.float32),
        "type_emb": 0.02 * jax.random.normal(next(keys), (2, H), jnp.float32),
        "emb_ln_g": jnp.ones((H,), jnp.float32),
        "emb_ln_b": jnp.zeros((H,), jnp.float32),
        "pool_w": dense(H, H),
        "pool_b": jnp.zeros((H,), jnp.float32),
        "layers": [],
    }
    for _ in range(L):
        bert["layers"].append({
            "wq": dense(H, H), "bq": jnp.zeros((H,), jnp.float32),
            "wk": dense(H, H), "bk": jnp.zeros((H,), jnp.float32),
            "wv": dense(H, H), "bv": jnp.zeros((H,), jnp.float32),
            "wo": dense(H, H), "bo": jnp.zeros((H,), jnp.float32),
            "ln1_g": jnp.ones((H,), jnp.float32),
            "ln1_b": jnp.zeros((H,), jnp.float32),
            "w1": dense(H, F), "b1": jnp.zeros((F,), jnp.float32),
            "w2": dense(F, H), "b2": jnp.zeros((H,), jnp.float32),
            "ln2_g": jnp.ones((H,), jnp.float32),
            "ln2_b": jnp.zeros((H,), jnp.float32),
        })

    # nn.LSTM weights: per direction W_ih (in,4H), W_hh (H,4H), b_ih, b_hh. Gate order i,f,g,o.
    lstm = (dense(H, 4 * Hl), dense(Hl, 4 * Hl), vec(4 * Hl), vec(4 * Hl),     # forward
            dense(H, 4 * Hl), dense(Hl, 4 * Hl), vec(4 * Hl), vec(4 * Hl))     # backward

    return {"bert": bert, "lstm": lstm,
            "fc_w": dense(2 * Hl, C), "fc_b": jnp.zeros((C,), jnp.float32)}


def prepare_params(p):
    """Fuse/rearrange weights and cast matmul operands to bf16 (done once)."""
    bf = lambda a: a.astype(jnp.bfloat16)
    bert = p["bert"]

    layers = []
    for lp in bert["layers"]:
        wqkv = jnp.concatenate([lp["wq"], lp["wk"], lp["wv"]], axis=1)   # (H, 3H)
        bqkv = jnp.concatenate([lp["bq"], lp["bk"], lp["bv"]])
        layers.append({
            "wqkv": bf(wqkv), "bqkv": bqkv.reshape(1, -1),
            "wo": bf(lp["wo"]), "bo": lp["bo"].reshape(1, -1),
            "ln1_g": lp["ln1_g"].reshape(1, -1), "ln1_b": lp["ln1_b"].reshape(1, -1),
            "w1": bf(lp["w1"]), "b1": lp["b1"].reshape(1, -1),
            "w2": bf(lp["w2"]), "b2": lp["b2"].reshape(1, -1),
            "ln2_g": lp["ln2_g"].reshape(1, -1), "ln2_b": lp["ln2_b"].reshape(1, -1),
        })

    # BiLSTM: build interleaved-gate fused weights (PyTorch b_ih + b_hh summed).
    wih_f, whh_f, bih_f, bhh_f, wih_b, whh_b, bih_b, bhh_b = p["lstm"]
    b_f = bih_f + bhh_f
    b_b = bih_b + bhh_b
    Hl = whh_f.shape[0]
    zeros = jnp.zeros((Hl, Hl), jnp.float32)
    ih_cols, hh_cols, b_cols, m_cols = [], [], [], []
    for g in range(4):                       # gate order i, f, g, o
        sl = slice(g * Hl, (g + 1) * Hl)
        ih_cols += [wih_f[:, sl], wih_b[:, sl]]
        hh_cols += [jnp.concatenate([whh_f[:, sl], zeros], axis=0),
                    jnp.concatenate([zeros, whh_b[:, sl]], axis=0)]
        b_cols += [b_f[sl], b_b[sl]]
        m_cols += [jnp.ones((Hl,), jnp.float32), jnp.zeros((Hl,), jnp.float32)]
    lstm = {
        "w_ih": bf(jnp.concatenate(ih_cols, axis=1)),        # (Din, 8*Hl)
        "w_hh": bf(jnp.concatenate(hh_cols, axis=1)),        # (2*Hl, 8*Hl) block-diag
        "bias": jnp.concatenate(b_cols).reshape(1, -1),      # (1, 8*Hl)
        "fwd_mask": jnp.concatenate(m_cols).reshape(1, -1),  # (1, 8*Hl)
    }

    return {
        "word_emb": bert["word_emb"], "pos_emb": bert["pos_emb"],
        "type_emb": bert["type_emb"],
        "emb_ln_g": bert["emb_ln_g"].reshape(1, -1),
        "emb_ln_b": bert["emb_ln_b"].reshape(1, -1),
        "layers": layers,
        "pool_w": bf(bert["pool_w"]), "pool_b": bert["pool_b"].reshape(1, -1),
        "lstm": lstm,
        "fc_w": bf(p["fc_w"]), "fc_b": p["fc_b"].reshape(1, -1),
    }


# ----------------------------- main -----------------------------

if __name__ == "__main__":
    cfg = dict(vocab=100, hidden=32, heads=4, num_layers=2, ffn=64, max_pos=16,
               lstm_hidden=32, num_labels=5, batch=4, seq=8)

    params = init_params(jax.random.PRNGKey(0), cfg)
    run_params = prepare_params(params)

    key = jax.random.PRNGKey(0)
    input_ids = jax.random.randint(key, (cfg["batch"], cfg["seq"]),
                                   0, cfg["vocab"], dtype=jnp.int32)
    attention_mask = jnp.ones((cfg["batch"], cfg["seq"]), jnp.int32)
    attention_mask = attention_mask.at[-1, -3:].set(0)   # some padding

    fwd = jax.jit(partial(bert_lstm_forward, num_heads=cfg["heads"]))
    logits = fwd(run_params, input_ids, attention_mask)
    jax.block_until_ready(logits)

    assert logits.shape == (cfg["batch"], cfg["num_labels"])
    assert logits.dtype == jnp.float32
    print("KERNEL_OK")
</pallas_src>

<mosaic_0001>
module attributes {stable_mosaic.version = 11 : i64} {
  func.func @_layernorm_kernel(%arg0: i32, %arg1: memref<32x32xf32, #tpu.memory_space<vmem>>, %arg2: memref<1x32xf32, #tpu.memory_space<vmem>>, %arg3: memref<1x32xf32, #tpu.memory_space<vmem>>, %arg4: memref<32x32xbf16, #tpu.memory_space<vmem>>) attributes {dimension_semantics = [#tpu.dimension_semantics<parallel>], iteration_bounds = array<i64: 1>, scalar_prefetch = 0 : i64, scratch_operands = 0 : i64, tpu.core_type = #tpu.core_type<tc>, window_params = [{transform_indices = @transform_0, window_bounds = array<i64: 32, 32>}, {pipeline_mode = #tpu.pipeline_mode<synchronous>, transform_indices = @transform_1, window_bounds = array<i64: 1, 32>}, {pipeline_mode = #tpu.pipeline_mode<synchronous>, transform_indices = @transform_2, window_bounds = array<i64: 1, 32>}, {transform_indices = @transform_3, window_bounds = array<i64: 32, 32>}]} {
    %c0 = arith.constant 0 : index
    %c0_0 = arith.constant 0 : index
    %0 = vector.load %arg1[%c0, %c0_0] : memref<32x32xf32, #tpu.memory_space<vmem>>, vector<32x32xf32>
    %cst = arith.constant dense<0.000000e+00> : vector<32xf32>
    %1 = vector.multi_reduction <add>, %0, %cst [1] : vector<32x32xf32> to vector<32xf32>
    %2 = vector.shape_cast %1 : vector<32xf32> to vector<32x1xf32>
    %cst_1 = arith.constant 3.200000e+01 : f32
    %3 = vector.broadcast %cst_1 : f32 to vector<32x1xf32>
    %4 = arith.divf %2, %3 : vector<32x1xf32>
    %5 = vector.broadcast %4 : vector<32x1xf32> to vector<32x32xf32>
    %6 = arith.subf %0, %5 : vector<32x32xf32>
    %7 = arith.mulf %6, %6 : vector<32x32xf32>
    %cst_2 = arith.constant dense<0.000000e+00> : vector<32xf32>
    %8 = vector.multi_reduction <add>, %7, %cst_2 [1] : vector<32x32xf32> to vector<32xf32>
    %9 = vector.shape_cast %8 : vector<32xf32> to vector<32x1xf32>
    %cst_3 = arith.constant 3.200000e+01 : f32
    %10 = vector.broadcast %cst_3 : f32 to vector<32x1xf32>
    %11 = arith.divf %9, %10 : vector<32x1xf32>
    %12 = vector.broadcast %4 : vector<32x1xf32> to vector<32x32xf32>
    %13 = arith.subf %0, %12 : vector<32x32xf32>
    %cst_4 = arith.constant 9.99999996E-13 : f32
    %14 = vector.broadcast %cst_4 : f32 to vector<32x1xf32>
    %15 = arith.addf %11, %14 : vector<32x1xf32>
    %16 = math.rsqrt %15 : vector<32x1xf32>
    %17 = vector.broadcast %16 : vector<32x1xf32> to vector<32x32xf32>
    %18 = arith.mulf %13, %17 : vector<32x32xf32>
    %c0_5 = arith.constant 0 : index
    %c0_6 = arith.constant 0 : index
    %19 = vector.load %arg2[%c0_5, %c0_6] : memref<1x32xf32, #tpu.memory_space<vmem>>, vector<1x32xf32>
    %20 = vector.broadcast %19 : vector<1x32xf32> to vector<32x32xf32>
    %21 = arith.mulf %18, %20 : vector<32x32xf32>
    %c0_7 = arith.constant 0 : index
    %c0_8 = arith.constant 0 : index
    %22 = vector.load %arg3[%c0_7, %c0_8] : memref<1x32xf32, #tpu.memory_space<vmem>>, vector<1x32xf32>
    %23 = vector.broadcast %22 : vector<1x32xf32> to vector<32x32xf32>
    %24 = arith.addf %21, %23 : vector<32x32xf32>
    %25 = arith.truncf %24 : vector<32x32xf32> to vector<32x32xbf16>
    %c0_9 = arith.constant 0 : index
    %c0_10 = arith.constant 0 : index
    %26 = vector.load %arg4[%c0_9, %c0_10] : memref<32x32xbf16, #tpu.memory_space<vmem>>, vector<32x32xbf16>
    tpu.vector_store %arg4[%c0_9, %c0_10], %25 {strides = array<i32>} : memref<32x32xbf16, #tpu.memory_space<vmem>>, vector<32x32xbf16>,
    return
  }
  func.func @transform_0(%arg0: i32) -> (i32, i32) {
    %c0_i32 = arith.constant 0 : i32
    %c0_i32_0 = arith.constant 0 : i32
    return %arg0, %c0_i32 : i32, i32
  }
  func.func @transform_1(%arg0: i32) -> (i32, i32) {
    %c0_i32 = arith.constant 0 : i32
    %c0_i32_0 = arith.constant 0 : i32
    %c0_i32_1 = arith.constant 0 : i32
    return %c0_i32, %c0_i32_0 : i32, i32
  }
  func.func @transform_2(%arg0: i32) -> (i32, i32) {
    %c0_i32 = arith.constant 0 : i32
    %c0_i32_0 = arith.constant 0 : i32
    %c0_i32_1 = arith.constant 0 : i32
    return %c0_i32, %c0_i32_0 : i32, i32
  }
  func.func @transform_3(%arg0: i32) -> (i32, i32) {
    %c0_i32 = arith.constant 0 : i32
    %c0_i32_0 = arith.constant 0 : i32
    return %arg0, %c0_i32 : i32, i32
  }
}

module attributes {stable_mosaic.version = 11 : i64} {
  func.func @_attn_block_kernel(%arg0: i32, %arg1: i32, %arg2: memref<1x8x32xbf16, #tpu.memory_space<vmem>>, %arg3: memref<1x1x8xf32, #tpu.memory_space<vmem>>, %arg4: memref<32x96xbf16, #tpu.memory_space<vmem>>, %arg5: memref<1x96xf32, #tpu.memory_space<vmem>>, %arg6: memref<32x32xbf16, #tpu.memory_space<vmem>>, %arg7: memref<1x32xf32, #tpu.memory_space<vmem>>, %arg8: memref<1x32xf32, #tpu.memory_space<vmem>>, %arg9: memref<1x32xf32, #tpu.memory_space<vmem>>, %arg10: memref<1x8x32xbf16, #tpu.memory_space<vmem>>) attributes {dimension_semantics = [#tpu.dimension_semantics<parallel>, #tpu.dimension_semantics<parallel>], iteration_bounds = array<i64: 4, 1>, scalar_prefetch = 0 : i64, scratch_operands = 0 : i64, tpu.core_type = #tpu.core_type<tc>, window_params = [{transform_indices = @transform_0, window_bounds = array<i64: 1, 8, 32>}, {transform_indices = @transform_1, window_bounds = array<i64: 1, 1, 8>}, {pipeline_mode = #tpu.pipeline_mode<synchronous>, transform_indices = @transform_2, window_bounds = array<i64: 32, 96>}, {pipeline_mode = #tpu.pipeline_mode<synchronous>, transform_indices = @transform_3, window_bounds = array<i64: 1, 96>}, {pipeline_mode = #tpu.pipeline_mode<synchronous>, transform_indices = @transform_4, window_bounds = array<i64: 32, 32>}, {pipeline_mode = #tpu.pipeline_mode<synchronous>, transform_indices = @transform_5, window_bounds = array<i64: 1, 32>}, {pipeline_mode = #tpu.pipeline_mode<synchronous>, transform_indices = @transform_6, window_bounds = array<i64: 1, 32>}, {pipeline_mode = #tpu.pipeline_mode<synchronous>, transform_indices = @transform_7, window_bounds = array<i64: 1, 32>}, {transform_indices = @transform_8, window_bounds = array<i64: 1, 8, 32>}]} {
    %c0 = arith.constant 0 : index
    %c0_0 = arith.constant 0 : index
    %c0_1 = arith.constant 0 : index
    %0 = vector.load %arg2[%c0, %c0_0, %c0_1] : memref<1x8x32xbf16, #tpu.memory_space<vmem>>, vector<1x8x32xbf16>
    %1 = vector.shape_cast %0 : vector<1x8x32xbf16> to vector<8x32xbf16>
    %c0_2 = arith.constant 0 : index
    %c0_3 = arith.constant 0 : index
    %2 = vector.load %arg4[%c0_2, %c0_3] : memref<32x96xbf16, #tpu.memory_space<vmem>>, vector<32x96xbf16>
    %c0_4 = arith.constant 0 : index
    %c0_5 = arith.constant 0 : index
    %3 = vector.load %arg5[%c0_4, %c0_5] : memref<1x96xf32, #tpu.memory_space<vmem>>, vector<1x96xf32>
    %4 = vector.extract_strided_slice %2 {offsets = [0, 0], sizes = [32, 32], strides = [1, 1]} : vector<32x96xbf16> to vector<32x32xbf16>
    %cst = arith.constant dense<0.000000e+00> : vector<8x32xf32>
    %5 = tpu.matmul %1, %4, %cst {dimension_numbers = #tpu.dot_dimension_numbers<[1], [0], [0], [1], [0, 0, 1, 1], [], []>} : vector<8x32xbf16>, vector<32x32xbf16>, vector<8x32xf32> -> vector<8x32xf32>
    %6 = vector.extract_strided_slice %3 {offsets = [0, 0], sizes = [1, 32], strides = [1, 1]} : vector<1x96xf32> to vector<1x32xf32>
    %7 = vector.broadcast %6 : vector<1x32xf32> to vector<8x32xf32>
    %8 = arith.addf %5, %7 : vector<8x32xf32>
    %9 = vector.extract_strided_slice %2 {offsets = [0, 32], sizes = [32, 64], strides = [1, 1]} : vector<32x96xbf16> to vector<32x64xbf16>
    %cst_6 = arith.constant dense<0.000000e+00> : vector<8x64xf32>
    %10 = tpu.matmul %1, %9, %cst_6 {dimension_numbers = #tpu.dot_dimension_numbers<[1], [0], [0], [1], [0, 0, 1, 1], [], []>} : vector<8x32xbf16>, vector<32x64xbf16>, vector<8x64xf32> -> vector<8x64xf32>
    %11 = vector.extract_strided_slice %3 {offsets = [0, 32], sizes = [1, 64], strides = [1, 1]} : vector<1x96xf32> to vector<1x64xf32>
    %12 = vector.broadcast %11 : vector<1x64xf32> to vector<8x64xf32>
    %13 = arith.addf %10, %12 : vector<8x64xf32>
    %14 = vector.extract_strided_slice %8 {offsets = [0, 0], sizes = [8, 8], strides = [1, 1]} : vector<8x32xf32> to vector<8x8xf32>
    %15 = vector.extract_strided_slice %8 {offsets = [0, 8], sizes = [8, 8], strides = [1, 1]} : vector<8x32xf32> to vector<8x8xf32>
    %16 = vector.extract_strided_slice %8 {offsets = [0, 16], sizes = [8, 8], strides = [1, 1]} : vector<8x32xf32> to vector<8x8xf32>
    %17 = vector.extract_strided_slice %8 {offsets = [0, 24], sizes = [8, 8], strides = [1, 1]} : vector<8x32xf32> to vector<8x8xf32>
    %18 = vector.shape_cast %14 : vector<8x8xf32> to vector<1x8x8xf32>
    %19 = vector.shape_cast %15 : vector<8x8xf32> to vector<1x8x8xf32>
    %20 = vector.shape_cast %16 : vector<8x8xf32> to vector<1x8x8xf32>
    %21 = vector.shape_cast %17 : vector<8x8xf32> to vector<1x8x8xf32>
    %22 = tpu.concatenate %18, %19, %20, %21 in 0 : vector<1x8x8xf32>, vector<1x8x8xf32>, vector<1x8x8xf32>, vector<1x8x8xf32> -> vector<4x8x8xf32>
    %23 = arith.truncf %22 : vector<4x8x8xf32> to vector<4x8x8xbf16>
    %24 = vector.extract_strided_slice %13 {offsets = [0, 0], sizes = [8, 8], strides = [1, 1]} : vector<8x64xf32> to vector<8x8xf32>
    %25 = vector.extract_strided_slice %13 {offsets = [0, 8], sizes = [8, 8], strides = [1, 1]} : vector<8x64xf32> to vector<8x8xf32>
    %26 = vector.extract_strided_slice %13 {offsets = [0, 16], sizes = [8, 8], strides = [1, 1]} : vector<8x64xf32> to vector<8x8xf32>
    %27 = vector.extract_strided_slice %13 {offsets = [0, 24], sizes = [8, 8], strides = [1, 1]} : vector<8x64xf32> to vector<8x8xf32>
    %28 = vector.shape_cast %24 : vector<8x8xf32> to vector<1x8x8xf32>
    %29 = vector.shape_cast %25 : vector<8x8xf32> to vector<1x8x8xf32>
    %30 = vector.shape_cast %26 : vector<8x8xf32> to vector<1x8x8xf32>
    %31 = vector.shape_cast %27 : vector<8x8xf32> to vector<1x8x8xf32>
    %32 = tpu.concatenate %28, %29, %30, %31 in 0 : vector<1x8x8xf32>, vector<1x8x8xf32>, vector<1x8x8xf32>, vector<1x8x8xf32> -> vector<4x8x8xf32>
    %33 = arith.truncf %32 : vector<4x8x8xf32> to vector<4x8x8xbf16>
    %34 = vector.extract_strided_slice %13 {offsets = [0, 32], sizes = [8, 8], strides = [1, 1]} : vector<8x64xf32> to vector<8x8xf32>
    %35 = vector.extract_strided_slice %13 {offsets = [0, 40], sizes = [8, 8], strides = [1, 1]} : vector<8x64xf32> to vector<8x8xf32>
    %36 = vector.extract_strided_slice %13 {offsets = [0, 48], sizes = [8, 8], strides = [1, 1]} : vector<8x64xf32> to vector<8x8xf32>
    %37 = vector.extract_strided_slice %13 {offsets = [0, 56], sizes = [8, 8], strides = [1, 1]} : vector<8x64xf32> to vector<8x8xf32>
    %38 = vector.shape_cast %34 : vector<8x8xf32> to vector<1x8x8xf32>
    %39 = vector.shape_cast %35 : vector<8x8xf32> to vector<1x8x8xf32>
    %40 = vector.shape_cast %36 : vector<8x8xf32> to vector<1x8x8xf32>
    %41 = vector.shape_cast %37 : vector<8x8xf32> to vector<1x8x8xf32>
    %42 = tpu.concatenate %38, %39, %40, %41 in 0 : vector<1x8x8xf32>, vector<1x8x8xf32>, vector<1x8x8xf32>, vector<1x8x8xf32> -> vector<4x8x8xf32>
    %43 = arith.truncf %42 : vector<4x8x8xf32> to vector<4x8x8xbf16>
    %c0_7 = arith.constant 0 : index
    %c0_8 = arith.constant 0 : index
    %c0_9 = arith.constant 0 : index
    %44 = vector.load %arg3[%c0_7, %c0_8, %c0_9] : memref<1x1x8xf32, #tpu.memory_space<vmem>>, vector<1x1x8xf32>
    %45 = vector.shape_cast %44 : vector<1x1x8xf32> to vector<1x8xf32>
    %cst_10 = arith.constant 1.000000e+00 : f32
    %46 = vector.broadcast %cst_10 : f32 to vector<1x8xf32>
    %47 = arith.subf %46, %45 : vector<1x8xf32>
    %cst_11 = arith.constant -1.000000e+09 : f32
    %48 = vector.broadcast %cst_11 : f32 to vector<1x8xf32>
    %49 = arith.mulf %47, %48 : vector<1x8xf32>
    %cst_12 = arith.constant dense<0.000000e+00> : vector<4x8x8xf32>
    %50 = tpu.matmul %23, %33, %cst_12 {dimension_numbers = #tpu.dot_dimension_numbers<[2], [2], [1], [1], [0, 0, 0, 1, 1, 1], [0], [0]>} : vector<4x8x8xbf16>, vector<4x8x8xbf16>, vector<4x8x8xf32> -> vector<4x8x8xf32>
    %cst_13 = arith.constant 0.353553385 : f32
    %51 = vector.broadcast %cst_13 : f32 to vector<4x8x8xf32>
    %52 = arith.mulf %50, %51 : vector<4x8x8xf32>
    %53 = vector.shape_cast %49 : vector<1x8xf32> to vector<1x1x8xf32>
    %54 = vector.broadcast %53 : vector<1x1x8xf32> to vector<4x8x8xf32>
    %55 = arith.addf %52, %54 : vector<4x8x8xf32>
    %cst_14 = arith.constant dense<0xFF800000> : vector<4x8xf32>
    %56 = vector.multi_reduction <maximumf>, %55, %cst_14 [2] : vector<4x8x8xf32> to vector<4x8xf32>
    %57 = vector.shape_cast %56 : vector<4x8xf32> to vector<4x8x1xf32>
    %58 = vector.broadcast %57 : vector<4x8x1xf32> to vector<4x8x8xf32>
    %59 = arith.subf %55, %58 : vector<4x8x8xf32>
    %60 = math.exp %59 : vector<4x8x8xf32>
    %cst_15 = arith.constant dense<0.000000e+00> : vector<4x8xf32>
    %61 = vector.multi_reduction <add>, %60, %cst_15 [2] : vector<4x8x8xf32> to vector<4x8xf32>
    %62 = vector.shape_cast %61 : vector<4x8xf32> to vector<4x8x1xf32>
    %63 = tpu.reciprocal %62 {approx = true} : vector<4x8x1xf32> -> vector<4x8x1xf32>
    %64 = vector.broadcast %63 : vector<4x8x1xf32> to vector<4x8x8xf32>
    %65 = arith.mulf %60, %64 : vector<4x8x8xf32>
    %66 = arith.truncf %65 : vector<4x8x8xf32> to vector<4x8x8xbf16>
    %cst_16 = arith.constant dense<0.000000e+00> : vector<4x8x8xf32>
    %67 = tpu.matmul %66, %43, %cst_16 {dimension_numbers = #tpu.dot_dimension_numbers<[2], [1], [1], [2], [0, 0, 0, 1, 1, 2], [0], [0]>} : vector<4x8x8xbf16>, vector<4x8x8xbf16>, vector<4x8x8xf32> -> vector<4x8x8xf32>
    %68 = vector.extract_strided_slice %67 {offsets = [0, 0, 0], sizes = [1, 8, 8], strides = [1, 1, 1]} : vector<4x8x8xf32> to vector<1x8x8xf32>
    %69 = vector.shape_cast %68 : vector<1x8x8xf32> to vector<8x8xf32>
    %70 = vector.extract_strided_slice %67 {offsets = [1, 0, 0], sizes = [1, 8, 8], strides = [1, 1, 1]} : vector<4x8x8xf32> to vector<1x8x8xf32>
    %71 = vector.shape_cast %70 : vector<1x8x8xf32> to vector<8x8xf32>
    %72 = vector.extract_strided_slice %67 {offsets = [2, 0, 0], sizes = [1, 8, 8], strides = [1, 1, 1]} : vector<4x8x8xf32> to vector<1x8x8xf32>
    %73 = vector.shape_cast %72 : vector<1x8x8xf32> to vector<8x8xf32>
    %74 = vector.extract_strided_slice %67 {offsets = [3, 0, 0], sizes = [1, 8, 8], strides = [1, 1, 1]} : vector<4x8x8xf32> to vector<1x8x8xf32>
    %75 = vector.shape_cast %74 : vector<1x8x8xf32> to vector<8x8xf32>
    %76 = tpu.concatenate %69, %71, %73, %75 in 1 : vector<8x8xf32>, vector<8x8xf32>, vector<8x8xf32>, vector<8x8xf32> -> vector<8x32xf32>
    %77 = arith.truncf %76 : vector<8x32xf32> to vector<8x32xbf16>
    %c0_17 = arith.constant 0 : index
    %c0_18 = arith.constant 0 : index
    %78 = vector.load %arg6[%c0_17, %c0_18] : memref<32x32xbf16, #tpu.memory_space<vmem>>, vector<32x32xbf16>
    %cst_19 = arith.constant dense<0.000000e+00> : vector<8x32xf32>
    %79 = tpu.matmul %77, %78, %cst_19 {dimension_numbers = #tpu.dot_dimension_numbers<[1], [0], [0], [1], [0, 0, 1, 1], [], []>} : vector<8x32xbf16>, vector<32x32xbf16>, vector<8x32xf32> -> vector<8x32xf32>
    %c0_20 = arith.constant 0 : index
    %c0_21 = arith.constant 0 : index
    %80 = vector.load %arg7[%c0_20, %c0_21] : memref<1x32xf32, #tpu.memory_space<vmem>>, vector<1x32xf32>
    %81 = vector.broadcast %80 : vector<1x32xf32> to vector<8x32xf32>
    %82 = arith.addf %79, %81 : vector<8x32xf32>
    %83 = arith.extf %1 : vector<8x32xbf16> to vector<8x32xf32>
    %84 = arith.addf %82, %83 : vector<8x32xf32>
    %cst_22 = arith.constant dense<0.000000e+00> : vector<8xf32>
    %85 = vector.multi_reduction <add>, %84, %cst_22 [1] : vector<8x32xf32> to vector<8xf32>
    %86 = vector.shape_cast %85 : vector<8xf32> to vector<8x1xf32>
    %cst_23 = arith.constant 3.200000e+01 : f32
    %87 = vector.broadcast %cst_23 : f32 to vector<8x1xf32>
    %88 = arith.divf %86, %87 : vector<8x1xf32>
    %89 = vector.broadcast %88 : vector<8x1xf32> to vector<8x32xf32>
    %90 = arith.subf %84, %89 : vector<8x32xf32>
    %91 = arith.mulf %90, %90 : vector<8x32xf32>
    %cst_24 = arith.constant dense<0.000000e+00> : vector<8xf32>
    %92 = vector.multi_reduction <add>, %91, %cst_24 [1] : vector<8x32xf32> to vector<8xf32>
    %93 = vector.shape_cast %92 : vector<8xf32> to vector<8x1xf32>
    %cst_25 = arith.constant 3.200000e+01 : f32
    %94 = vector.broadcast %cst_25 : f32 to vector<8x1xf32>
    %95 = arith.divf %93, %94 : vector<8x1xf32>
    %96 = vector.broadcast %88 : vector<8x1xf32> to vector<8x32xf32>
    %97 = arith.subf %84, %96 : vector<8x32xf32>
    %cst_26 = arith.constant 9.99999996E-13 : f32
    %98 = vector.broadcast %cst_26 : f32 to vector<8x1xf32>
    %99 = arith.addf %95, %98 : vector<8x1xf32>
    %100 = math.rsqrt %99 : vector<8x1xf32>
    %101 = vector.broadcast %100 : vector<8x1xf32> to vector<8x32xf32>
    %102 = arith.mulf %97, %101 : vector<8x32xf32>
    %c0_27 = arith.constant 0 : index
    %c0_28 = arith.constant 0 : index
    %103 = vector.load %arg8[%c0_27, %c0_28] : memref<1x32xf32, #tpu.memory_space<vmem>>, vector<1x32xf32>
    %104 = vector.broadcast %103 : vector<1x32xf32> to vector<8x32xf32>
    %105 = arith.mulf %102, %104 : vector<8x32xf32>
    %c0_29 = arith.constant 0 : index
    %c0_30 = arith.constant 0 : index
    %106 = vector.load %arg9[%c0_29, %c0_30] : memref<1x32xf32, #tpu.memory_space<vmem>>, vector<1x32xf32>
    %107 = vector.broadcast %106 : vector<1x32xf32> to vector<8x32xf32>
    %108 = arith.addf %105, %107 : vector<8x32xf32>
    %109 = arith.truncf %108 : vector<8x32xf32> to vector<8x32xbf16>
    %c0_31 = arith.constant 0 : index
    %c0_32 = arith.constant 0 : index
    %c0_33 = arith.constant 0 : index
    %110 = vector.load %arg10[%c0_31, %c0_32, %c0_33] : memref<1x8x32xbf16, #tpu.memory_space<vmem>>, vector<1x8x32xbf16>
    %111 = vector.shape_cast %110 : vector<1x8x32xbf16> to vector<8x32xbf16>
    %112 = vector.shape_cast %109 : vector<8x32xbf16> to vector<1x8x32xbf16>
    tpu.vector_store %arg10[%c0_31, %c0_32, %c0_33], %112 {strides = array<i32>} : memref<1x8x32xbf16, #tpu.memory_space<vmem>>, vector<1x8x32xbf16>,
    return
  }
  func.func @transform_0(%arg0: i32, %arg1: i32) -> (i32, i32, i32) {
    %c0_i32 = arith.constant 0 : i32
    %c0_i32_0 = arith.constant 0 : i32
    %c0_i32_1 = arith.constant 0 : i32
    return %arg0, %c0_i32, %c0_i32_0 : i32, i32, i32
  }
  func.func @transform_1(%arg0: i32, %arg1: i32) -> (i32, i32, i32) {
    %c0_i32 = arith.constant 0 : i32
    %c0_i32_0 = arith.constant 0 : i32
    %c0_i32_1 = arith.constant 0 : i32
    return %arg0, %c0_i32, %c0_i32_0 : i32, i32, i32
  }
  func.func @transform_2(%arg0: i32, %arg1: i32) -> (i32, i32) {
    %c0_i32 = arith.constant 0 : i32
    %c0_i32_0 = arith.constant 0 : i32
    %c0_i32_1 = arith.constant 0 : i32
    return %c0_i32, %c0_i32_0 : i32, i32
  }
  func.func @transform_3(%arg0: i32, %arg1: i32) -> (i32, i32) {
    %c0_i32 = arith.constant 0 : i32
    %c0_i32_0 = arith.constant 0 : i32
    %c0_i32_1 = arith.constant 0 : i32
    return %c0_i32, %c0_i32_0 : i32, i32
  }
  func.func @transform_4(%arg0: i32, %arg1: i32) -> (i32, i32) {
    %c0_i32 = arith.constant 0 : i32
    %c0_i32_0 = arith.constant 0 : i32
    %c0_i32_1 = arith.constant 0 : i32
    return %c0_i32, %c0_i32_0 : i32, i32
  }
  func.func @transform_5(%arg0: i32, %arg1: i32) -> (i32, i32) {
    %c0_i32 = arith.constant 0 : i32
    %c0_i32_0 = arith.constant 0 : i32
    %c0_i32_1 = arith.constant 0 : i32
    return %c0_i32, %c0_i32_0 : i32, i32
  }
  func.func @transform_6(%arg0: i32, %arg1: i32) -> (i32, i32) {
    %c0_i32 = arith.constant 0 : i32
    %c0_i32_0 = arith.constant 0 : i32
    %c0_i32_1 = arith.constant 0 : i32
    return %c0_i32, %c0_i32_0 : i32, i32
  }
  func.func @transform_7(%arg0: i32, %arg1: i32) -> (i32, i32) {
    %c0_i32 = arith.constant 0 : i32
    %c0_i32_0 = arith.constant 0 : i32
    %c0_i32_1 = arith.constant 0 : i32
    return %c0_i32, %c0_i32_0 : i32, i32
  }
  func.func @transform_8(%arg0: i32, %arg1: i32) -> (i32, i32, i32) {
    %c0_i32 = arith.constant 0 : i32
    %c0_i32_0 = arith.constant 0 : i32
    return %arg0, %arg1, %c0_i32 : i32, i32, i32
  }
}

module attributes {stable_mosaic.version = 11 : i64} {
  func.func @_ffn_block_kernel(%arg0: i32, %arg1: memref<32x32xbf16, #tpu.memory_space<vmem>>, %arg2: memref<32x64xbf16, #tpu.memory_space<vmem>>, %arg3: memref<1x64xf32, #tpu.memory_space<vmem>>, %arg4: memref<64x32xbf16, #tpu.memory_space<vmem>>, %arg5: memref<1x32xf32, #tpu.memory_space<vmem>>, %arg6: memref<1x32xf32, #tpu.memory_space<vmem>>, %arg7: memref<1x32xf32, #tpu.memory_space<vmem>>, %arg8: memref<32x32xbf16, #tpu.memory_space<vmem>>) attributes {dimension_semantics = [#tpu.dimension_semantics<parallel>], iteration_bounds = array<i64: 1>, scalar_prefetch = 0 : i64, scratch_operands = 0 : i64, tpu.core_type = #tpu.core_type<tc>, window_params = [{transform_indices = @transform_0, window_bounds = array<i64: 32, 32>}, {pipeline_mode = #tpu.pipeline_mode<synchronous>, transform_indices = @transform_1, window_bounds = array<i64: 32, 64>}, {pipeline_mode = #tpu.pipeline_mode<synchronous>, transform_indices = @transform_2, window_bounds = array<i64: 1, 64>}, {pipeline_mode = #tpu.pipeline_mode<synchronous>, transform_indices = @transform_3, window_bounds = array<i64: 64, 32>}, {pipeline_mode = #tpu.pipeline_mode<synchronous>, transform_indices = @transform_4, window_bounds = array<i64: 1, 32>}, {pipeline_mode = #tpu.pipeline_mode<synchronous>, transform_indices = @transform_5, window_bounds = array<i64: 1, 32>}, {pipeline_mode = #tpu.pipeline_mode<synchronous>, transform_indices = @transform_6, window_bounds = array<i64: 1, 32>}, {transform_indices = @transform_7, window_bounds = array<i64: 32, 32>}]} {
    %c0 = arith.constant 0 : index
    %c0_0 = arith.constant 0 : index
    %0 = vector.load %arg1[%c0, %c0_0] : memref<32x32xbf16, #tpu.memory_space<vmem>>, vector<32x32xbf16>
    %c0_1 = arith.constant 0 : index
    %c0_2 = arith.constant 0 : index
    %1 = vector.load %arg2[%c0_1, %c0_2] : memref<32x64xbf16, #tpu.memory_space<vmem>>, vector<32x64xbf16>
    %cst = arith.constant dense<0.000000e+00> : vector<32x64xf32>
    %2 = tpu.matmul %0, %1, %cst {dimension_numbers = #tpu.dot_dimension_numbers<[1], [0], [0], [1], [0, 0, 1, 1], [], []>} : vector<32x32xbf16>, vector<32x64xbf16>, vector<32x64xf32> -> vector<32x64xf32>
    %c0_3 = arith.constant 0 : index
    %c0_4 = arith.constant 0 : index
    %3 = vector.load %arg3[%c0_3, %c0_4] : memref<1x64xf32, #tpu.memory_space<vmem>>, vector<1x64xf32>
    %4 = vector.broadcast %3 : vector<1x64xf32> to vector<32x64xf32>
    %5 = arith.addf %2, %4 : vector<32x64xf32>
    %cst_5 = arith.constant 5.000000e-01 : f32
    %6 = vector.broadcast %cst_5 : f32 to vector<32x64xf32>
    %7 = arith.mulf %6, %5 : vector<32x64xf32>
    %cst_6 = arith.constant 4.471500e-02 : f32
    %8 = vector.broadcast %cst_6 : f32 to vector<32x64xf32>
    %9 = arith.mulf %8, %5 : vector<32x64xf32>
    %10 = arith.mulf %9, %5 : vector<32x64xf32>
    %11 = arith.mulf %10, %5 : vector<32x64xf32>
    %12 = arith.addf %5, %11 : vector<32x64xf32>
    %cst_7 = arith.constant 0.797884583 : f32
    %13 = vector.broadcast %cst_7 : f32 to vector<32x64xf32>
    %14 = arith.mulf %13, %12 : vector<32x64xf32>
    %15 = math.tanh %14 : vector<32x64xf32>
    %cst_8 = arith.constant 1.000000e+00 : f32
    %16 = vector.broadcast %cst_8 : f32 to vector<32x64xf32>
    %17 = arith.addf %16, %15 : vector<32x64xf32>
    %18 = arith.mulf %7, %17 : vector<32x64xf32>
    %19 = arith.truncf %18 : vector<32x64xf32> to vector<32x64xbf16>
    %c0_9 = arith.constant 0 : index
    %c0_10 = arith.constant 0 : index
    %20 = vector.load %arg4[%c0_9, %c0_10] : memref<64x32xbf16, #tpu.memory_space<vmem>>, vector<64x32xbf16>
    %cst_11 = arith.constant dense<0.000000e+00> : vector<32x32xf32>
    %21 = tpu.matmul %19, %20, %cst_11 {dimension_numbers = #tpu.dot_dimension_numbers<[1], [0], [0], [1], [0, 0, 1, 1], [], []>} : vector<32x64xbf16>, vector<64x32xbf16>, vector<32x32xf32> -> vector<32x32xf32>
    %c0_12 = arith.constant 0 : index
    %c0_13 = arith.constant 0 : index
    %22 = vector.load %arg5[%c0_12, %c0_13] : memref<1x32xf32, #tpu.memory_space<vmem>>, vector<1x32xf32>
    %23 = vector.broadcast %22 : vector<1x32xf32> to vector<32x32xf32>
    %24 = arith.addf %21, %23 : vector<32x32xf32>
    %25 = arith.extf %0 : vector<32x32xbf16> to vector<32x32xf32>
    %26 = arith.addf %24, %25 : vector<32x32xf32>
    %cst_14 = arith.constant dense<0.000000e+00> : vector<32xf32>
    %27 = vector.multi_reduction <add>, %26, %cst_14 [1] : vector<32x32xf32> to vector<32xf32>
    %28 = vector.shape_cast %27 : vector<32xf32> to vector<32x1xf32>
    %cst_15 = arith.constant 3.200000e+01 : f32
    %29 = vector.broadcast %cst_15 : f32 to vector<32x1xf32>
    %30 = arith.divf %28, %29 : vector<32x1xf32>
    %31 = vector.broadcast %30 : vector<32x1xf32> to vector<32x32xf32>
    %32 = arith.subf %26, %31 : vector<32x32xf32>
    %33 = arith.mulf %32, %32 : vector<32x32xf32>
    %cst_16 = arith.constant dense<0.000000e+00> : vector<32xf32>
    %34 = vector.multi_reduction <add>, %33, %cst_16 [1] : vector<32x32xf32> to vector<32xf32>
    %35 = vector.shape_cast %34 : vector<32xf32> to vector<32x1xf32>
    %cst_17 = arith.constant 3.200000e+01 : f32
    %36 = vector.broadcast %cst_17 : f32 to vector<32x1xf32>
    %37 = arith.divf %35, %36 : vector<32x1xf32>
    %38 = vector.broadcast %30 : vector<32x1xf32> to vector<32x32xf32>
    %39 = arith.subf %26, %38 : vector<32x32xf32>
    %cst_18 = arith.constant 9.99999996E-13 : f32
    %40 = vector.broadcast %cst_18 : f32 to vector<32x1xf32>
    %41 = arith.addf %37, %40 : vector<32x1xf32>
    %42 = math.rsqrt %41 : vector<32x1xf32>
    %43 = vector.broadcast %42 : vector<32x1xf32> to vector<32x32xf32>
    %44 = arith.mulf %39, %43 : vector<32x32xf32>
    %c0_19 = arith.constant 0 : index
    %c0_20 = arith.constant 0 : index
    %45 = vector.load %arg6[%c0_19, %c0_20] : memref<1x32xf32, #tpu.memory_space<vmem>>, vector<1x32xf32>
    %46 = vector.broadcast %45 : vector<1x32xf32> to vector<32x32xf32>
    %47 = arith.mulf %44, %46 : vector<32x32xf32>
    %c0_21 = arith.constant 0 : index
    %c0_22 = arith.constant 0 : index
    %48 = vector.load %arg7[%c0_21, %c0_22] : memref<1x32xf32, #tpu.memory_space<vmem>>, vector<1x32xf32>
    %49 = vector.broadcast %48 : vector<1x32xf32> to vector<32x32xf32>
    %50 = arith.addf %47, %49 : vector<32x32xf32>
    %51 = arith.truncf %50 : vector<32x32xf32> to vector<32x32xbf16>
    %c0_23 = arith.constant 0 : index
    %c0_24 = arith.constant 0 : index
    %52 = vector.load %arg8[%c0_23, %c0_24] : memref<32x32xbf16, #tpu.memory_space<vmem>>, vector<32x32xbf16>
    tpu.vector_store %arg8[%c0_23, %c0_24], %51 {strides = array<i32>} : memref<32x32xbf16, #tpu.memory_space<vmem>>, vector<32x32xbf16>,
    return
  }
  func.func @transform_0(%arg0: i32) -> (i32, i32) {
    %c0_i32 = arith.constant 0 : i32
    %c0_i32_0 = arith.constant 0 : i32
    return %arg0, %c0_i32 : i32, i32
  }
  func.func @transform_1(%arg0: i32) -> (i32, i32) {
    %c0_i32 = arith.constant 0 : i32
    %c0_i32_0 = arith.constant 0 : i32
    %c0_i32_1 = arith.constant 0 : i32
    return %c0_i32, %c0_i32_0 : i32, i32
  }
  func.func @transform_2(%arg0: i32) -> (i32, i32) {
    %c0_i32 = arith.constant 0 : i32
    %c0_i32_0 = arith.constant 0 : i32
    %c0_i32_1 = arith.constant 0 : i32
    return %c0_i32, %c0_i32_0 : i32, i32
  }
  func.func @transform_3(%arg0: i32) -> (i32, i32) {
    %c0_i32 = arith.constant 0 : i32
    %c0_i32_0 = arith.constant 0 : i32
    %c0_i32_1 = arith.constant 0 : i32
    return %c0_i32, %c0_i32_0 : i32, i32
  }
  func.func @transform_4(%arg0: i32) -> (i32, i32) {
    %c0_i32 = arith.constant 0 : i32
    %c0_i32_0 = arith.constant 0 : i32
    %c0_i32_1 = arith.constant 0 : i32
    return %c0_i32, %c0_i32_0 : i32, i32
  }
  func.func @transform_5(%arg0: i32) -> (i32, i32) {
    %c0_i32 = arith.constant 0 : i32
    %c0_i32_0 = arith.constant 0 : i32
    %c0_i32_1 = arith.constant 0 : i32
    return %c0_i32, %c0_i32_0 : i32, i32
  }
  func.func @transform_6(%arg0: i32) -> (i32, i32) {
    %c0_i32 = arith.constant 0 : i32
    %c0_i32_0 = arith.constant 0 : i32
    %c0_i32_1 = arith.constant 0 : i32
    return %c0_i32, %c0_i32_0 : i32, i32
  }
  func.func @transform_7(%arg0: i32) -> (i32, i32) {
    %c0_i32 = arith.constant 0 : i32
    %c0_i32_0 = arith.constant 0 : i32
    return %arg0, %c0_i32 : i32, i32
  }
}

module attributes {stable_mosaic.version = 11 : i64} {
  func.func @_tail_kernel(%arg0: memref<4x32xbf16, #tpu.memory_space<vmem>>, %arg1: memref<32x32xbf16, #tpu.memory_space<vmem>>, %arg2: memref<1x32xf32, #tpu.memory_space<vmem>>, %arg3: memref<32x256xbf16, #tpu.memory_space<vmem>>, %arg4: memref<64x256xbf16, #tpu.memory_space<vmem>>, %arg5: memref<1x256xf32, #tpu.memory_space<vmem>>, %arg6: memref<1x256xf32, #tpu.memory_space<vmem>>, %arg7: memref<64x5xbf16, #tpu.memory_space<vmem>>, %arg8: memref<1x5xf32, #tpu.memory_space<vmem>>, %arg9: memref<4x5xf32, #tpu.memory_space<vmem>>, %arg10: memref<4x256xf32, #tpu.memory_space<vmem>>, %arg11: memref<1x64xf32, #tpu.memory_space<vmem>>, %arg12: memref<1x64xf32, #tpu.memory_space<vmem>>, %arg13: memref<4x64xf32, #tpu.memory_space<vmem>>) attributes {dimension_semantics = [], scalar_prefetch = 0 : i64, scratch_operands = 4 : i64, tpu.core_type = #tpu.core_type<tc>} {
    %c0 = arith.constant 0 : index
    %c0_0 = arith.constant 0 : index
    %0 = vector.load %arg0[%c0, %c0_0] : memref<4x32xbf16, #tpu.memory_space<vmem>>, vector<4x32xbf16>
    %c0_1 = arith.constant 0 : index
    %c0_2 = arith.constant 0 : index
    %1 = vector.load %arg1[%c0_1, %c0_2] : memref<32x32xbf16, #tpu.memory_space<vmem>>, vector<32x32xbf16>
    %cst = arith.constant dense<0.000000e+00> : vector<4x32xf32>
    %2 = tpu.matmul %0, %1, %cst {dimension_numbers = #tpu.dot_dimension_numbers<[1], [0], [0], [1], [0, 0, 1, 1], [], []>} : vector<4x32xbf16>, vector<32x32xbf16>, vector<4x32xf32> -> vector<4x32xf32>
    %c0_3 = arith.constant 0 : index
    %c0_4 = arith.constant 0 : index
    %3 = vector.load %arg2[%c0_3, %c0_4] : memref<1x32xf32, #tpu.memory_space<vmem>>, vector<1x32xf32>
    %4 = vector.broadcast %3 : vector<1x32xf32> to vector<4x32xf32>
    %5 = arith.addf %2, %4 : vector<4x32xf32>
    %6 = math.tanh %5 : vector<4x32xf32>
    %7 = arith.truncf %6 : vector<4x32xf32> to vector<4x32xbf16>
    %c0_5 = arith.constant 0 : index
    %c0_6 = arith.constant 0 : index
    %8 = vector.load %arg3[%c0_5, %c0_6] : memref<32x256xbf16, #tpu.memory_space<vmem>>, vector<32x256xbf16>
    %cst_7 = arith.constant dense<0.000000e+00> : vector<4x256xf32>
    %9 = tpu.matmul %7, %8, %cst_7 {dimension_numbers = #tpu.dot_dimension_numbers<[1], [0], [0], [1], [0, 0, 1, 1], [], []>} : vector<4x32xbf16>, vector<32x256xbf16>, vector<4x256xf32> -> vector<4x256xf32>
    %c0_8 = arith.constant 0 : index
    %c0_9 = arith.constant 0 : index
    %10 = vector.load %arg5[%c0_8, %c0_9] : memref<1x256xf32, #tpu.memory_space<vmem>>, vector<1x256xf32>
    %11 = vector.broadcast %10 : vector<1x256xf32> to vector<4x256xf32>
    %12 = arith.addf %9, %11 : vector<4x256xf32>
    %13 = tpu.iota {dimensions = array<i32: 0>} : vector<4x4xi32>
    %14 = tpu.iota {dimensions = array<i32: 1>} : vector<4x4xi32>
    %15 = arith.addi %13, %14 : vector<4x4xi32>
    %c3_i32 = arith.constant 3 : i32
    %16 = vector.broadcast %c3_i32 : i32 to vector<4x4xi32>
    %17 = arith.cmpi eq, %15, %16 : vector<4x4xi32>
    %18 = arith.extui %17 : vector<4x4xi1> to vector<4x4xi32>
    %19 = arith.sitofp %18 : vector<4x4xi32> to vector<4x4xf32>
    %cst_10 = arith.constant dense<0.000000e+00> : vector<4x256xf32>
    %20 = tpu.matmul %19, %12, %cst_10 {dimension_numbers = #tpu.dot_dimension_numbers<[1], [0], [0], [1], [0, 0, 1, 1], [], []>} : vector<4x4xf32>, vector<4x256xf32>, vector<4x256xf32> -> vector<4x256xf32>
    %c0_11 = arith.constant 0 : index
    %c0_12 = arith.constant 0 : index
    %21 = vector.load %arg6[%c0_11, %c0_12] : memref<1x256xf32, #tpu.memory_space<vmem>>, vector<1x256xf32>
    %22 = vector.broadcast %21 : vector<1x256xf32> to vector<4x256xf32>
    %23 = arith.mulf %22, %12 : vector<4x256xf32>
    %cst_13 = arith.constant 1.000000e+00 : f32
    %24 = vector.broadcast %cst_13 : f32 to vector<1x256xf32>
    %25 = arith.subf %24, %21 : vector<1x256xf32>
    %26 = vector.broadcast %25 : vector<1x256xf32> to vector<4x256xf32>
    %27 = arith.mulf %26, %20 : vector<4x256xf32>
    %28 = arith.addf %23, %27 : vector<4x256xf32>
    %c0_14 = arith.constant 0 : index
    %c0_15 = arith.constant 0 : index
    %29 = vector.load %arg10[%c0_14, %c0_15] : memref<4x256xf32, #tpu.memory_space<vmem>>, vector<4x256xf32>
    tpu.vector_store %arg10[%c0_14, %c0_15], %28 {strides = array<i32>} : memref<4x256xf32, #tpu.memory_space<vmem>>, vector<4x256xf32>,
    %cst_16 = arith.constant 0.000000e+00 : f32
    %30 = vector.broadcast %cst_16 : f32 to vector<1x64xf32>
    %c0_17 = arith.constant 0 : index
    %c0_18 = arith.constant 0 : index
    %31 = vector.load %arg11[%c0_17, %c0_18] : memref<1x64xf32, #tpu.memory_space<vmem>>, vector<1x64xf32>
    tpu.vector_store %arg11[%c0_17, %c0_18], %30 {strides = array<i32>} : memref<1x64xf32, #tpu.memory_space<vmem>>, vector<1x64xf32>,
    %cst_19 = arith.constant 0.000000e+00 : f32
    %32 = vector.broadcast %cst_19 : f32 to vector<1x64xf32>
    %c0_20 = arith.constant 0 : index
    %c0_21 = arith.constant 0 : index
    %33 = vector.load %arg12[%c0_20, %c0_21] : memref<1x64xf32, #tpu.memory_space<vmem>>, vector<1x64xf32>
    tpu.vector_store %arg12[%c0_20, %c0_21], %32 {strides = array<i32>} : memref<1x64xf32, #tpu.memory_space<vmem>>, vector<1x64xf32>,
    %c0_i32 = arith.constant 0 : i32
    %c4_i32 = arith.constant 4 : i32
    %34 = arith.addi %c0_i32, %c4_i32 : i32
    %c1_i32 = arith.constant 1 : i32
    scf.for %arg14 = %c0_i32 to %34 step %c1_i32  : i32 {
      %c1_i32_34 = arith.constant 1 : i32
      %56 = arith.muli %arg14, %c1_i32_34 : i32
      %c0_i32_35 = arith.constant 0 : i32
      %57 = arith.addi %c0_i32_35, %56 : i32
      %58 = arith.index_cast %57 : i32 to index
      %c0_36 = arith.constant 0 : index
      %59 = vector.load %arg10[%58, %c0_36] : memref<4x256xf32, #tpu.memory_space<vmem>>, vector<1x256xf32>
      %c0_37 = arith.constant 0 : index
      %c0_38 = arith.constant 0 : index
      %60 = vector.load %arg11[%c0_37, %c0_38] : memref<1x64xf32, #tpu.memory_space<vmem>>, vector<1x64xf32>
      %61 = arith.truncf %60 : vector<1x64xf32> to vector<1x64xbf16>
      %c0_39 = arith.constant 0 : index
      %c0_40 = arith.constant 0 : index
      %62 = vector.load %arg4[%c0_39, %c0_40] : memref<64x256xbf16, #tpu.memory_space<vmem>>, vector<64x256xbf16>
      %cst_41 = arith.constant dense<0.000000e+00> : vector<1x256xf32>
      %63 = tpu.matmul %61, %62, %cst_41 {dimension_numbers = #tpu.dot_dimension_numbers<[1], [0], [0], [1], [0, 0, 1, 1], [], []>} : vector<1x64xbf16>, vector<64x256xbf16>, vector<1x256xf32> -> vector<1x256xf32>
      %64 = arith.addf %59, %63 : vector<1x256xf32>
      %65 = vector.extract_strided_slice %64 {offsets = [0, 0], sizes = [1, 64], strides = [1, 1]} : vector<1x256xf32> to vector<1x64xf32>
      %66 = arith.negf %65 : vector<1x64xf32>
      %67 = math.exp %66 : vector<1x64xf32>
      %cst_42 = arith.constant 1.000000e+00 : f32
      %68 = vector.broadcast %cst_42 : f32 to vector<1x64xf32>
      %69 = arith.addf %68, %67 : vector<1x64xf32>
      %70 = arith.divf %68, %69 : vector<1x64xf32>
      %71 = vector.extract_strided_slice %64 {offsets = [0, 64], sizes = [1, 64], strides = [1, 1]} : vector<1x256xf32> to vector<1x64xf32>
      %72 = arith.negf %71 : vector<1x64xf32>
      %73 = math.exp %72 : vector<1x64xf32>
      %cst_43 = arith.constant 1.000000e+00 : f32
      %74 = vector.broadcast %cst_43 : f32 to vector<1x64xf32>
      %75 = arith.addf %74, %73 : vector<1x64xf32>
      %76 = arith.divf %74, %75 : vector<1x64xf32>
      %77 = vector.extract_strided_slice %64 {offsets = [0, 128], sizes = [1, 64], strides = [1, 1]} : vector<1x256xf32> to vector<1x64xf32>
      %78 = math.tanh %77 : vector<1x64xf32>
      %79 = vector.extract_strided_slice %64 {offsets = [0, 192], sizes = [1, 64], strides = [1, 1]} : vector<1x256xf32> to vector<1x64xf32>
      %80 = arith.negf %79 : vector<1x64xf32>
      %81 = math.exp %80 : vector<1x64xf32>
      %cst_44 = arith.constant 1.000000e+00 : f32
      %82 = vector.broadcast %cst_44 : f32 to vector<1x64xf32>
      %83 = arith.addf %82, %81 : vector<1x64xf32>
      %84 = arith.divf %82, %83 : vector<1x64xf32>
      %c0_45 = arith.constant 0 : index
      %c0_46 = arith.constant 0 : index
      %85 = vector.load %arg12[%c0_45, %c0_46] : memref<1x64xf32, #tpu.memory_space<vmem>>, vector<1x64xf32>
      %86 = arith.mulf %76, %85 : vector<1x64xf32>
      %87 = arith.mulf %70, %78 : vector<1x64xf32>
      %88 = arith.addf %86, %87 : vector<1x64xf32>
      %89 = math.tanh %88 : vector<1x64xf32>
      %90 = arith.mulf %84, %89 : vector<1x64xf32>
      %c0_47 = arith.constant 0 : index
      %c0_48 = arith.constant 0 : index
      %91 = vector.load %arg12[%c0_47, %c0_48] : memref<1x64xf32, #tpu.memory_space<vmem>>, vector<1x64xf32>
      tpu.vector_store %arg12[%c0_47, %c0_48], %88 {strides = array<i32>} : memref<1x64xf32, #tpu.memory_space<vmem>>, vector<1x64xf32>,
      %c0_49 = arith.constant 0 : index
      %c0_50 = arith.constant 0 : index
      %92 = vector.load %arg11[%c0_49, %c0_50] : memref<1x64xf32, #tpu.memory_space<vmem>>, vector<1x64xf32>
      tpu.vector_store %arg11[%c0_49, %c0_50], %90 {strides = array<i32>} : memref<1x64xf32, #tpu.memory_space<vmem>>, vector<1x64xf32>,
      %93 = arith.index_cast %57 : i32 to index
      %c0_51 = arith.constant 0 : index
      %94 = vector.load %arg13[%93, %c0_51] : memref<4x64xf32, #tpu.memory_space<vmem>>, vector<1x64xf32>
      tpu.vector_store %arg13[%93, %c0_51], %90 {strides = array<i32>} : memref<4x64xf32, #tpu.memory_space<vmem>>, vector<1x64xf32>,
    }
    %c4_i32_22 = arith.constant 4 : i32
    %c0_23 = arith.constant 0 : index
    %c0_24 = arith.constant 0 : index
    %35 = vector.load %arg13[%c0_23, %c0_24] : memref<4x64xf32, #tpu.memory_space<vmem>>, vector<4x64xf32>
    %cst_25 = arith.constant dense<0.000000e+00> : vector<4x64xf32>
    %36 = tpu.matmul %19, %35, %cst_25 {dimension_numbers = #tpu.dot_dimension_numbers<[1], [0], [0], [1], [0, 0, 1, 1], [], []>} : vector<4x4xf32>, vector<4x64xf32>, vector<4x64xf32> -> vector<4x64xf32>
    %37 = tpu.iota {dimensions = array<i32: 1>} : vector<1x64xi32>
    %c32_i32 = arith.constant 32 : i32
    %38 = vector.broadcast %c32_i32 : i32 to vector<1x64xi32>
    %39 = arith.cmpi slt, %37, %38 : vector<1x64xi32>
    %40 = arith.extui %39 : vector<1x64xi1> to vector<1x64xi32>
    %41 = arith.sitofp %40 : vector<1x64xi32> to vector<1x64xf32>
    %42 = vector.broadcast %41 : vector<1x64xf32> to vector<4x64xf32>
    %43 = arith.mulf %42, %35 : vector<4x64xf32>
    %cst_26 = arith.constant 1.000000e+00 : f32
    %44 = vector.broadcast %cst_26 : f32 to vector<1x64xf32>
    %45 = arith.subf %44, %41 : vector<1x64xf32>
    %46 = vector.broadcast %45 : vector<1x64xf32> to vector<4x64xf32>
    %47 = arith.mulf %46, %36 : vector<4x64xf32>
    %48 = arith.addf %43, %47 : vector<4x64xf32>
    %49 = arith.truncf %48 : vector<4x64xf32> to vector<4x64xbf16>
    %c0_27 = arith.constant 0 : index
    %c0_28 = arith.constant 0 : index
    %50 = vector.load %arg7[%c0_27, %c0_28] : memref<64x5xbf16, #tpu.memory_space<vmem>>, vector<64x5xbf16>
    %cst_29 = arith.constant dense<0.000000e+00> : vector<4x5xf32>
    %51 = tpu.matmul %49, %50, %cst_29 {dimension_numbers = #tpu.dot_dimension_numbers<[1], [0], [0], [1], [0, 0, 1, 1], [], []>} : vector<4x64xbf16>, vector<64x5xbf16>, vector<4x5xf32> -> vector<4x5xf32>
    %c0_30 = arith.constant 0 : index
    %c0_31 = arith.constant 0 : index
    %52 = vector.load %arg8[%c0_30, %c0_31] : memref<1x5xf32, #tpu.memory_space<vmem>>, vector<1x5xf32>
    %53 = vector.broadcast %52 : vector<1x5xf32> to vector<4x5xf32>
    %54 = arith.addf %51, %53 : vector<4x5xf32>
    %c0_32 = arith.constant 0 : index
    %c0_33 = arith.constant 0 : index
    %55 = vector.load %arg9[%c0_32, %c0_33] : memref<4x5xf32, #tpu.memory_space<vmem>>, vector<4x5xf32>
    tpu.vector_store %arg9[%c0_32, %c0_33], %54 {strides = array<i32>} : memref<4x5xf32, #tpu.memory_space<vmem>>, vector<4x5xf32>,
    return
  }
}

</mosaic_0001>

<llo_original>
// kernel: bert_lstm_forward.6
$region0: #{bert_lstm_forward.6}
  #allocation0 [shape = 'u32[]', space=smem, size = 0x4, offset = 0x4, fixed_abs, tag = 'smem constant byte address 0x4 - core index']
  #allocation1 [shape = 'u32[144,128]{1,0:T(1,128)}', space=vmem, size = 0x12000, scoped, tag = 'internal scratch']
  %s0 = inlined_call_operand.vmem [shape: f32[32,32], index: 0, kind: input, shape index: {}]
  %s1 = inlined_call_operand.vmem [shape: f32[1,32], index: 1, kind: input, shape index: {}]
  %s2 = inlined_call_operand.vmem [shape: f32[1,32], index: 2, kind: input, shape index: {}]
  %s3 = inlined_call_operand.hbm [shape: bf16[32,32], index: 3, kind: output, shape index: {}]
  %s4 = sld [smem:[#allocation0]]
  $region22: #{bert_lstm_forward.6} parent=0
    _
  %s6 = ssub.s32 1, %s4
  %s7 = scalar_select 0, %s6, %s4
  $region1: #{bert_lstm_forward.6} parent=0
    #allocation2 [shape = 'u8[8192]{0}', space=vmem, size = 0x2000, scoped, tag = 'output window, operand 0, single buffered']
    #allocation3 [shape = 's32[1]{0}', space=sflag, size = 0x4, scoped, tag = 'scoped memory for bert_lstm_forward.6']
    %8 = vsyncpa [#allocation3], 0
    // Predicated region
    $region2: #{bert_lstm_forward.6} parent=1 // pred_check
      _
    $region3: #{bert_lstm_forward.6} parent=1 // pred_check_branch
      %10 = sbr.rel (0) target = $region5
    $region4: #{bert_lstm_forward.6} parent=1 // pred_region
      _
    $region5: #{bert_lstm_forward.6} parent=1 // pred_fallthru
      _
    // Predicated region
    $region6: #{bert_lstm_forward.6} parent=1 // pred_check
      _
    $region7: #{bert_lstm_forward.6} parent=1 // pred_check_branch
      %12 = sbr.rel (0) target = $region9
    $region8: #{bert_lstm_forward.6} parent=1 // pred_region
      _
    $region9: #{bert_lstm_forward.6} parent=1 // pred_fallthru
      _
    // Predicated region
    $region10: #{bert_lstm_forward.6} parent=1 // pred_check
      _
    $region11: #{bert_lstm_forward.6} parent=1 // pred_check_branch
      %14 = sbr.rel (0) target = $region13
    $region12: #{bert_lstm_forward.6} parent=1 // pred_region
      _
    $region13: #{bert_lstm_forward.6} parent=1 // pred_fallthru
      _
    %v15 = vld [vmem:[%s0] sm:$0xff]
    %v16 = vld [vmem:[%s0 + $0x8] sm:$0xff]
    %v17 = vld [vmem:[%s0 + $0x10] sm:$0xff]
    %v18 = vld [vmem:[%s0 + $0x18] sm:$0xff]
    %vm19 = vcmask 261120
    %v20 = vsel %vm19, %v15, 0.0
    %21 = vadd.xlane.f32.xlu0 %v20
    %v22 = vpop.xlane.xlu0 %21
    %v23 = vsel %vm19, %v16, 0.0
    %24 = vadd.xlane.f32.xlu0 %v23
    %v25 = vpop.xlane.xlu0 %24
    %v26 = vsel %vm19, %v17, 0.0
    %27 = vadd.xlane.f32.xlu0 %v26
    %v28 = vpop.xlane.xlu0 %27
    %v29 = vsel %vm19, %v18, 0.0
    %30 = vadd.xlane.f32.xlu0 %v29
    %v31 = vpop.xlane.xlu0 %30
    %v32 = vrcp.pop 32.0
    %v33 = vmul.f32 %v22, %v32
    %v34 = vmul.f32 %v25, %v32
    %v35 = vmul.f32 %v28, %v32
    %v36 = vmul.f32 %v31, %v32
    %v37 = vsub.f32 %v15, %v33
    %v38 = vsub.f32 %v16, %v34
    %v39 = vsub.f32 %v17, %v35
    %v40 = vsub.f32 %v18, %v36
    %v41 = vmul.f32 %v37, %v37
    %v42 = vmul.f32 %v38, %v38
    %v43 = vmul.f32 %v39, %v39
    %v44 = vmul.f32 %v40, %v40
    %v45 = vsel %vm19, %v41, 0.0
    %46 = vadd.xlane.f32.xlu0 %v45
    %v47 = vpop.xlane.xlu0 %46
    %v48 = vsel %vm19, %v42, 0.0
    %49 = vadd.xlane.f32.xlu0 %v48
    %v50 = vpop.xlane.xlu0 %49
    %v51 = vsel %vm19, %v43, 0.0
    %52 = vadd.xlane.f32.xlu0 %v51
    %v53 = vpop.xlane.xlu0 %52
    %v54 = vsel %vm19, %v44, 0.0
    %55 = vadd.xlane.f32.xlu0 %v54
    %v56 = vpop.xlane.xlu0 %55
    %v57 = vmul.f32 %v47, %v32
    %v58 = vmul.f32 %v50, %v32
    %v59 = vmul.f32 %v53, %v32
    %v60 = vmul.f32 %v56, %v32
    %v61 = vadd.f32 %v57, 1e-12
    %v62 = vadd.f32 %v58, 1e-12
    %v63 = vadd.f32 %v59, 1e-12
    %v64 = vadd.f32 %v60, 1e-12
    %v65 = vrsqrt.pop %v61
    %v66 = vrsqrt.pop %v62
    %v67 = vrsqrt.pop %v63
    %v68 = vrsqrt.pop %v64
    %v69 = vmul.f32 %v37, %v65
    %v70 = vmul.f32 %v38, %v66
    %v71 = vmul.f32 %v39, %v67
    %v72 = vmul.f32 %v40, %v68
    %v73 = vld [vmem:[%s1] sm:$0x1]
    %v75 = vlaneseq
    %v76 = vshrl.u32 %v75, 7
    %v77 = vsub.s32 0, %v76
    %v78 = vrot.slane %v73, %v77
    %v80 = vmul.f32 %v69, %v78
    %v81 = vmul.f32 %v70, %v78
    %v82 = vmul.f32 %v71, %v78
    %v83 = vmul.f32 %v72, %v78
    %v84 = vld [vmem:[%s2] sm:$0x1]
    %v86 = vlaneseq
    %v87 = vshrl.u32 %v86, 7
    %v88 = vsub.s32 0, %v87
    %v89 = vrot.slane %v84, %v88
    %v91 = vadd.f32 %v80, %v89
    %v92 = vadd.f32 %v81, %v89
    %v93 = vadd.f32 %v82, %v89
    %v94 = vadd.f32 %v83, %v89
    %v95 = vpack.c.bf16 %v92, %v91
    %v96 = vpack.c.bf16 %v94, %v93
    %v99 = vunpack.c.l.b16 %v95
    %v100 = vunpack.c.h.b16 %v95
    %v101 = vunpack.c.l.b16 %v96
    %v102 = vunpack.c.h.b16 %v96
    %v103 = vpack.c.b16 %v99, %v99
    %v104 = vpack.c.b16 %v100, %v100
    %v105 = vpack.c.b16 %v101, %v101
    %v106 = vpack.c.b16 %v102, %v102
    %vm111 = vcmask 257024
    %112 = vst.msk [vmem:[#allocation2] sm:$0xf] %vm111, %v103
    %113 = vst.msk [vmem:[#allocation2 + $0x4] sm:$0xf] %vm111, %v104
    %114 = vst.msk [vmem:[#allocation2 + $0x8] sm:$0xf] %vm111, %v105
    %115 = vst.msk [vmem:[#allocation2 + $0xc] sm:$0xf] %vm111, %v106
    // Predicated region
    $region14: #{bert_lstm_forward.6} parent=1 // pred_check
      _
    $region15: #{bert_lstm_forward.6} parent=1 // pred_check_branch
      %117 = sbr.rel (0) target = $region17
    $region16: #{bert_lstm_forward.6} parent=1 // pred_region
      %s119 = ssub.s32 256, 256
      %120 = vsyncadd [#allocation3], %s119
      %s121 = sshll.u32 [#allocation2], 4
      %s122 = int_to_ptr.vmem [resolvable:$true] %s121
      %127 = dma.vmem_to_hbm [thread:$0]  %s122, 256, %s3, [#allocation3], 64, 64, 4
    $region17: #{bert_lstm_forward.6} parent=1 // pred_fallthru
      _
    // Predicated region
    $region18: #{bert_lstm_forward.6} parent=1 // pred_check
      _
    $region19: #{bert_lstm_forward.6} parent=1 // pred_check_branch
      %129 = sbr.rel (0) target = $region21
    $region20: #{bert_lstm_forward.6} parent=1 // pred_region
      %130 = dma.done [#allocation3], 256
    $region21: #{bert_lstm_forward.6} parent=1 // pred_fallthru
      _
    %131 = vsyncpa [#allocation3], 1

// kernel: bert_lstm_forward.8
$region0: #{bert_lstm_forward.8}
  #allocation0 [shape = 'u32[]', space=smem, size = 0x4, offset = 0x4, fixed_abs, tag = 'smem constant byte address 0x4 - core index']
  #allocation1 [shape = 'u32[144,128]{1,0:T(1,128)}', space=vmem, size = 0x12000, scoped, tag = 'internal scratch']
  %s0 = inlined_call_operand.hbm [shape: bf16[32,32], index: 0, kind: input, shape index: {}]
  %s1 = inlined_call_operand.hbm [shape: bf16[32,64], index: 1, kind: input, shape index: {}]
  %s2 = inlined_call_operand.hbm [shape: f32[1,64], index: 2, kind: input, shape index: {}]
  %s3 = inlined_call_operand.hbm [shape: bf16[64,32], index: 3, kind: input, shape index: {}]
  %s4 = inlined_call_operand.hbm [shape: f32[1,32], index: 4, kind: input, shape index: {}]
  %s5 = inlined_call_operand.hbm [shape: f32[1,32], index: 5, kind: input, shape index: {}]
  %s6 = inlined_call_operand.hbm [shape: f32[1,32], index: 6, kind: input, shape index: {}]
  %s7 = inlined_call_operand.hbm [shape: bf16[32,32], index: 7, kind: output, shape index: {}]
  %s8 = sld [smem:[#allocation0]]
  $region66: #{bert_lstm_forward.8} parent=0
    _
  %s10 = ssub.s32 1, %s8
  %s11 = scalar_select 0, %s10, %s8
  $region1: #{bert_lstm_forward.8} parent=0
    #allocation2 [shape = 'u8[8192]{0}', space=vmem, size = 0x2000, scoped, tag = 'input window, operand 0, single buffered']
    #allocation3 [shape = 's32[1]{0}', space=sflag, size = 0x4, scoped, tag = 'scoped memory for bert_lstm_forward.8']
    #allocation4 [shape = 's32[1]{0}', space=sflag, size = 0x4, scoped, tag = 'scoped memory for bert_lstm_forward.8']
    #allocation5 [shape = 'u8[8192]{0}', space=vmem, size = 0x2000, scoped, tag = 'input window, operand 1, single buffered']
    #allocation6 [shape = 's32[1]{0}', space=sflag, size = 0x4, scoped, tag = 'scoped memory for bert_lstm_forward.8']
    #allocation7 [shape = 'u8[512]{0}', space=vmem, size = 0x400, scoped, tag = 'input window, operand 2, single buffered']
    #allocation8 [shape = 'u8[16384]{0}', space=vmem, size = 0x4000, scoped, tag = 'input window, operand 3, single buffered']
    #allocation9 [shape = 's32[1]{0}', space=sflag, size = 0x4, scoped, tag = 'scoped memory for bert_lstm_forward.8']
    #allocation10 [shape = 'u8[512]{0}', space=vmem, size = 0x400, scoped, tag = 'input window, operand 4, single buffered']
    #allocation11 [shape = 'u8[512]{0}', space=vmem, size = 0x400, scoped, tag = 'input window, operand 5, single buffered']
    #allocation12 [shape = 's32[1]{0}', space=sflag, size = 0x4, scoped, tag = 'scoped memory for bert_lstm_forward.8']
    #allocation13 [shape = 'u8[512]{0}', space=vmem, size = 0x400, scoped, tag = 'input window, operand 6, single buffered']
    #allocation14 [shape = 'u8[8192]{0}', space=vmem, size = 0x2000, scoped, tag = 'output window, operand 0, single buffered']
    %12 = vsyncpa [#allocation3], 0
    %13 = vsyncpa [#allocation6], 0
    %14 = vsyncpa [#allocation9], 0
    %15 = vsyncpa [#allocation12], 0
    %16 = vsyncpa [#allocation4], 0
    // Predicated region
    $region2: #{bert_lstm_forward.8} parent=1 // pred_check
      _
    $region3: #{bert_lstm_forward.8} parent=1 // pred_check_branch
      %18 = sbr.rel (0) target = $region5
    $region4: #{bert_lstm_forward.8} parent=1 // pred_region
      %s20 = ssub.s32 256, 256
      %21 = vsyncadd [#allocation3], %s20
      %s22 = sshll.u32 [#allocation2], 4
      %s23 = int_to_ptr.vmem [resolvable:$true] %s22
      %28 = dma.hbm_to_vmem [thread:$0]  %s0, 256, %s23, [#allocation3], 64, 64, 4
    $region5: #{bert_lstm_forward.8} parent=1 // pred_fallthru
      _
    // Predicated region
    $region6: #{bert_lstm_forward.8} parent=1 // pred_check
      _
    $region7: #{bert_lstm_forward.8} parent=1 // pred_check_branch
      %30 = sbr.rel (0) target = $region9
    $region8: #{bert_lstm_forward.8} parent=1 // pred_region
      %s32 = ssub.s32 256, 256
      %33 = vsyncadd [#allocation6], %s32
      %s34 = sshll.u32 [#allocation5], 4
      %s35 = int_to_ptr.vmem [resolvable:$true] %s34
      %40 = dma.hbm_to_vmem [thread:$0]  %s1, 256, %s35, [#allocation6], 64, 64, 4
    $region9: #{bert_lstm_forward.8} parent=1 // pred_fallthru
      _
    // Predicated region
    $region10: #{bert_lstm_forward.8} parent=1 // pred_check
      _
    $region11: #{bert_lstm_forward.8} parent=1 // pred_check_branch
      %42 = sbr.rel (0) target = $region13
    $region12: #{bert_lstm_forward.8} parent=1 // pred_region
      %s44 = ssub.s32 16, 16
      %45 = vsyncadd [#allocation6], %s44
      %s47 = sshll.u32 [#allocation7], 4
      %s48 = int_to_ptr.vmem [resolvable:$true] %s47
      %50 = dma.hbm_to_vmem [thread:$0]  %s2, 16, %s48, [#allocation6]
    $region13: #{bert_lstm_forward.8} parent=1 // pred_fallthru
      _
    // Predicated region
    $region14: #{bert_lstm_forward.8} parent=1 // pred_check
      _
    $region15: #{bert_lstm_forward.8} parent=1 // pred_check_branch
      %52 = sbr.rel (0) target = $region17
    $region16: #{bert_lstm_forward.8} parent=1 // pred_region
      %s54 = ssub.s32 512, 512
      %55 = vsyncadd [#allocation9], %s54
      %s56 = sshll.u32 [#allocation8], 4
      %s57 = int_to_ptr.vmem [resolvable:$true] %s56
      %62 = dma.hbm_to_vmem [thread:$0]  %s3, 512, %s57, [#allocation9], 64, 64, 4
    $region17: #{bert_lstm_forward.8} parent=1 // pred_fallthru
      _
    // Predicated region
    $region18: #{bert_lstm_forward.8} parent=1 // pred_check
      _
    $region19: #{bert_lstm_forward.8} parent=1 // pred_check_branch
      %64 = sbr.rel (0) target = $region21
    $region20: #{bert_lstm_forward.8} parent=1 // pred_region
      %s66 = ssub.s32 16, 16
      %67 = vsyncadd [#allocation9], %s66
      %s69 = sshll.u32 [#allocation10], 4
      %s70 = int_to_ptr.vmem [resolvable:$true] %s69
      %72 = dma.hbm_to_vmem [thread:$0]  %s4, 16, %s70, [#allocation9]
    $region21: #{bert_lstm_forward.8} parent=1 // pred_fallthru
      _
    // Predicated region
    $region22: #{bert_lstm_forward.8} parent=1 // pred_check
      _
    $region23: #{bert_lstm_forward.8} parent=1 // pred_check_branch
      %74 = sbr.rel (0) target = $region25
    $region24: #{bert_lstm_forward.8} parent=1 // pred_region
      %s76 = ssub.s32 16, 16
      %77 = vsyncadd [#allocation12], %s76
      %s79 = sshll.u32 [#allocation11], 4
      %s80 = int_to_ptr.vmem [resolvable:$true] %s79
      %82 = dma.hbm_to_vmem [thread:$0]  %s5, 16, %s80, [#allocation12]
    $region25: #{bert_lstm_forward.8} parent=1 // pred_fallthru
      _
    // Predicated region
    $region26: #{bert_lstm_forward.8} parent=1 // pred_check
      _
    $region27: #{bert_lstm_forward.8} parent=1 // pred_check_branch
      %84 = sbr.rel (0) target = $region29
    $region28: #{bert_lstm_forward.8} parent=1 // pred_region
      %s86 = ssub.s32 16, 16
      %87 = vsyncadd [#allocation12], %s86
      %s89 = sshll.u32 [#allocation13], 4
      %s90 = int_to_ptr.vmem [resolvable:$true] %s89
      %92 = dma.hbm_to_vmem [thread:$0]  %s6, 16, %s90, [#allocation12]
    $region29: #{bert_lstm_forward.8} parent=1 // pred_fallthru
      _
    // Predicated region
    $region30: #{bert_lstm_forward.8} parent=1 // pred_check
      _
    $region31: #{bert_lstm_forward.8} parent=1 // pred_check_branch
      %94 = sbr.rel (0) target = $region33
    $region32: #{bert_lstm_forward.8} parent=1 // pred_region
      %95 = dma.done [#allocation3], 256
    $region33: #{bert_lstm_forward.8} parent=1 // pred_fallthru
      _
    // Predicated region
    $region34: #{bert_lstm_forward.8} parent=1 // pred_check
      _
    $region35: #{bert_lstm_forward.8} parent=1 // pred_check_branch
      %97 = sbr.rel (0) target = $region37
    $region36: #{bert_lstm_forward.8} parent=1 // pred_region
      %98 = dma.done [#allocation6], 256
    $region37: #{bert_lstm_forward.8} parent=1 // pred_fallthru
      _
    // Predicated region
    $region38: #{bert_lstm_forward.8} parent=1 // pred_check
      _
    $region39: #{bert_lstm_forward.8} parent=1 // pred_check_branch
      %100 = sbr.rel (0) target = $region41
    $region40: #{bert_lstm_forward.8} parent=1 // pred_region
      %101 = dma.done [#allocation6], 16
    $region41: #{bert_lstm_forward.8} parent=1 // pred_fallthru
      _
    // Predicated region
    $region42: #{bert_lstm_forward.8} parent=1 // pred_check
      _
    $region43: #{bert_lstm_forward.8} parent=1 // pred_check_branch
      %103 = sbr.rel (0) target = $region45
    $region44: #{bert_lstm_forward.8} parent=1 // pred_region
      %104 = dma.done [#allocation9], 512
    $region45: #{bert_lstm_forward.8} parent=1 // pred_fallthru
      _
    // Predicated region
    $region46: #{bert_lstm_forward.8} parent=1 // pred_check
      _
    $region47: #{bert_lstm_forward.8} parent=1 // pred_check_branch
      %106 = sbr.rel (0) target = $region49
    $region48: #{bert_lstm_forward.8} parent=1 // pred_region
      %107 = dma.done [#allocation9], 16
    $region49: #{bert_lstm_forward.8} parent=1 // pred_fallthru
      _
    // Predicated region
    $region50: #{bert_lstm_forward.8} parent=1 // pred_check
      _
    $region51: #{bert_lstm_forward.8} parent=1 // pred_check_branch
      %109 = sbr.rel (0) target = $region53
    $region52: #{bert_lstm_forward.8} parent=1 // pred_region
      %110 = dma.done [#allocation12], 16
    $region53: #{bert_lstm_forward.8} parent=1 // pred_fallthru
      _
    // Predicated region
    $region54: #{bert_lstm_forward.8} parent=1 // pred_check
      _
    $region55: #{bert_lstm_forward.8} parent=1 // pred_check_branch
      %112 = sbr.rel (0) target = $region57
    $region56: #{bert_lstm_forward.8} parent=1 // pred_region
      %113 = dma.done [#allocation12], 16
    $region57: #{bert_lstm_forward.8} parent=1 // pred_fallthru
      _
    %v115 = vld [vmem:[#allocation2] sm:$0xf]
    %v116 = vld [vmem:[#allocation2 + $0x4] sm:$0xf]
    %v117 = vld [vmem:[#allocation2 + $0x8] sm:$0xf]
    %v118 = vld [vmem:[#allocation2 + $0xc] sm:$0xf]
    %v119 = vld [vmem:[#allocation5] sm:$0xf]
    %v120 = vld [vmem:[#allocation5 + $0x4] sm:$0xf]
    %v121 = vld [vmem:[#allocation5 + $0x8] sm:$0xf]
    %v122 = vld [vmem:[#allocation5 + $0xc] sm:$0xf]
    %v123 = vld [vmem:[#allocation7] sm:$0x1]
    %v125 = vlaneseq
    %v126 = vshrl.u32 %v125, 7
    %v127 = vsub.s32 0, %v126
    %v128 = vrot.slane %v123, %v127
    %v134 = vunpack.c.l.b16 %v115
    %v135 = vunpack.c.l.b16 %v116
    %v136 = vunpack.c.l.b16 %v117
    %v137 = vunpack.c.l.b16 %v118
    %v138 = vpack.c.b16 %v135, %v134
    %v139 = vpack.c.b16 %v137, %v136
    %v144 = vunpack.c.l.b16 %v119
    %v145 = vunpack.c.l.b16 %v120
    %v146 = vunpack.c.l.b16 %v121
    %v147 = vunpack.c.l.b16 %v122
    %v148 = vpack.c.b16 %v145, %v144
    %v149 = vpack.c.b16 %v147, %v146
    %vm152 = vcmask 261120
    %v154 = vsel %vm152, %v138, 0
    %v157 = vsel %vm152, %v139, 0
    %159 = vmatprep.subr.bf16.mxu0 0
    %160 = vmatpush1.bf16.msra.mxu0 %v148
    %161 = vmatprep.subr.bf16.mxu0 0
    %162 = vmatpush1.bf16.msra.mxu0 %v149
    %163 = vmatprep.subr.bf16.mxu0 0
    %164 = vmatpush1.bf16.msra.mxu0 0
    %165 = vmatprep.subr.bf16.mxu0 0
    %166 = vmatpush1.bf16.msra.mxu0 0
    %167 = vmatprep.subr.bf16.mxu0 0
    %168 = vmatpush1.bf16.msra.mxu0 0
    %169 = vmatprep.subr.bf16.mxu0 0
    %170 = vmatpush1.bf16.msra.mxu0 0
    %171 = vmatprep.subr.bf16.mxu0 0
    %172 = vmatpush1.bf16.msra.mxu0 0
    %173 = vmatprep.subr.bf16.mxu0 0
    %174 = vmatpush1.bf16.msra.mxu0 0
    %175 = vmatprep.subr.bf16.mxu0 0
    %176 = vmatpush1.bf16.msra.mxu0 0
    %177 = vmatprep.subr.bf16.mxu0 0
    %178 = vmatpush1.bf16.msra.mxu0 0
    %179 = vmatprep.subr.bf16.mxu0 0
    %180 = vmatpush1.bf16.msra.mxu0 0
    %181 = vmatprep.subr.bf16.mxu0 0
    %182 = vmatpush1.bf16.msra.mxu0 0
    %183 = vmatprep.subr.bf16.mxu0 0
    %184 = vmatpush1.bf16.msra.mxu0 0
    %185 = vmatprep.subr.bf16.mxu0 0
    %186 = vmatpush1.bf16.msra.mxu0 0
    %187 = vmatprep.subr.bf16.mxu0 0
    %188 = vmatpush1.bf16.msra.mxu0 0
    %189 = vmatprep.subr.bf16.mxu0 0
    %190 = vmatpush1.bf16.msra.mxu0 0
    %191 = vmatprep.mubr.bf16.mxu0 0
    %192 = vmatmul.mubr.bf16.gmra.mrb[0].mxu0 %v154
    %v193 = vpop.f32.mrb[0].mxu0
    %v194 = vadd.f32 %v128, %v193
    %v195 = vpop.f32.mrb[0].mxu0
    %v196 = vpop.f32.mrb[0].mxu0
    %v197 = vadd.f32 %v128, %v196
    %v198 = vpop.f32.mrb[0].mxu0
    %199 = vmatprep.mubr.bf16.mxu0 0
    %200 = vmatmul.mubr.bf16.gmra.mrb[0].mxu0 %v157
    %v201 = vpop.f32.mrb[0].mxu0
    %v202 = vadd.f32 %v128, %v201
    %v203 = vpop.f32.mrb[0].mxu0
    %v204 = vpop.f32.mrb[0].mxu0
    %v205 = vadd.f32 %v128, %v204
    %v206 = vpop.f32.mrb[0].mxu0
    %207 = vdwg.mxu0
    %v208 = vmul.f32 %v194, 0.5
    %v209 = vmul.f32 %v197, 0.5
    %v210 = vmul.f32 %v202, 0.5
    %v211 = vmul.f32 %v205, 0.5
    %v212 = vmul.f32 %v194, 0.044715
    %v213 = vmul.f32 %v197, 0.044715
    %v214 = vmul.f32 %v202, 0.044715
    %v215 = vmul.f32 %v205, 0.044715
    %v216 = vmul.f32 %v212, %v194
    %v217 = vmul.f32 %v213, %v197
    %v218 = vmul.f32 %v214, %v202
    %v219 = vmul.f32 %v215, %v205
    %v220 = vmul.f32 %v216, %v194
    %v221 = vmul.f32 %v217, %v197
    %v222 = vmul.f32 %v218, %v202
    %v223 = vmul.f32 %v219, %v205
    %v224 = vadd.f32 %v194, %v220
    %v225 = vadd.f32 %v197, %v221
    %v226 = vadd.f32 %v202, %v222
    %v227 = vadd.f32 %v205, %v223
    %v228 = vmul.f32 %v224, 0.7978846
    %v229 = vmul.f32 %v225, 0.7978846
    %v230 = vmul.f32 %v226, 0.7978846
    %v231 = vmul.f32 %v227, 0.7978846
    %v232 = vtanh.pop %v228
    %v233 = vtanh.pop %v229
    %v234 = vtanh.pop %v230
    %v235 = vtanh.pop %v231
    %v236 = vadd.f32 %v232, 1.0
    %v237 = vadd.f32 %v233, 1.0
    %v238 = vadd.f32 %v234, 1.0
    %v239 = vadd.f32 %v235, 1.0
    %v240 = vmul.f32 %v208, %v236
    %v241 = vmul.f32 %v209, %v237
    %v242 = vmul.f32 %v210, %v238
    %v243 = vmul.f32 %v211, %v239
    %v244 = vpack.c.bf16 %v241, %v240
    %v245 = vpack.c.bf16 %v243, %v242
    %v246 = vld [vmem:[#allocation8] sm:$0xf]
    %v247 = vld [vmem:[#allocation8 + $0x4] sm:$0xf]
    %v248 = vld [vmem:[#allocation8 + $0x8] sm:$0xf]
    %v249 = vld [vmem:[#allocation8 + $0xc] sm:$0xf]
    %v250 = vld [vmem:[#allocation8 + $0x10] sm:$0xf]
    %v251 = vld [vmem:[#allocation8 + $0x14] sm:$0xf]
    %v252 = vld [vmem:[#allocation8 + $0x18] sm:$0xf]
    %v253 = vld [vmem:[#allocation8 + $0x1c] sm:$0xf]
    %v254 = vld [vmem:[#allocation10] sm:$0x1]
    %v256 = vlaneseq
    %v257 = vshrl.u32 %v256, 7
    %v258 = vsub.s32 0, %v257
    %v259 = vrot.slane %v254, %v258
    %v269 = vunpack.c.l.b16 %v246
    %v270 = vunpack.c.l.b16 %v247
    %v271 = vunpack.c.l.b16 %v248
    %v272 = vunpack.c.l.b16 %v249
    %v273 = vunpack.c.l.b16 %v250
    %v274 = vunpack.c.l.b16 %v251
    %v275 = vunpack.c.l.b16 %v252
    %v276 = vunpack.c.l.b16 %v253
    %v277 = vpack.c.b16 %v270, %v269
    %v278 = vpack.c.b16 %v272, %v271
    %v279 = vpack.c.b16 %v274, %v273
    %v280 = vpack.c.b16 %v276, %v275
    %vm285 = vcmask 523264
    %v287 = vsel %vm285, %v244, 0
    %v290 = vsel %vm285, %v245, 0
    %292 = vmatprep.subr.bf16.mxu0 0
    %293 = vmatpush1.bf16.msra.mxu0 %v277
    %294 = vmatprep.subr.bf16.mxu0 0
    %295 = vmatpush1.bf16.msra.mxu0 %v278
    %296 = vmatprep.subr.bf16.mxu0 0
    %297 = vmatpush1.bf16.msra.mxu0 %v279
    %298 = vmatprep.subr.bf16.mxu0 0
    %299 = vmatpush1.bf16.msra.mxu0 %v280
    %300 = vmatprep.subr.bf16.mxu0 0
    %301 = vmatpush1.bf16.msra.mxu0 0
    %302 = vmatprep.subr.bf16.mxu0 0
    %303 = vmatpush1.bf16.msra.mxu0 0
    %304 = vmatprep.subr.bf16.mxu0 0
    %305 = vmatpush1.bf16.msra.mxu0 0
    %306 = vmatprep.subr.bf16.mxu0 0
    %307 = vmatpush1.bf16.msra.mxu0 0
    %308 = vmatprep.subr.bf16.mxu0 0
    %309 = vmatpush1.bf16.msra.mxu0 0
    %310 = vmatprep.subr.bf16.mxu0 0
    %311 = vmatpush1.bf16.msra.mxu0 0
    %312 = vmatprep.subr.bf16.mxu0 0
    %313 = vmatpush1.bf16.msra.mxu0 0
    %314 = vmatprep.subr.bf16.mxu0 0
    %315 = vmatpush1.bf16.msra.mxu0 0
    %316 = vmatprep.subr.bf16.mxu0 0
    %317 = vmatpush1.bf16.msra.mxu0 0
    %318 = vmatprep.subr.bf16.mxu0 0
    %319 = vmatpush1.bf16.msra.mxu0 0
    %320 = vmatprep.subr.bf16.mxu0 0
    %321 = vmatpush1.bf16.msra.mxu0 0
    %322 = vmatprep.subr.bf16.mxu0 0
    %323 = vmatpush1.bf16.msra.mxu0 0
    %324 = vmatprep.mubr.bf16.mxu0 0
    %325 = vmatmul.mubr.bf16.gmra.mrb[0].mxu0 %v287
    %v326 = vpop.f32.mrb[0].mxu0
    %v327 = vadd.f32 %v259, %v326
    %v328 = vpop.f32.mrb[0].mxu0
    %v329 = vpop.f32.mrb[0].mxu0
    %v330 = vadd.f32 %v259, %v329
    %v331 = vpop.f32.mrb[0].mxu0
    %332 = vmatprep.mubr.bf16.mxu0 0
    %333 = vmatmul.mubr.bf16.gmra.mrb[0].mxu0 %v290
    %v334 = vpop.f32.mrb[0].mxu0
    %v335 = vadd.f32 %v259, %v334
    %v336 = vpop.f32.mrb[0].mxu0
    %v337 = vpop.f32.mrb[0].mxu0
    %v338 = vadd.f32 %v259, %v337
    %v339 = vpop.f32.mrb[0].mxu0
    %340 = vdwg.mxu0
    %v341 = vunpack.c.l.bf16 %v115
    %v342 = vunpack.c.l.bf16 %v116
    %v343 = vunpack.c.l.bf16 %v117
    %v344 = vunpack.c.l.bf16 %v118
    %v345 = vadd.f32 %v327, %v341
    %v346 = vadd.f32 %v330, %v342
    %v347 = vadd.f32 %v335, %v343
    %v348 = vadd.f32 %v338, %v344
    %v349 = vsel %vm152, %v345, 0.0
    %350 = vadd.xlane.f32.xlu0 %v349
    %v351 = vpop.xlane.xlu0 %350
    %v352 = vsel %vm152, %v346, 0.0
    %353 = vadd.xlane.f32.xlu0 %v352
    %v354 = vpop.xlane.xlu0 %353
    %v355 = vsel %vm152, %v347, 0.0
    %356 = vadd.xlane.f32.xlu0 %v355
    %v357 = vpop.xlane.xlu0 %356
    %v358 = vsel %vm152, %v348, 0.0
    %359 = vadd.xlane.f32.xlu0 %v358
    %v360 = vpop.xlane.xlu0 %359
    %v361 = vrcp.pop 32.0
    %v362 = vmul.f32 %v351, %v361
    %v363 = vmul.f32 %v354, %v361
    %v364 = vmul.f32 %v357, %v361
    %v365 = vmul.f32 %v360, %v361
    %v366 = vsub.f32 %v345, %v362
    %v367 = vsub.f32 %v346, %v363
    %v368 = vsub.f32 %v347, %v364
    %v369 = vsub.f32 %v348, %v365
    %v370 = vmul.f32 %v366, %v366
    %v371 = vmul.f32 %v367, %v367
    %v372 = vmul.f32 %v368, %v368
    %v373 = vmul.f32 %v369, %v369
    %v374 = vsel %vm152, %v370, 0.0
    %375 = vadd.xlane.f32.xlu0 %v374
    %v376 = vpop.xlane.xlu0 %375
    %v377 = vsel %vm152, %v371, 0.0
    %378 = vadd.xlane.f32.xlu0 %v377
    %v379 = vpop.xlane.xlu0 %378
    %v380 = vsel %vm152, %v372, 0.0
    %381 = vadd.xlane.f32.xlu0 %v380
    %v382 = vpop.xlane.xlu0 %381
    %v383 = vsel %vm152, %v373, 0.0
    %384 = vadd.xlane.f32.xlu0 %v383
    %v385 = vpop.xlane.xlu0 %384
    %v386 = vmul.f32 %v376, %v361
    %v387 = vmul.f32 %v379, %v361
    %v388 = vmul.f32 %v382, %v361
    %v389 = vmul.f32 %v385, %v361
    %v390 = vadd.f32 %v386, 1e-12
    %v391 = vadd.f32 %v387, 1e-12
    %v392 = vadd.f32 %v388, 1e-12
    %v393 = vadd.f32 %v389, 1e-12
    %v394 = vrsqrt.pop %v390
    %v395 = vrsqrt.pop %v391
    %v396 = vrsqrt.pop %v392
    %v397 = vrsqrt.pop %v393
    %v398 = vmul.f32 %v366, %v394
    %v399 = vmul.f32 %v367, %v395
    %v400 = vmul.f32 %v368, %v396
    %v401 = vmul.f32 %v369, %v397
    %v402 = vld [vmem:[#allocation11] sm:$0x1]
    %v404 = vlaneseq
    %v405 = vshrl.u32 %v404, 7
    %v406 = vsub.s32 0, %v405
    %v407 = vrot.slane %v402, %v406
    %v409 = vmul.f32 %v398, %v407
    %v410 = vmul.f32 %v399, %v407
    %v411 = vmul.f32 %v400, %v407
    %v412 = vmul.f32 %v401, %v407
    %v413 = vld [vmem:[#allocation13] sm:$0x1]
    %v415 = vlaneseq
    %v416 = vshrl.u32 %v415, 7
    %v417 = vsub.s32 0, %v416
    %v418 = vrot.slane %v413, %v417
    %v420 = vadd.f32 %v409, %v418
    %v421 = vadd.f32 %v410, %v418
    %v422 = vadd.f32 %v411, %v418
    %v423 = vadd.f32 %v412, %v418
    %v424 = vpack.c.bf16 %v421, %v420
    %v425 = vpack.c.bf16 %v423, %v422
    %v428 = vunpack.c.l.b16 %v424
    %v429 = vunpack.c.h.b16 %v424
    %v430 = vunpack.c.l.b16 %v425
    %v431 = vunpack.c.h.b16 %v425
    %v432 = vpack.c.b16 %v428, %v428
    %v433 = vpack.c.b16 %v429, %v429
    %v434 = vpack.c.b16 %v430, %v430
    %v435 = vpack.c.b16 %v431, %v431
    %vm440 = vcmask 257024
    %441 = vst.msk [vmem:[#allocation14] sm:$0xf] %vm440, %v432
    %442 = vst.msk [vmem:[#allocation14 + $0x4] sm:$0xf] %vm440, %v433
    %443 = vst.msk [vmem:[#allocation14 + $0x8] sm:$0xf] %vm440, %v434
    %444 = vst.msk [vmem:[#allocation14 + $0xc] sm:$0xf] %vm440, %v435
    // Predicated region
    $region58: #{bert_lstm_forward.8} parent=1 // pred_check
      _
    $region59: #{bert_lstm_forward.8} parent=1 // pred_check_branch
      %446 = sbr.rel (0) target = $region61
    $region60: #{bert_lstm_forward.8} parent=1 // pred_region
      %s448 = ssub.s32 256, 256
      %449 = vsyncadd [#allocation4], %s448
      %s450 = sshll.u32 [#allocation14], 4
      %s451 = int_to_ptr.vmem [resolvable:$true] %s450
      %456 = dma.vmem_to_hbm [thread:$0]  %s451, 256, %s7, [#allocation4], 64, 64, 4
    $region61: #{bert_lstm_forward.8} parent=1 // pred_fallthru
      _
    // Predicated region
    $region62: #{bert_lstm_forward.8} parent=1 // pred_check
      _
    $region63: #{bert_lstm_forward.8} parent=1 // pred_check_branch
      %458 = sbr.rel (0) target = $region65
    $region64: #{bert_lstm_forward.8} parent=1 // pred_region
      %459 = dma.done [#allocation4], 256
    $region65: #{bert_lstm_forward.8} parent=1 // pred_fallthru
      _
    %460 = vsyncpa [#allocation3], 1
    %461 = vsyncpa [#allocation6], 1
    %462 = vsyncpa [#allocation9], 1
    %463 = vsyncpa [#allocation12], 1
    %464 = vsyncpa [#allocation4], 1

// kernel: bert_lstm_forward.7
$region0: #{bert_lstm_forward.7}
  #allocation0 [shape = 'u32[]', space=smem, size = 0x4, offset = 0x4, fixed_abs, tag = 'smem constant byte address 0x4 - core index']
  #allocation1 [shape = 'u32[144,128]{1,0:T(1,128)}', space=vmem, size = 0x12000, scoped, tag = 'internal scratch']
  %s0 = inlined_call_operand.hbm [shape: bf16[4,8,32], index: 0, kind: input, shape index: {}]
  %s1 = inlined_call_operand.hbm [shape: f32[4,1,8], index: 1, kind: input, shape index: {}]
  %s2 = inlined_call_operand.hbm [shape: bf16[32,96], index: 2, kind: input, shape index: {}]
  %s3 = inlined_call_operand.hbm [shape: f32[1,96], index: 3, kind: input, shape index: {}]
  %s4 = inlined_call_operand.hbm [shape: bf16[32,32], index: 4, kind: input, shape index: {}]
  %s5 = inlined_call_operand.hbm [shape: f32[1,32], index: 5, kind: input, shape index: {}]
  %s6 = inlined_call_operand.hbm [shape: f32[1,32], index: 6, kind: input, shape index: {}]
  %s7 = inlined_call_operand.hbm [shape: f32[1,32], index: 7, kind: input, shape index: {}]
  %s8 = inlined_call_operand.hbm [shape: bf16[4,8,32], index: 8, kind: output, shape index: {}]
  %s9 = sld [smem:[#allocation0]]
  $region97: #{bert_lstm_forward.7} parent=0
    _
  %s11 = ssub.s32 1, %s9
  %s12 = scalar_select 0, %s11, %s9
  $region1: #{bert_lstm_forward.7} parent=0
    #allocation2 [shape = 'u8[4096]{0}', space=vmem, size = 0x1000, scoped, tag = 'input window, operand 0']
    #allocation3 [shape = 's32[2]{0}', space=sflag, size = 0x8, scoped, tag = 'scoped memory for bert_lstm_forward.7']
    #allocation4 [shape = 's32[2]{0}', space=sflag, size = 0x8, scoped, tag = 'scoped memory for bert_lstm_forward.7']
    #allocation5 [shape = 'u8[1024]{0}', space=vmem, size = 0x400, scoped, tag = 'input window, operand 1']
    #allocation6 [shape = 's32[2]{0}', space=sflag, size = 0x8, scoped, tag = 'scoped memory for bert_lstm_forward.7']
    #allocation7 [shape = 'u8[8192]{0}', space=vmem, size = 0x2000, scoped, tag = 'input window, operand 2, single buffered']
    #allocation8 [shape = 'u8[512]{0}', space=vmem, size = 0x400, scoped, tag = 'input window, operand 3, single buffered']
    #allocation9 [shape = 's32[1]{0}', space=sflag, size = 0x4, scoped, tag = 'scoped memory for bert_lstm_forward.7']
    #allocation10 [shape = 'u8[8192]{0}', space=vmem, size = 0x2000, scoped, tag = 'input window, operand 4, single buffered']
    #allocation11 [shape = 'u8[512]{0}', space=vmem, size = 0x400, scoped, tag = 'input window, operand 5, single buffered']
    #allocation12 [shape = 's32[1]{0}', space=sflag, size = 0x4, scoped, tag = 'scoped memory for bert_lstm_forward.7']
    #allocation13 [shape = 'u8[512]{0}', space=vmem, size = 0x400, scoped, tag = 'input window, operand 6, single buffered']
    #allocation14 [shape = 'u8[512]{0}', space=vmem, size = 0x400, scoped, tag = 'input window, operand 7, single buffered']
    #allocation15 [shape = 's32[1]{0}', space=sflag, size = 0x4, scoped, tag = 'scoped memory for bert_lstm_forward.7']
    #allocation16 [shape = 'u8[4096]{0}', space=vmem, size = 0x1000, scoped, tag = 'output window, operand 0']
    %13 = vsyncpa [#allocation3], 0
    %s14 = scalar_lea.sflag [#allocation3], 1
    %15 = vsyncpa %s14, 0
    %16 = vsyncpa [#allocation6], 0
    %s17 = scalar_lea.sflag [#allocation6], 1
    %18 = vsyncpa %s17, 0
    %19 = vsyncpa [#allocation9], 0
    %20 = vsyncpa [#allocation12], 0
    %21 = vsyncpa [#allocation15], 0
    %22 = vsyncpa [#allocation4], 0
    %s23 = scalar_lea.sflag [#allocation4], 1
    %24 = vsyncpa %s23, 0
    loop: start=0, step=1, limit=6
    $region2: #{bert_lstm_forward.7} parent=1 // loop_pre_header
      _
    $region3: #{bert_lstm_forward.7} parent=1 // loop_header
      %s26 = sphi 0, %s30
      %p27 = scmp.ge.s32.totalorder %s26, 6
      %s33 = sphi 0, %s45
      %s34 = sphi 0, %s41
      %s35 = sphi 0, %s33
      %s36 = sphi 0, %s34
      %s37 = sphi 0, %s35
      %s38 = sphi 0, %s36
      %s48 = sphi 0, %s50
      %s51 = sphi 0, %s48
      %s52 = sphi 0, %s51
      %s68 = sphi 0, %s52
      %s74 = sphi 0, %s76
      %s77 = sphi 0, %s74
      %s78 = sphi 0, %s77
      %s94 = sphi 0, %s78
      %s98 = sphi 0, %s98
      %s100 = sphi 0, %s98
      %s101 = sphi 0, %s100
      %s115 = sphi 0, %s101
      %s119 = sphi 0, %s119
      %s121 = sphi 0, %s119
      %s122 = sphi 0, %s121
      %s136 = sphi 0, %s122
      %s140 = sphi 0, %s140
      %s142 = sphi 0, %s140
      %s143 = sphi 0, %s142
      %s157 = sphi 0, %s143
      %s161 = sphi 0, %s161
      %s163 = sphi 0, %s161
      %s164 = sphi 0, %s163
      %s178 = sphi 0, %s164
      %s182 = sphi 0, %s182
      %s184 = sphi 0, %s182
      %s185 = sphi 0, %s184
      %s199 = sphi 0, %s185
      %s203 = sphi 0, %s203
      %s205 = sphi 0, %s203
      %s206 = sphi 0, %s205
      %s220 = sphi 0, %s206
      %s228 = sphi 0, %s230
      %s231 = sphi 0, %s228
      %s232 = sphi 0, %s231
      %s248 = sphi 0, %s232
    $region4: #{bert_lstm_forward.7} parent=1 // loop_header_branch
      %29 = sbr.rel (%p27) target = $region8
    $region5: #{bert_lstm_forward.7} parent=1 // loop_body
      %s31 = ssub.s32 %s26, 1
      %s32 = ssub.s32 %s26, 2
      %s39 = sadd.s32 1, %s34
      %p40 = scmp.ge.s32.totalorder %s39, 1
      %s41 = scalar_select %p40, 0, %s39
      %s42 = sadd.s32 1, %s33
      %s43 = scalar_select %p40, %s42, %s33
      %p44 = scmp.ge.s32.totalorder %s43, 4
      %s45 = scalar_select %p44, 0, %s43
      %s46 = ssub.s32 %s33, %s45
      %p47 = scmp.eq.s32.totalorder %s46, 0
      %s49 = sadd.s32 %s48, 1
      %s50 = scalar_select %p47, %s48, %s49
      %p53 = pneg %p47
      %p54 = scmp.eq.s32.totalorder %s26, 3
      %p55 = por %p53, %p54
      %p56 = scmp.ne.s32.totalorder %s48, %s51
      %p57 = scmp.eq.s32.totalorder %s26, 0
      %p58 = por %p56, %p57
      %p59 = scmp.ne.s32.totalorder %s48, %s51
      %p60 = scmp.eq.s32.totalorder %s31, 3
      %p61 = por %p59, %p60
      %p62 = scmp.ne.s32.totalorder %s51, %s52
      %p63 = scmp.eq.s32.totalorder %s31, 0
      %p64 = por %p62, %p63
      %p65 = scmp.ne.s32.totalorder %s51, %s52
      %p66 = scmp.eq.s32.totalorder %s32, 3
      %p67 = por %p65, %p66
      %p69 = scmp.ne.s32.totalorder %s52, %s68
      %p70 = scmp.eq.s32.totalorder %s32, 0
      %p71 = por %p69, %p70
      %s72 = ssub.s32 %s33, %s45
      %p73 = scmp.eq.s32.totalorder %s72, 0
      %s75 = sadd.s32 %s74, 1
      %s76 = scalar_select %p73, %s74, %s75
      %p79 = pneg %p73
      %p80 = scmp.eq.s32.totalorder %s26, 3
      %p81 = por %p79, %p80
      %p82 = scmp.ne.s32.totalorder %s74, %s77
      %p83 = scmp.eq.s32.totalorder %s26, 0
      %p84 = por %p82, %p83
      %p85 = scmp.ne.s32.totalorder %s74, %s77
      %p86 = scmp.eq.s32.totalorder %s31, 3
      %p87 = por %p85, %p86
      %p88 = scmp.ne.s32.totalorder %s77, %s78
      %p89 = scmp.eq.s32.totalorder %s31, 0
      %p90 = por %p88, %p89
      %p91 = scmp.ne.s32.totalorder %s77, %s78
      %p92 = scmp.eq.s32.totalorder %s32, 3
      %p93 = por %p91, %p92
      %p95 = scmp.ne.s32.totalorder %s78, %s94
      %p96 = scmp.eq.s32.totalorder %s32, 0
      %p97 = por %p95, %p96
      %s99 = sadd.s32 %s98, 1
      %p102 = scmp.eq.s32.totalorder %s26, 3
      %p103 = scmp.ne.s32.totalorder %s98, %s100
      %p104 = scmp.eq.s32.totalorder %s26, 0
      %p105 = por %p103, %p104
      %p106 = scmp.ne.s32.totalorder %s98, %s100
      %p107 = scmp.eq.s32.totalorder %s31, 3
      %p108 = por %p106, %p107
      %p109 = scmp.ne.s32.totalorder %s100, %s101
      %p110 = scmp.eq.s32.totalorder %s31, 0
      %p111 = por %p109, %p110
      %p112 = scmp.ne.s32.totalorder %s100, %s101
      %p113 = scmp.eq.s32.totalorder %s32, 3
      %p114 = por %p112, %p113
      %p116 = scmp.ne.s32.totalorder %s101, %s115
      %p117 = scmp.eq.s32.totalorder %s32, 0
      %p118 = por %p116, %p117
      %s120 = sadd.s32 %s119, 1
      %p123 = scmp.eq.s32.totalorder %s26, 3
      %p124 = scmp.ne.s32.totalorder %s119, %s121
      %p125 = scmp.eq.s32.totalorder %s26, 0
      %p126 = por %p124, %p125
      %p127 = scmp.ne.s32.totalorder %s119, %s121
      %p128 = scmp.eq.s32.totalorder %s31, 3
      %p129 = por %p127, %p128
      %p130 = scmp.ne.s32.totalorder %s121, %s122
      %p131 = scmp.eq.s32.totalorder %s31, 0
      %p132 = por %p130, %p131
      %p133 = scmp.ne.s32.totalorder %s121, %s122
      %p134 = scmp.eq.s32.totalorder %s32, 3
      %p135 = por %p133, %p134
      %p137 = scmp.ne.s32.totalorder %s122, %s136
      %p138 = scmp.eq.s32.totalorder %s32, 0
      %p139 = por %p137, %p138
      %s141 = sadd.s32 %s140, 1
      %p144 = scmp.eq.s32.totalorder %s26, 3
      %p145 = scmp.ne.s32.totalorder %s140, %s142
      %p146 = scmp.eq.s32.totalorder %s26, 0
      %p147 = por %p145, %p146
      %p148 = scmp.ne.s32.totalorder %s140, %s142
      %p149 = scmp.eq.s32.totalorder %s31, 3
      %p150 = por %p148, %p149
      %p151 = scmp.ne.s32.totalorder %s142, %s143
      %p152 = scmp.eq.s32.totalorder %s31, 0
      %p153 = por %p151, %p152
      %p154 = scmp.ne.s32.totalorder %s142, %s143
      %p155 = scmp.eq.s32.totalorder %s32, 3
      %p156 = por %p154, %p155
      %p158 = scmp.ne.s32.totalorder %s143, %s157
      %p159 = scmp.eq.s32.totalorder %s32, 0
      %p160 = por %p158, %p159
      %s162 = sadd.s32 %s161, 1
      %p165 = scmp.eq.s32.totalorder %s26, 3
      %p166 = scmp.ne.s32.totalorder %s161, %s163
      %p167 = scmp.eq.s32.totalorder %s26, 0
      %p168 = por %p166, %p167
      %p169 = scmp.ne.s32.totalorder %s161, %s163
      %p170 = scmp.eq.s32.totalorder %s31, 3
      %p171 = por %p169, %p170
      %p172 = scmp.ne.s32.totalorder %s163, %s164
      %p173 = scmp.eq.s32.totalorder %s31, 0
      %p174 = por %p172, %p173
      %p175 = scmp.ne.s32.totalorder %s163, %s164
      %p176 = scmp.eq.s32.totalorder %s32, 3
      %p177 = por %p175, %p176
      %p179 = scmp.ne.s32.totalorder %s164, %s178
      %p180 = scmp.eq.s32.totalorder %s32, 0
      %p181 = por %p179, %p180
      %s183 = sadd.s32 %s182, 1
      %p186 = scmp.eq.s32.totalorder %s26, 3
      %p187 = scmp.ne.s32.totalorder %s182, %s184
      %p188 = scmp.eq.s32.totalorder %s26, 0
      %p189 = por %p187, %p188
      %p190 = scmp.ne.s32.totalorder %s182, %s184
      %p191 = scmp.eq.s32.totalorder %s31, 3
      %p192 = por %p190, %p191
      %p193 = scmp.ne.s32.totalorder %s184, %s185
      %p194 = scmp.eq.s32.totalorder %s31, 0
      %p195 = por %p193, %p194
      %p196 = scmp.ne.s32.totalorder %s184, %s185
      %p197 = scmp.eq.s32.totalorder %s32, 3
      %p198 = por %p196, %p197
      %p200 = scmp.ne.s32.totalorder %s185, %s199
      %p201 = scmp.eq.s32.totalorder %s32, 0
      %p202 = por %p200, %p201
      %s204 = sadd.s32 %s203, 1
      %p207 = scmp.eq.s32.totalorder %s26, 3
      %p208 = scmp.ne.s32.totalorder %s203, %s205
      %p209 = scmp.eq.s32.totalorder %s26, 0
      %p210 = por %p208, %p209
      %p211 = scmp.ne.s32.totalorder %s203, %s205
      %p212 = scmp.eq.s32.totalorder %s31, 3
      %p213 = por %p211, %p212
      %p214 = scmp.ne.s32.totalorder %s205, %s206
      %p215 = scmp.eq.s32.totalorder %s31, 0
      %p216 = por %p214, %p215
      %p217 = scmp.ne.s32.totalorder %s205, %s206
      %p218 = scmp.eq.s32.totalorder %s32, 3
      %p219 = por %p217, %p218
      %p221 = scmp.ne.s32.totalorder %s206, %s220
      %p222 = scmp.eq.s32.totalorder %s32, 0
      %p223 = por %p221, %p222
      %s224 = ssub.s32 %s33, %s45
      %s225 = ssub.s32 %s34, %s41
      %s226 = sor.u32 %s224, %s225
      %p227 = scmp.eq.s32.totalorder %s226, 0
      %s229 = sadd.s32 %s228, 1
      %s230 = scalar_select %p227, %s228, %s229
      %p233 = pneg %p227
      %p234 = scmp.eq.s32.totalorder %s26, 3
      %p235 = por %p233, %p234
      %p236 = scmp.ne.s32.totalorder %s228, %s231
      %p237 = scmp.eq.s32.totalorder %s26, 0
      %p238 = por %p236, %p237
      %p239 = scmp.ne.s32.totalorder %s228, %s231
      %p240 = scmp.eq.s32.totalorder %s31, 3
      %p241 = por %p239, %p240
      %p242 = scmp.ne.s32.totalorder %s231, %s232
      %p243 = scmp.eq.s32.totalorder %s31, 0
      %p244 = por %p242, %p243
      %p245 = scmp.ne.s32.totalorder %s231, %s232
      %p246 = scmp.eq.s32.totalorder %s32, 3
      %p247 = por %p245, %p246
      %p249 = scmp.ne.s32.totalorder %s232, %s248
      %p250 = scmp.eq.s32.totalorder %s32, 0
      %p251 = por %p249, %p250
      %p252 = scmp.le.s32.totalorder 1, %s26
      %p253 = scmp.lt.s32.totalorder %s26, 5
      %p254 = pnand %p252, %p253
      %p255 = pneg %p254
      // Predicated region
      $region9: #{bert_lstm_forward.7} parent=5 // pred_check
        _
      $region10: #{bert_lstm_forward.7} parent=5 // pred_check_branch
        %257 = sbr.rel (%p254) target = $region12
      $region11: #{bert_lstm_forward.7} parent=5 // pred_region
        %s258 = ssub.s32 %s26, 1
        // Predicated region
        $region13: #{bert_lstm_forward.7} parent=11 // pred_check
          %p259 = pneg %p111
        $region14: #{bert_lstm_forward.7} parent=11 // pred_check_branch
          %261 = sbr.rel (%p259) target = $region16
        $region15: #{bert_lstm_forward.7} parent=11 // pred_region
          %s263 = ssub.s32 256, 256
          %264 = vsyncadd [#allocation6], %s263
          %s265 = sshll.u32 [#allocation7], 4
          %s266 = int_to_ptr.vmem [resolvable:$true] %s265
          %271 = dma.hbm_to_vmem [thread:$0]  %s2, 256, %s266, [#allocation6], 64, 64, 4
        $region16: #{bert_lstm_forward.7} parent=11 // pred_fallthru
          _
        // Predicated region
        $region17: #{bert_lstm_forward.7} parent=11 // pred_check
          %p272 = pneg %p132
        $region18: #{bert_lstm_forward.7} parent=11 // pred_check_branch
          %274 = sbr.rel (%p272) target = $region20
        $region19: #{bert_lstm_forward.7} parent=11 // pred_region
          %s276 = ssub.s32 16, 16
          %277 = vsyncadd [#allocation9], %s276
          %s279 = sshll.u32 [#allocation8], 4
          %s280 = int_to_ptr.vmem [resolvable:$true] %s279
          %282 = dma.hbm_to_vmem [thread:$0]  %s3, 16, %s280, [#allocation9]
        $region20: #{bert_lstm_forward.7} parent=11 // pred_fallthru
          _
        // Predicated region
        $region21: #{bert_lstm_forward.7} parent=11 // pred_check
          %p283 = pneg %p153
        $region22: #{bert_lstm_forward.7} parent=11 // pred_check_branch
          %285 = sbr.rel (%p283) target = $region24
        $region23: #{bert_lstm_forward.7} parent=11 // pred_region
          %s287 = ssub.s32 256, 256
          %288 = vsyncadd [#allocation9], %s287
          %s289 = sshll.u32 [#allocation10], 4
          %s290 = int_to_ptr.vmem [resolvable:$true] %s289
          %295 = dma.hbm_to_vmem [thread:$0]  %s4, 256, %s290, [#allocation9], 64, 64, 4
        $region24: #{bert_lstm_forward.7} parent=11 // pred_fallthru
          _
        // Predicated region
        $region25: #{bert_lstm_forward.7} parent=11 // pred_check
          %p296 = pneg %p174
        $region26: #{bert_lstm_forward.7} parent=11 // pred_check_branch
          %298 = sbr.rel (%p296) target = $region28
        $region27: #{bert_lstm_forward.7} parent=11 // pred_region
          %s300 = ssub.s32 16, 16
          %301 = vsyncadd [#allocation12], %s300
          %s303 = sshll.u32 [#allocation11], 4
          %s304 = int_to_ptr.vmem [resolvable:$true] %s303
          %306 = dma.hbm_to_vmem [thread:$0]  %s5, 16, %s304, [#allocation12]
        $region28: #{bert_lstm_forward.7} parent=11 // pred_fallthru
          _
        // Predicated region
        $region29: #{bert_lstm_forward.7} parent=11 // pred_check
          %p307 = pneg %p195
        $region30: #{bert_lstm_forward.7} parent=11 // pred_check_branch
          %309 = sbr.rel (%p307) target = $region32
        $region31: #{bert_lstm_forward.7} parent=11 // pred_region
          %s311 = ssub.s32 16, 16
          %312 = vsyncadd [#allocation12], %s311
          %s314 = sshll.u32 [#allocation13], 4
          %s315 = int_to_ptr.vmem [resolvable:$true] %s314
          %317 = dma.hbm_to_vmem [thread:$0]  %s6, 16, %s315, [#allocation12]
        $region32: #{bert_lstm_forward.7} parent=11 // pred_fallthru
          _
        // Predicated region
        $region33: #{bert_lstm_forward.7} parent=11 // pred_check
          %p318 = pneg %p216
        $region34: #{bert_lstm_forward.7} parent=11 // pred_check_branch
          %320 = sbr.rel (%p318) target = $region36
        $region35: #{bert_lstm_forward.7} parent=11 // pred_region
          %s322 = ssub.s32 16, 16
          %323 = vsyncadd [#allocation15], %s322
          %s325 = sshll.u32 [#allocation14], 4
          %s326 = int_to_ptr.vmem [resolvable:$true] %s325
          %328 = dma.hbm_to_vmem [thread:$0]  %s7, 16, %s326, [#allocation15]
        $region36: #{bert_lstm_forward.7} parent=11 // pred_fallthru
          _
      $region12: #{bert_lstm_forward.7} parent=5 // pred_fallthru
        _
      %p329 = scmp.lt.s32.totalorder %s26, 4
      // Predicated region
      $region37: #{bert_lstm_forward.7} parent=5 // pred_check
        %p330 = pneg %p329
      $region38: #{bert_lstm_forward.7} parent=5 // pred_check_branch
        %332 = sbr.rel (%p330) target = $region40
      $region39: #{bert_lstm_forward.7} parent=5 // pred_region
        // Predicated region
        $region41: #{bert_lstm_forward.7} parent=39 // pred_check
          %p333 = pneg %p58
        $region42: #{bert_lstm_forward.7} parent=39 // pred_check_branch
          %335 = sbr.rel (%p333) target = $region44
        $region43: #{bert_lstm_forward.7} parent=39 // pred_region
          %s336 = sand.u32 %s48, 1
          %s337 = scalar_lea.sflag [#allocation3], %s336
          %s338 = sand.u32 %s48, 1
          %s339 = smul.addr %s338, 4
          %s340 = scalar_lea.vmem [#allocation2], %s339
          %s342 = ssub.s32 64, 64
          %343 = vsyncadd %s337, %s342
          %s344 = smul.addr %s33, 64
          %s345 = scalar_lea.hbm %s0, %s344
          %s347 = sshll.u32 %s340, 4
          %s348 = int_to_ptr.vmem [resolvable:$true] %s347
          %350 = dma.hbm_to_vmem [thread:$0]  %s345, 64, %s348, %s337
        $region44: #{bert_lstm_forward.7} parent=39 // pred_fallthru
          _
        // Predicated region
        $region45: #{bert_lstm_forward.7} parent=39 // pred_check
          %p351 = pneg %p84
        $region46: #{bert_lstm_forward.7} parent=39 // pred_check_branch
          %353 = sbr.rel (%p351) target = $region48
        $region47: #{bert_lstm_forward.7} parent=39 // pred_region
          %s354 = sand.u32 %s26, 1
          %s355 = scalar_lea.sflag [#allocation6], %s354
          %s356 = sand.u32 %s74, 1
          %s357 = scalar_lea.vmem [#allocation5], %s356
          %s359 = ssub.s32 16, 16
          %360 = vsyncadd %s355, %s359
          %s361 = smul.addr %s33, 16
          %s362 = scalar_lea.hbm %s1, %s361
          %s364 = sshll.u32 %s357, 4
          %s365 = int_to_ptr.vmem [resolvable:$true] %s364
          %367 = dma.hbm_to_vmem [thread:$0]  %s362, 16, %s365, %s355
        $region48: #{bert_lstm_forward.7} parent=39 // pred_fallthru
          _
      $region40: #{bert_lstm_forward.7} parent=5 // pred_fallthru
        _
      %p368 = scmp.le.s32.totalorder 1, %s26
      %p369 = scmp.lt.s32.totalorder %s26, 5
      %p370 = pnand %p368, %p369
      %p371 = pneg %p370
      // Predicated region
      $region49: #{bert_lstm_forward.7} parent=5 // pred_check
        _
      $region50: #{bert_lstm_forward.7} parent=5 // pred_check_branch
        %373 = sbr.rel (%p370) target = $region52
      $region51: #{bert_lstm_forward.7} parent=5 // pred_region
        %s374 = ssub.s32 %s26, 1
        %s375 = sand.u32 %s51, 1
        %s376 = scalar_lea.sflag [#allocation3], %s375
        %s377 = sand.u32 %s51, 1
        %s378 = smul.addr %s377, 4
        %s379 = scalar_lea.vmem [#allocation2], %s378
        // Predicated region
        $region53: #{bert_lstm_forward.7} parent=51 // pred_check
          %p380 = pneg %p64
        $region54: #{bert_lstm_forward.7} parent=51 // pred_check_branch
          %382 = sbr.rel (%p380) target = $region56
        $region55: #{bert_lstm_forward.7} parent=51 // pred_region
          %383 = dma.done %s376, 64
        $region56: #{bert_lstm_forward.7} parent=51 // pred_fallthru
          _
        %s384 = sand.u32 %s31, 1
        %s385 = scalar_lea.sflag [#allocation6], %s384
        %s386 = sand.u32 %s77, 1
        %s387 = scalar_lea.vmem [#allocation5], %s386
        // Predicated region
        $region57: #{bert_lstm_forward.7} parent=51 // pred_check
          %p388 = pneg %p90
        $region58: #{bert_lstm_forward.7} parent=51 // pred_check_branch
          %390 = sbr.rel (%p388) target = $region60
        $region59: #{bert_lstm_forward.7} parent=51 // pred_region
          %391 = dma.done %s385, 16
        $region60: #{bert_lstm_forward.7} parent=51 // pred_fallthru
          _
        // Predicated region
        $region61: #{bert_lstm_forward.7} parent=51 // pred_check
          %p392 = pneg %p111
        $region62: #{bert_lstm_forward.7} parent=51 // pred_check_branch
          %394 = sbr.rel (%p392) target = $region64
        $region63: #{bert_lstm_forward.7} parent=51 // pred_region
          %395 = dma.done [#allocation6], 256
        $region64: #{bert_lstm_forward.7} parent=51 // pred_fallthru
          _
        // Predicated region
        $region65: #{bert_lstm_forward.7} parent=51 // pred_check
          %p396 = pneg %p132
        $region66: #{bert_lstm_forward.7} parent=51 // pred_check_branch
          %398 = sbr.rel (%p396) target = $region68
        $region67: #{bert_lstm_forward.7} parent=51 // pred_region
          %399 = dma.done [#allocation9], 16
        $region68: #{bert_lstm_forward.7} parent=51 // pred_fallthru
          _
        // Predicated region
        $region69: #{bert_lstm_forward.7} parent=51 // pred_check
          %p400 = pneg %p153
        $region70: #{bert_lstm_forward.7} parent=51 // pred_check_branch
          %402 = sbr.rel (%p400) target = $region72
        $region71: #{bert_lstm_forward.7} parent=51 // pred_region
          %403 = dma.done [#allocation9], 256
        $region72: #{bert_lstm_forward.7} parent=51 // pred_fallthru
          _
        // Predicated region
        $region73: #{bert_lstm_forward.7} parent=51 // pred_check
          %p404 = pneg %p174
        $region74: #{bert_lstm_forward.7} parent=51 // pred_check_branch
          %406 = sbr.rel (%p404) target = $region76
        $region75: #{bert_lstm_forward.7} parent=51 // pred_region
          %407 = dma.done [#allocation12], 16
        $region76: #{bert_lstm_forward.7} parent=51 // pred_fallthru
          _
        // Predicated region
        $region77: #{bert_lstm_forward.7} parent=51 // pred_check
          %p408 = pneg %p195
        $region78: #{bert_lstm_forward.7} parent=51 // pred_check_branch
          %410 = sbr.rel (%p408) target = $region80
        $region79: #{bert_lstm_forward.7} parent=51 // pred_region
          %411 = dma.done [#allocation12], 16
        $region80: #{bert_lstm_forward.7} parent=51 // pred_fallthru
          _
        // Predicated region
        $region81: #{bert_lstm_forward.7} parent=51 // pred_check
          %p412 = pneg %p216
        $region82: #{bert_lstm_forward.7} parent=51 // pred_check_branch
          %414 = sbr.rel (%p412) target = $region84
        $region83: #{bert_lstm_forward.7} parent=51 // pred_region
          %415 = dma.done [#allocation15], 16
        $region84: #{bert_lstm_forward.7} parent=51 // pred_fallthru
          _
        %s416 = sand.u32 %s51, 1
        %s417 = scalar_lea.sflag [#allocation3], %s416
        %s418 = sand.u32 %s51, 1
        %s419 = smul.addr %s418, 4
        %s420 = scalar_lea.vmem [#allocation2], %s419
        %p421 = pneg %p64
        %p422 = pneg %p61
        %s423 = sand.u32 %s31, 1
        %s424 = scalar_lea.sflag [#allocation6], %s423
        %s425 = sand.u32 %s77, 1
        %s426 = scalar_lea.vmem [#allocation5], %s425
        %p427 = pneg %p90
        %p428 = pneg %p87
        %p429 = pneg %p111
        %p430 = pneg %p108
        %p431 = pneg %p132
        %p432 = pneg %p129
        %p433 = pneg %p153
        %p434 = pneg %p150
        %p435 = pneg %p174
        %p436 = pneg %p171
        %p437 = pneg %p195
        %p438 = pneg %p192
        %p439 = pneg %p216
        %p440 = pneg %p213
        %p441 = pneg %p244
        %p442 = pneg %p241
        %s443 = sand.u32 %s231, 1
        %s444 = scalar_lea.sflag [#allocation4], %s443
        %s445 = sand.u32 %s231, 1
        %s446 = smul.addr %s445, 4
        %s447 = scalar_lea.vmem [#allocation16], %s446
        %v449 = vld [vmem:[%s379] sm:$0xf]
        %v450 = vld [vmem:[#allocation7] sm:$0xf]
        %v451 = vld [vmem:[#allocation7 + $0x4] sm:$0xf]
        %v452 = vld [vmem:[#allocation7 + $0x8] sm:$0xf]
        %v453 = vld [vmem:[#allocation7 + $0xc] sm:$0xf]
        %v454 = vld [vmem:[#allocation8] sm:$0x1]
        %v456 = vlaneseq
        %v457 = vshrl.u32 %v456, 7
        %v458 = vsub.s32 0, %v457
        %v459 = vrot.slane %v454, %v458
        %v465 = vunpack.c.l.b16 %v450
        %v466 = vunpack.c.l.b16 %v451
        %v467 = vunpack.c.l.b16 %v452
        %v468 = vunpack.c.l.b16 %v453
        %v469 = vpack.c.b16 %v466, %v465
        %v470 = vpack.c.b16 %v468, %v467
        %vm473 = vcmask 261120
        %v475 = vsel %vm473, %v449, 0
        %477 = vmatprep.subr.bf16.mxu0 0
        %478 = vmatpush1.bf16.msra.mxu0 %v469
        %479 = vmatprep.subr.bf16.mxu0 0
        %480 = vmatpush1.bf16.msra.mxu0 %v470
        %481 = vmatprep.subr.bf16.mxu0 0
        %482 = vmatpush1.bf16.msra.mxu0 0
        %483 = vmatprep.subr.bf16.mxu0 0
        %484 = vmatpush1.bf16.msra.mxu0 0
        %485 = vmatprep.subr.bf16.mxu0 0
        %486 = vmatpush1.bf16.msra.mxu0 0
        %487 = vmatprep.subr.bf16.mxu0 0
        %488 = vmatpush1.bf16.msra.mxu0 0
        %489 = vmatprep.subr.bf16.mxu0 0
        %490 = vmatpush1.bf16.msra.mxu0 0
        %491 = vmatprep.subr.bf16.mxu0 0
        %492 = vmatpush1.bf16.msra.mxu0 0
        %493 = vmatprep.subr.bf16.mxu0 0
        %494 = vmatpush1.bf16.msra.mxu0 0
        %495 = vmatprep.subr.bf16.mxu0 0
        %496 = vmatpush1.bf16.msra.mxu0 0
        %497 = vmatprep.subr.bf16.mxu0 0
        %498 = vmatpush1.bf16.msra.mxu0 0
        %499 = vmatprep.subr.bf16.mxu0 0
        %500 = vmatpush1.bf16.msra.mxu0 0
        %501 = vmatprep.subr.bf16.mxu0 0
        %502 = vmatpush1.bf16.msra.mxu0 0
        %503 = vmatprep.subr.bf16.mxu0 0
        %504 = vmatpush1.bf16.msra.mxu0 0
        %505 = vmatprep.subr.bf16.mxu0 0
        %506 = vmatpush1.bf16.msra.mxu0 0
        %507 = vmatprep.subr.bf16.mxu0 0
        %508 = vmatpush1.bf16.msra.mxu0 0
        %509 = vmatprep.mubr.bf16.mxu0 0
        %510 = vmatmul.mubr.bf16.gmra.mrb[0].mxu0 %v475
        %v511 = vpop.f32.mrb[0].mxu0
        %v512 = vadd.f32 %v459, %v511
        %v513 = vpop.f32.mrb[0].mxu0
        %v514 = vpop.f32.mrb[0].mxu0
        %v515 = vpop.f32.mrb[0].mxu0
        %516 = vdwg.mxu0
        %517 = vrot.lane.b32.xlu0 %v469, 96
        %v518 = vpop.permute.xlu0 %517
        %519 = vrot.lane.b32.xlu0 %v470, 96
        %v520 = vpop.permute.xlu0 %519
        %523 = vrot.lane.b32.xlu0 %v459, 96
        %v524 = vpop.permute.xlu0 %523
        %526 = vmatprep.subr.bf16.mxu0 0
        %527 = vmatpush1.bf16.msra.mxu0 %v518
        %528 = vmatprep.subr.bf16.mxu0 0
        %529 = vmatpush1.bf16.msra.mxu0 %v520
        %530 = vmatprep.subr.bf16.mxu0 0
        %531 = vmatpush1.bf16.msra.mxu0 0
        %532 = vmatprep.subr.bf16.mxu0 0
        %533 = vmatpush1.bf16.msra.mxu0 0
        %534 = vmatprep.subr.bf16.mxu0 0
        %535 = vmatpush1.bf16.msra.mxu0 0
        %536 = vmatprep.subr.bf16.mxu0 0
        %537 = vmatpush1.bf16.msra.mxu0 0
        %538 = vmatprep.subr.bf16.mxu0 0
        %539 = vmatpush1.bf16.msra.mxu0 0
        %540 = vmatprep.subr.bf16.mxu0 0
        %541 = vmatpush1.bf16.msra.mxu0 0
        %542 = vmatprep.subr.bf16.mxu0 0
        %543 = vmatpush1.bf16.msra.mxu0 0
        %544 = vmatprep.subr.bf16.mxu0 0
        %545 = vmatpush1.bf16.msra.mxu0 0
        %546 = vmatprep.subr.bf16.mxu0 0
        %547 = vmatpush1.bf16.msra.mxu0 0
        %548 = vmatprep.subr.bf16.mxu0 0
        %549 = vmatpush1.bf16.msra.mxu0 0
        %550 = vmatprep.subr.bf16.mxu0 0
        %551 = vmatpush1.bf16.msra.mxu0 0
        %552 = vmatprep.subr.bf16.mxu0 0
        %553 = vmatpush1.bf16.msra.mxu0 0
        %554 = vmatprep.subr.bf16.mxu0 0
        %555 = vmatpush1.bf16.msra.mxu0 0
        %556 = vmatprep.subr.bf16.mxu0 0
        %557 = vmatpush1.bf16.msra.mxu0 0
        %558 = vmatprep.mubr.bf16.mxu0 0
        %559 = vmatmul.mubr.bf16.gmra.mrb[0].mxu0 %v475
        %v560 = vpop.f32.mrb[0].mxu0
        %v561 = vadd.f32 %v524, %v560
        %v562 = vpop.f32.mrb[0].mxu0
        %v563 = vpop.f32.mrb[0].mxu0
        %v564 = vpop.f32.mrb[0].mxu0
        %565 = vdwg.mxu0
        %567 = vrot.lane.b32.xlu0 %v512, 120
        %v568 = vpop.permute.xlu0 %567
        %570 = vrot.lane.b32.xlu0 %v512, 112
        %v571 = vpop.permute.xlu0 %570
        %573 = vrot.lane.b32.xlu0 %v512, 104
        %v574 = vpop.permute.xlu0 %573
        %v576 = vpack.c.bf16 %v512, %v512
        %v577 = vpack.c.bf16 %v568, %v568
        %v578 = vpack.c.bf16 %v571, %v571
        %v579 = vpack.c.bf16 %v574, %v574
        %581 = vrot.lane.b32.xlu0 %v561, 120
        %v582 = vpop.permute.xlu0 %581
        %584 = vrot.lane.b32.xlu0 %v561, 112
        %v585 = vpop.permute.xlu0 %584
        %587 = vrot.lane.b32.xlu0 %v561, 104
        %v588 = vpop.permute.xlu0 %587
        %v590 = vpack.c.bf16 %v561, %v561
        %v591 = vpack.c.bf16 %v582, %v582
        %v592 = vpack.c.bf16 %v585, %v585
        %v593 = vpack.c.bf16 %v588, %v588
        %v594 = vld [vmem:[%s387] sm:$0x1]
        %v595 = vsub.f32 1.0, %v594
        %v596 = vmul.f32 %v595, -1e+09
        %vm597 = vcmask 64512
        %v599 = vsel %vm597, %v576, 0
        %v602 = vsel %vm597, %v590, 0
        %604 = vmatprep.subr.bf16.mxu0 0
        %605 = vmatpush1.bf16.xpose.msra.mxu0 %v602
        %606 = vmatprep.subr.bf16.mxu0 0
        %607 = vmatpush1.bf16.xpose.msra.mxu0 0
        %608 = vmatprep.subr.bf16.mxu0 0
        %609 = vmatpush1.bf16.xpose.msra.mxu0 0
        %610 = vmatprep.subr.bf16.mxu0 0
        %611 = vmatpush1.bf16.xpose.msra.mxu0 0
        %612 = vmatprep.subr.bf16.mxu0 0
        %613 = vmatpush1.bf16.xpose.msra.mxu0 0
        %614 = vmatprep.subr.bf16.mxu0 0
        %615 = vmatpush1.bf16.xpose.msra.mxu0 0
        %616 = vmatprep.subr.bf16.mxu0 0
        %617 = vmatpush1.bf16.xpose.msra.mxu0 0
        %618 = vmatprep.subr.bf16.mxu0 0
        %619 = vmatpush1.bf16.xpose.msra.mxu0 0
        %620 = vmatprep.subr.bf16.mxu0 0
        %621 = vmatpush1.bf16.xpose.msra.mxu0 0
        %622 = vmatprep.subr.bf16.mxu0 0
        %623 = vmatpush1.bf16.xpose.msra.mxu0 0
        %624 = vmatprep.subr.bf16.mxu0 0
        %625 = vmatpush1.bf16.xpose.msra.mxu0 0
        %626 = vmatprep.subr.bf16.mxu0 0
        %627 = vmatpush1.bf16.xpose.msra.mxu0 0
        %628 = vmatprep.subr.bf16.mxu0 0
        %629 = vmatpush1.bf16.xpose.msra.mxu0 0
        %630 = vmatprep.subr.bf16.mxu0 0
        %631 = vmatpush1.bf16.xpose.msra.mxu0 0
        %632 = vmatprep.subr.bf16.mxu0 0
        %633 = vmatpush1.bf16.xpose.msra.mxu0 0
        %634 = vmatprep.subr.bf16.mxu0 0
        %635 = vmatpush1.bf16.xpose.msra.mxu0 0
        %636 = vmatprep.mubr.bf16.mxu0 0
        %637 = vmatmul.mubr.bf16.gmra.mrb[0].mxu0 %v599
        %v638 = vpop.f32.mrb[0].mxu0
        %v639 = vadd.f32 0.0, %v638
        %v640 = vpop.f32.mrb[0].mxu0
        %v641 = vpop.f32.mrb[0].mxu0
        %v642 = vpop.f32.mrb[0].mxu0
        %643 = vdwg.mxu0
        %v645 = vsel %vm597, %v577, 0
        %v648 = vsel %vm597, %v591, 0
        %650 = vmatprep.subr.bf16.mxu0 0
        %651 = vmatpush1.bf16.xpose.msra.mxu0 %v648
        %652 = vmatprep.subr.bf16.mxu0 0
        %653 = vmatpush1.bf16.xpose.msra.mxu0 0
        %654 = vmatprep.subr.bf16.mxu0 0
        %655 = vmatpush1.bf16.xpose.msra.mxu0 0
        %656 = vmatprep.subr.bf16.mxu0 0
        %657 = vmatpush1.bf16.xpose.msra.mxu0 0
        %658 = vmatprep.subr.bf16.mxu0 0
        %659 = vmatpush1.bf16.xpose.msra.mxu0 0
        %660 = vmatprep.subr.bf16.mxu0 0
        %661 = vmatpush1.bf16.xpose.msra.mxu0 0
        %662 = vmatprep.subr.bf16.mxu0 0
        %663 = vmatpush1.bf16.xpose.msra.mxu0 0
        %664 = vmatprep.subr.bf16.mxu0 0
        %665 = vmatpush1.bf16.xpose.msra.mxu0 0
        %666 = vmatprep.subr.bf16.mxu0 0
        %667 = vmatpush1.bf16.xpose.msra.mxu0 0
        %668 = vmatprep.subr.bf16.mxu0 0
        %669 = vmatpush1.bf16.xpose.msra.mxu0 0
        %670 = vmatprep.subr.bf16.mxu0 0
        %671 = vmatpush1.bf16.xpose.msra.mxu0 0
        %672 = vmatprep.subr.bf16.mxu0 0
        %673 = vmatpush1.bf16.xpose.msra.mxu0 0
        %674 = vmatprep.subr.bf16.mxu0 0
        %675 = vmatpush1.bf16.xpose.msra.mxu0 0
        %676 = vmatprep.subr.bf16.mxu0 0
        %677 = vmatpush1.bf16.xpose.msra.mxu0 0
        %678 = vmatprep.subr.bf16.mxu0 0
        %679 = vmatpush1.bf16.xpose.msra.mxu0 0
        %680 = vmatprep.subr.bf16.mxu0 0
        %681 = vmatpush1.bf16.xpose.msra.mxu0 0
        %682 = vmatprep.mubr.bf16.mxu0 0
        %683 = vmatmul.mubr.bf16.gmra.mrb[0].mxu0 %v645
        %v684 = vpop.f32.mrb[0].mxu0
        %v685 = vadd.f32 0.0, %v684
        %v686 = vpop.f32.mrb[0].mxu0
        %v687 = vpop.f32.mrb[0].mxu0
        %v688 = vpop.f32.mrb[0].mxu0
        %689 = vdwg.mxu0
        %v691 = vsel %vm597, %v578, 0
        %v694 = vsel %vm597, %v592, 0
        %696 = vmatprep.subr.bf16.mxu0 0
        %697 = vmatpush1.bf16.xpose.msra.mxu0 %v694
        %698 = vmatprep.subr.bf16.mxu0 0
        %699 = vmatpush1.bf16.xpose.msra.mxu0 0
        %700 = vmatprep.subr.bf16.mxu0 0
        %701 = vmatpush1.bf16.xpose.msra.mxu0 0
        %702 = vmatprep.subr.bf16.mxu0 0
        %703 = vmatpush1.bf16.xpose.msra.mxu0 0
        %704 = vmatprep.subr.bf16.mxu0 0
        %705 = vmatpush1.bf16.xpose.msra.mxu0 0
        %706 = vmatprep.subr.bf16.mxu0 0
        %707 = vmatpush1.bf16.xpose.msra.mxu0 0
        %708 = vmatprep.subr.bf16.mxu0 0
        %709 = vmatpush1.bf16.xpose.msra.mxu0 0
        %710 = vmatprep.subr.bf16.mxu0 0
        %711 = vmatpush1.bf16.xpose.msra.mxu0 0
        %712 = vmatprep.subr.bf16.mxu0 0
        %713 = vmatpush1.bf16.xpose.msra.mxu0 0
        %714 = vmatprep.subr.bf16.mxu0 0
        %715 = vmatpush1.bf16.xpose.msra.mxu0 0
        %716 = vmatprep.subr.bf16.mxu0 0
        %717 = vmatpush1.bf16.xpose.msra.mxu0 0
        %718 = vmatprep.subr.bf16.mxu0 0
        %719 = vmatpush1.bf16.xpose.msra.mxu0 0
        %720 = vmatprep.subr.bf16.mxu0 0
        %721 = vmatpush1.bf16.xpose.msra.mxu0 0
        %722 = vmatprep.subr.bf16.mxu0 0
        %723 = vmatpush1.bf16.xpose.msra.mxu0 0
        %724 = vmatprep.subr.bf16.mxu0 0
        %725 = vmatpush1.bf16.xpose.msra.mxu0 0
        %726 = vmatprep.subr.bf16.mxu0 0
        %727 = vmatpush1.bf16.xpose.msra.mxu0 0
        %728 = vmatprep.mubr.bf16.mxu0 0
        %729 = vmatmul.mubr.bf16.gmra.mrb[0].mxu0 %v691
        %v730 = vpop.f32.mrb[0].mxu0
        %v731 = vadd.f32 0.0, %v730
        %v732 = vpop.f32.mrb[0].mxu0
        %v733 = vpop.f32.mrb[0].mxu0
        %v734 = vpop.f32.mrb[0].mxu0
        %735 = vdwg.mxu0
        %v737 = vsel %vm597, %v579, 0
        %v740 = vsel %vm597, %v593, 0
        %742 = vmatprep.subr.bf16.mxu0 0
        %743 = vmatpush1.bf16.xpose.msra.mxu0 %v740
        %744 = vmatprep.subr.bf16.mxu0 0
        %745 = vmatpush1.bf16.xpose.msra.mxu0 0
        %746 = vmatprep.subr.bf16.mxu0 0
        %747 = vmatpush1.bf16.xpose.msra.mxu0 0
        %748 = vmatprep.subr.bf16.mxu0 0
        %749 = vmatpush1.bf16.xpose.msra.mxu0 0
        %750 = vmatprep.subr.bf16.mxu0 0
        %751 = vmatpush1.bf16.xpose.msra.mxu0 0
        %752 = vmatprep.subr.bf16.mxu0 0
        %753 = vmatpush1.bf16.xpose.msra.mxu0 0
        %754 = vmatprep.subr.bf16.mxu0 0
        %755 = vmatpush1.bf16.xpose.msra.mxu0 0
        %756 = vmatprep.subr.bf16.mxu0 0
        %757 = vmatpush1.bf16.xpose.msra.mxu0 0
        %758 = vmatprep.subr.bf16.mxu0 0
        %759 = vmatpush1.bf16.xpose.msra.mxu0 0
        %760 = vmatprep.subr.bf16.mxu0 0
        %761 = vmatpush1.bf16.xpose.msra.mxu0 0
        %762 = vmatprep.subr.bf16.mxu0 0
        %763 = vmatpush1.bf16.xpose.msra.mxu0 0
        %764 = vmatprep.subr.bf16.mxu0 0
        %765 = vmatpush1.bf16.xpose.msra.mxu0 0
        %766 = vmatprep.subr.bf16.mxu0 0
        %767 = vmatpush1.bf16.xpose.msra.mxu0 0
        %768 = vmatprep.subr.bf16.mxu0 0
        %769 = vmatpush1.bf16.xpose.msra.mxu0 0
        %770 = vmatprep.subr.bf16.mxu0 0
        %771 = vmatpush1.bf16.xpose.msra.mxu0 0
        %772 = vmatprep.subr.bf16.mxu0 0
        %773 = vmatpush1.bf16.xpose.msra.mxu0 0
        %774 = vmatprep.mubr.bf16.mxu0 0
        %775 = vmatmul.mubr.bf16.gmra.mrb[0].mxu0 %v737
        %v776 = vpop.f32.mrb[0].mxu0
        %v777 = vadd.f32 0.0, %v776
        %v778 = vpop.f32.mrb[0].mxu0
        %v779 = vpop.f32.mrb[0].mxu0
        %v780 = vpop.f32.mrb[0].mxu0
        %781 = vdwg.mxu0
        %v782 = vmul.f32 %v639, 0.35355338
        %v783 = vmul.f32 %v685, 0.35355338
        %v784 = vmul.f32 %v731, 0.35355338
        %v785 = vmul.f32 %v777, 0.35355338
        %v787 = vlaneseq
        %v788 = vshrl.u32 %v787, 7
        %v789 = vsub.s32 0, %v788
        %v790 = vrot.slane %v596, %v789
        %v792 = vadd.f32 %v782, %v790
        %v793 = vadd.f32 %v783, %v790
        %v794 = vadd.f32 %v784, %v790
        %v795 = vadd.f32 %v785, %v790
        %v796 = vsel %vm597, %v792, -inf
        %797 = vmax.xlane.f32.xlu0 %v796
        %v798 = vpop.xlane.xlu0 %797
        %v799 = vsel %vm597, %v793, -inf
        %800 = vmax.xlane.f32.xlu0 %v799
        %v801 = vpop.xlane.xlu0 %800
        %v802 = vsel %vm597, %v794, -inf
        %803 = vmax.xlane.f32.xlu0 %v802
        %v804 = vpop.xlane.xlu0 %803
        %v805 = vsel %vm597, %v795, -inf
        %806 = vmax.xlane.f32.xlu0 %v805
        %v807 = vpop.xlane.xlu0 %806
        %v808 = vsub.f32 %v792, %v798
        %v809 = vsub.f32 %v793, %v801
        %v810 = vsub.f32 %v794, %v804
        %v811 = vsub.f32 %v795, %v807
        %v812 = vmul.f32 %v808, 1.442695
        %v813 = vpow.pop %v812
        %v814 = vmul.f32 %v809, 1.442695
        %v815 = vpow.pop %v814
        %v816 = vmul.f32 %v810, 1.442695
        %v817 = vpow.pop %v816
        %v818 = vmul.f32 %v811, 1.442695
        %v819 = vpow.pop %v818
        %v820 = vsel %vm597, %v813, 0.0
        %821 = vadd.xlane.f32.xlu0 %v820
        %v822 = vpop.xlane.xlu0 %821
        %v823 = vsel %vm597, %v815, 0.0
        %824 = vadd.xlane.f32.xlu0 %v823
        %v825 = vpop.xlane.xlu0 %824
        %v826 = vsel %vm597, %v817, 0.0
        %827 = vadd.xlane.f32.xlu0 %v826
        %v828 = vpop.xlane.xlu0 %827
        %v829 = vsel %vm597, %v819, 0.0
        %830 = vadd.xlane.f32.xlu0 %v829
        %v831 = vpop.xlane.xlu0 %830
        %v832 = vrcp.pop %v822
        %v833 = vrcp.pop %v825
        %v834 = vrcp.pop %v828
        %v835 = vrcp.pop %v831
        %v836 = vmul.f32 %v813, %v832
        %v837 = vmul.f32 %v815, %v833
        %v838 = vmul.f32 %v817, %v834
        %v839 = vmul.f32 %v819, %v835
        %v840 = vpack.c.bf16 %v836, %v836
        %v841 = vpack.c.bf16 %v837, %v837
        %v842 = vpack.c.bf16 %v838, %v838
        %v843 = vpack.c.bf16 %v839, %v839
        %845 = vrot.lane.b32.xlu0 %v590, 96
        %v846 = vpop.permute.xlu0 %845
        %v848 = vsel %vm597, %v840, 0
        %vm850 = vcmask 1043456
        %v852 = vsel %vm850, %v846, 0
        %854 = vmatprep.subr.bf16.mxu0 0
        %855 = vmatpush1.bf16.msra.mxu0 %v852
        %856 = vmatprep.subr.bf16.mxu0 0
        %857 = vmatpush1.bf16.msra.mxu0 0
        %858 = vmatprep.subr.bf16.mxu0 0
        %859 = vmatpush1.bf16.msra.mxu0 0
        %860 = vmatprep.subr.bf16.mxu0 0
        %861 = vmatpush1.bf16.msra.mxu0 0
        %862 = vmatprep.subr.bf16.mxu0 0
        %863 = vmatpush1.bf16.msra.mxu0 0
        %864 = vmatprep.subr.bf16.mxu0 0
        %865 = vmatpush1.bf16.msra.mxu0 0
        %866 = vmatprep.subr.bf16.mxu0 0
        %867 = vmatpush1.bf16.msra.mxu0 0
        %868 = vmatprep.subr.bf16.mxu0 0
        %869 = vmatpush1.bf16.msra.mxu0 0
        %870 = vmatprep.subr.bf16.mxu0 0
        %871 = vmatpush1.bf16.msra.mxu0 0
        %872 = vmatprep.subr.bf16.mxu0 0
        %873 = vmatpush1.bf16.msra.mxu0 0
        %874 = vmatprep.subr.bf16.mxu0 0
        %875 = vmatpush1.bf16.msra.mxu0 0
        %876 = vmatprep.subr.bf16.mxu0 0
        %877 = vmatpush1.bf16.msra.mxu0 0
        %878 = vmatprep.subr.bf16.mxu0 0
        %879 = vmatpush1.bf16.msra.mxu0 0
        %880 = vmatprep.subr.bf16.mxu0 0
        %881 = vmatpush1.bf16.msra.mxu0 0
        %882 = vmatprep.subr.bf16.mxu0 0
        %883 = vmatpush1.bf16.msra.mxu0 0
        %884 = vmatprep.subr.bf16.mxu0 0
        %885 = vmatpush1.bf16.msra.mxu0 0
        %886 = vmatprep.mubr.bf16.mxu0 0
        %887 = vmatmul.mubr.bf16.gmra.mrb[0].mxu0 %v848
        %v888 = vpop.f32.mrb[0].mxu0
        %v889 = vadd.f32 0.0, %v888
        %v890 = vpop.f32.mrb[0].mxu0
        %v891 = vpop.f32.mrb[0].mxu0
        %v892 = vpop.f32.mrb[0].mxu0
        %893 = vdwg.mxu0
        %895 = vrot.lane.b32.xlu0 %v591, 96
        %v896 = vpop.permute.xlu0 %895
        %v898 = vsel %vm597, %v841, 0
        %v901 = vsel %vm850, %v896, 0
        %903 = vmatprep.subr.bf16.mxu0 0
        %904 = vmatpush1.bf16.msra.mxu0 %v901
        %905 = vmatprep.subr.bf16.mxu0 0
        %906 = vmatpush1.bf16.msra.mxu0 0
        %907 = vmatprep.subr.bf16.mxu0 0
        %908 = vmatpush1.bf16.msra.mxu0 0
        %909 = vmatprep.subr.bf16.mxu0 0
        %910 = vmatpush1.bf16.msra.mxu0 0
        %911 = vmatprep.subr.bf16.mxu0 0
        %912 = vmatpush1.bf16.msra.mxu0 0
        %913 = vmatprep.subr.bf16.mxu0 0
        %914 = vmatpush1.bf16.msra.mxu0 0
        %915 = vmatprep.subr.bf16.mxu0 0
        %916 = vmatpush1.bf16.msra.mxu0 0
        %917 = vmatprep.subr.bf16.mxu0 0
        %918 = vmatpush1.bf16.msra.mxu0 0
        %919 = vmatprep.subr.bf16.mxu0 0
        %920 = vmatpush1.bf16.msra.mxu0 0
        %921 = vmatprep.subr.bf16.mxu0 0
        %922 = vmatpush1.bf16.msra.mxu0 0
        %923 = vmatprep.subr.bf16.mxu0 0
        %924 = vmatpush1.bf16.msra.mxu0 0
        %925 = vmatprep.subr.bf16.mxu0 0
        %926 = vmatpush1.bf16.msra.mxu0 0
        %927 = vmatprep.subr.bf16.mxu0 0
        %928 = vmatpush1.bf16.msra.mxu0 0
        %929 = vmatprep.subr.bf16.mxu0 0
        %930 = vmatpush1.bf16.msra.mxu0 0
        %931 = vmatprep.subr.bf16.mxu0 0
        %932 = vmatpush1.bf16.msra.mxu0 0
        %933 = vmatprep.subr.bf16.mxu0 0
        %934 = vmatpush1.bf16.msra.mxu0 0
        %935 = vmatprep.mubr.bf16.mxu0 0
        %936 = vmatmul.mubr.bf16.gmra.mrb[0].mxu0 %v898
        %v937 = vpop.f32.mrb[0].mxu0
        %v938 = vadd.f32 0.0, %v937
        %v939 = vpop.f32.mrb[0].mxu0
        %v940 = vpop.f32.mrb[0].mxu0
        %v941 = vpop.f32.mrb[0].mxu0
        %942 = vdwg.mxu0
        %944 = vrot.lane.b32.xlu0 %v592, 96
        %v945 = vpop.permute.xlu0 %944
        %v947 = vsel %vm597, %v842, 0
        %v950 = vsel %vm850, %v945, 0
        %952 = vmatprep.subr.bf16.mxu0 0
        %953 = vmatpush1.bf16.msra.mxu0 %v950
        %954 = vmatprep.subr.bf16.mxu0 0
        %955 = vmatpush1.bf16.msra.mxu0 0
        %956 = vmatprep.subr.bf16.mxu0 0
        %957 = vmatpush1.bf16.msra.mxu0 0
        %958 = vmatprep.subr.bf16.mxu0 0
        %959 = vmatpush1.bf16.msra.mxu0 0
        %960 = vmatprep.subr.bf16.mxu0 0
        %961 = vmatpush1.bf16.msra.mxu0 0
        %962 = vmatprep.subr.bf16.mxu0 0
        %963 = vmatpush1.bf16.msra.mxu0 0
        %964 = vmatprep.subr.bf16.mxu0 0
        %965 = vmatpush1.bf16.msra.mxu0 0
        %966 = vmatprep.subr.bf16.mxu0 0
        %967 = vmatpush1.bf16.msra.mxu0 0
        %968 = vmatprep.subr.bf16.mxu0 0
        %969 = vmatpush1.bf16.msra.mxu0 0
        %970 = vmatprep.subr.bf16.mxu0 0
        %971 = vmatpush1.bf16.msra.mxu0 0
        %972 = vmatprep.subr.bf16.mxu0 0
        %973 = vmatpush1.bf16.msra.mxu0 0
        %974 = vmatprep.subr.bf16.mxu0 0
        %975 = vmatpush1.bf16.msra.mxu0 0
        %976 = vmatprep.subr.bf16.mxu0 0
        %977 = vmatpush1.bf16.msra.mxu0 0
        %978 = vmatprep.subr.bf16.mxu0 0
        %979 = vmatpush1.bf16.msra.mxu0 0
        %980 = vmatprep.subr.bf16.mxu0 0
        %981 = vmatpush1.bf16.msra.mxu0 0
        %982 = vmatprep.subr.bf16.mxu0 0
        %983 = vmatpush1.bf16.msra.mxu0 0
        %984 = vmatprep.mubr.bf16.mxu0 0
        %985 = vmatmul.mubr.bf16.gmra.mrb[0].mxu0 %v947
        %v986 = vpop.f32.mrb[0].mxu0
        %v987 = vadd.f32 0.0, %v986
        %v988 = vpop.f32.mrb[0].mxu0
        %v989 = vpop.f32.mrb[0].mxu0
        %v990 = vpop.f32.mrb[0].mxu0
        %991 = vdwg.mxu0
        %993 = vrot.lane.b32.xlu0 %v593, 96
        %v994 = vpop.permute.xlu0 %993
        %v996 = vsel %vm597, %v843, 0
        %v999 = vsel %vm850, %v994, 0
        %1001 = vmatprep.subr.bf16.mxu0 0
        %1002 = vmatpush1.bf16.msra.mxu0 %v999
        %1003 = vmatprep.subr.bf16.mxu0 0
        %1004 = vmatpush1.bf16.msra.mxu0 0
        %1005 = vmatprep.subr.bf16.mxu0 0
        %1006 = vmatpush1.bf16.msra.mxu0 0
        %1007 = vmatprep.subr.bf16.mxu0 0
        %1008 = vmatpush1.bf16.msra.mxu0 0
        %1009 = vmatprep.subr.bf16.mxu0 0
        %1010 = vmatpush1.bf16.msra.mxu0 0
        %1011 = vmatprep.subr.bf16.mxu0 0
        %1012 = vmatpush1.bf16.msra.mxu0 0
        %1013 = vmatprep.subr.bf16.mxu0 0
        %1014 = vmatpush1.bf16.msra.mxu0 0
        %1015 = vmatprep.subr.bf16.mxu0 0
        %1016 = vmatpush1.bf16.msra.mxu0 0
        %1017 = vmatprep.subr.bf16.mxu0 0
        %1018 = vmatpush1.bf16.msra.mxu0 0
        %1019 = vmatprep.subr.bf16.mxu0 0
        %1020 = vmatpush1.bf16.msra.mxu0 0
        %1021 = vmatprep.subr.bf16.mxu0 0
        %1022 = vmatpush1.bf16.msra.mxu0 0
        %1023 = vmatprep.subr.bf16.mxu0 0
        %1024 = vmatpush1.bf16.msra.mxu0 0
        %1025 = vmatprep.subr.bf16.mxu0 0
        %1026 = vmatpush1.bf16.msra.mxu0 0
        %1027 = vmatprep.subr.bf16.mxu0 0
        %1028 = vmatpush1.bf16.msra.mxu0 0
        %1029 = vmatprep.subr.bf16.mxu0 0
        %1030 = vmatpush1.bf16.msra.mxu0 0
        %1031 = vmatprep.subr.bf16.mxu0 0
        %1032 = vmatpush1.bf16.msra.mxu0 0
        %1033 = vmatprep.mubr.bf16.mxu0 0
        %1034 = vmatmul.mubr.bf16.gmra.mrb[0].mxu0 %v996
        %v1035 = vpop.f32.mrb[0].mxu0
        %v1036 = vadd.f32 0.0, %v1035
        %v1037 = vpop.f32.mrb[0].mxu0
        %v1038 = vpop.f32.mrb[0].mxu0
        %v1039 = vpop.f32.mrb[0].mxu0
        %1040 = vdwg.mxu0
        %1042 = vrot.lane.b32.xlu0 %v938, 8
        %v1043 = vpop.permute.xlu0 %1042
        %1046 = vrot.lane.b32.xlu0 %v987, 16
        %v1047 = vpop.permute.xlu0 %1046
        %1050 = vrot.lane.b32.xlu0 %v1036, 24
        %v1051 = vpop.permute.xlu0 %1050
        %v1053 = vsel %vm597, %v889, %v1043
        %vm1054 = vcmask 130048
        %v1055 = vsel %vm1054, %v1053, %v1047
        %vm1056 = vcmask 195584
        %v1057 = vsel %vm1056, %v1055, %v1051
        %v1058 = vpack.c.bf16 %v1057, %v1057
        %v1059 = vld [vmem:[#allocation10] sm:$0xf]
        %v1060 = vld [vmem:[#allocation10 + $0x4] sm:$0xf]
        %v1061 = vld [vmem:[#allocation10 + $0x8] sm:$0xf]
        %v1062 = vld [vmem:[#allocation10 + $0xc] sm:$0xf]
        %v1063 = vld [vmem:[#allocation11] sm:$0x1]
        %v1065 = vlaneseq
        %v1066 = vshrl.u32 %v1065, 7
        %v1067 = vsub.s32 0, %v1066
        %v1068 = vrot.slane %v1063, %v1067
        %v1074 = vunpack.c.l.b16 %v1059
        %v1075 = vunpack.c.l.b16 %v1060
        %v1076 = vunpack.c.l.b16 %v1061
        %v1077 = vunpack.c.l.b16 %v1062
        %v1078 = vpack.c.b16 %v1075, %v1074
        %v1079 = vpack.c.b16 %v1077, %v1076
        %v1083 = vsel %vm473, %v1058, 0
        %1085 = vmatprep.subr.bf16.mxu0 0
        %1086 = vmatpush1.bf16.msra.mxu0 %v1078
        %1087 = vmatprep.subr.bf16.mxu0 0
        %1088 = vmatpush1.bf16.msra.mxu0 %v1079
        %1089 = vmatprep.subr.bf16.mxu0 0
        %1090 = vmatpush1.bf16.msra.mxu0 0
        %1091 = vmatprep.subr.bf16.mxu0 0
        %1092 = vmatpush1.bf16.msra.mxu0 0
        %1093 = vmatprep.subr.bf16.mxu0 0
        %1094 = vmatpush1.bf16.msra.mxu0 0
        %1095 = vmatprep.subr.bf16.mxu0 0
        %1096 = vmatpush1.bf16.msra.mxu0 0
        %1097 = vmatprep.subr.bf16.mxu0 0
        %1098 = vmatpush1.bf16.msra.mxu0 0
        %1099 = vmatprep.subr.bf16.mxu0 0
        %1100 = vmatpush1.bf16.msra.mxu0 0
        %1101 = vmatprep.subr.bf16.mxu0 0
        %1102 = vmatpush1.bf16.msra.mxu0 0
        %1103 = vmatprep.subr.bf16.mxu0 0
        %1104 = vmatpush1.bf16.msra.mxu0 0
        %1105 = vmatprep.subr.bf16.mxu0 0
        %1106 = vmatpush1.bf16.msra.mxu0 0
        %1107 = vmatprep.subr.bf16.mxu0 0
        %1108 = vmatpush1.bf16.msra.mxu0 0
        %1109 = vmatprep.subr.bf16.mxu0 0
        %1110 = vmatpush1.bf16.msra.mxu0 0
        %1111 = vmatprep.subr.bf16.mxu0 0
        %1112 = vmatpush1.bf16.msra.mxu0 0
        %1113 = vmatprep.subr.bf16.mxu0 0
        %1114 = vmatpush1.bf16.msra.mxu0 0
        %1115 = vmatprep.subr.bf16.mxu0 0
        %1116 = vmatpush1.bf16.msra.mxu0 0
        %1117 = vmatprep.mubr.bf16.mxu0 0
        %1118 = vmatmul.mubr.bf16.gmra.mrb[0].mxu0 %v1083
        %v1119 = vpop.f32.mrb[0].mxu0
        %v1120 = vadd.f32 %v1068, %v1119
        %v1121 = vpop.f32.mrb[0].mxu0
        %v1122 = vpop.f32.mrb[0].mxu0
        %v1123 = vpop.f32.mrb[0].mxu0
        %1124 = vdwg.mxu0
        %v1125 = vunpack.c.l.bf16 %v449
        %v1126 = vadd.f32 %v1120, %v1125
        %v1127 = vsel %vm473, %v1126, 0.0
        %1128 = vadd.xlane.f32.xlu0 %v1127
        %v1129 = vpop.xlane.xlu0 %1128
        %v1130 = vrcp.pop 32.0
        %v1131 = vmul.f32 %v1129, %v1130
        %v1132 = vsub.f32 %v1126, %v1131
        %v1133 = vmul.f32 %v1132, %v1132
        %v1134 = vsel %vm473, %v1133, 0.0
        %1135 = vadd.xlane.f32.xlu0 %v1134
        %v1136 = vpop.xlane.xlu0 %1135
        %v1137 = vmul.f32 %v1136, %v1130
        %v1138 = vadd.f32 %v1137, 1e-12
        %v1139 = vrsqrt.pop %v1138
        %v1140 = vmul.f32 %v1132, %v1139
        %v1141 = vld [vmem:[#allocation13] sm:$0x1]
        %v1143 = vlaneseq
        %v1144 = vshrl.u32 %v1143, 7
        %v1145 = vsub.s32 0, %v1144
        %v1146 = vrot.slane %v1141, %v1145
        %v1148 = vmul.f32 %v1140, %v1146
        %v1149 = vld [vmem:[#allocation14] sm:$0x1]
        %v1151 = vlaneseq
        %v1152 = vshrl.u32 %v1151, 7
        %v1153 = vsub.s32 0, %v1152
        %v1154 = vrot.slane %v1149, %v1153
        %v1156 = vadd.f32 %v1148, %v1154
        %v1157 = vpack.c.bf16 %v1156, %v1156
        %vm1158 = vcmask 257024
        %1159 = vst.msk [vmem:[%s447] sm:$0xf] %vm1158, %v1157
        %s1160 = sand.u32 %s231, 1
        %s1161 = scalar_lea.sflag [#allocation4], %s1160
        %s1162 = sand.u32 %s231, 1
        %s1163 = smul.addr %s1162, 4
        %s1164 = scalar_lea.vmem [#allocation16], %s1163
        // Predicated region
        $region85: #{bert_lstm_forward.7} parent=51 // pred_check
          %p1165 = pneg %p241
        $region86: #{bert_lstm_forward.7} parent=51 // pred_check_branch
          %1167 = sbr.rel (%p1165) target = $region88
        $region87: #{bert_lstm_forward.7} parent=51 // pred_region
          %s1169 = ssub.s32 64, 64
          %1170 = vsyncadd %s1161, %s1169
          %s1171 = sadd.s32 %s36, %s35
          %s1172 = smul.addr %s1171, 64
          %s1173 = scalar_lea.hbm %s8, %s1172
          %s1175 = sshll.u32 %s1164, 4
          %s1176 = int_to_ptr.vmem [resolvable:$true] %s1175
          %1178 = dma.vmem_to_hbm [thread:$0]  %s1176, 64, %s1173, %s1161
        $region88: #{bert_lstm_forward.7} parent=51 // pred_fallthru
          _
      $region52: #{bert_lstm_forward.7} parent=5 // pred_fallthru
        _
      %p1179 = scmp.le.s32.totalorder 2, %s26
      // Predicated region
      $region89: #{bert_lstm_forward.7} parent=5 // pred_check
        %p1180 = pneg %p1179
      $region90: #{bert_lstm_forward.7} parent=5 // pred_check_branch
        %1182 = sbr.rel (%p1180) target = $region92
      $region91: #{bert_lstm_forward.7} parent=5 // pred_region
        %s1183 = ssub.s32 %s26, 2
        // Predicated region
        $region93: #{bert_lstm_forward.7} parent=91 // pred_check
          %p1184 = pneg %p247
        $region94: #{bert_lstm_forward.7} parent=91 // pred_check_branch
          %1186 = sbr.rel (%p1184) target = $region96
        $region95: #{bert_lstm_forward.7} parent=91 // pred_region
          %s1187 = sand.u32 %s232, 1
          %s1188 = scalar_lea.sflag [#allocation4], %s1187
          %s1189 = sand.u32 %s232, 1
          %s1190 = smul.addr %s1189, 4
          %s1191 = scalar_lea.vmem [#allocation16], %s1190
          %1192 = dma.done %s1188, 64
        $region96: #{bert_lstm_forward.7} parent=91 // pred_fallthru
          _
      $region92: #{bert_lstm_forward.7} parent=5 // pred_fallthru
        _
    $region6: #{bert_lstm_forward.7} parent=1 // loop_footer
      %s30 = sadd.s32 1, %s26
    $region7: #{bert_lstm_forward.7} parent=1 // loop_footer_branch
      %25 = sbr.rel target = $region3
    $region8: #{bert_lstm_forward.7} parent=1 // loop_exit
      _
    %1193 = vsyncpa [#allocation3], 1
    %s1194 = scalar_lea.sflag [#allocation3], 1
    %1195 = vsyncpa %s1194, 1
    %1196 = vsyncpa [#allocation6], 1
    %s1197 = scalar_lea.sflag [#allocation6], 1
    %1198 = vsyncpa %s1197, 1
    %1199 = vsyncpa [#allocation9], 1
    %1200 = vsyncpa [#allocation12], 1
    %1201 = vsyncpa [#allocation15], 1
    %1202 = vsyncpa [#allocation4], 1
    %s1203 = scalar_lea.sflag [#allocation4], 1
    %1204 = vsyncpa %s1203, 1

// kernel: bert_lstm_forward.11
$region0: #{bert_lstm_forward.11}
  #allocation0 [shape = 'u32[]', space=smem, size = 0x4, offset = 0x4, fixed_abs, tag = 'smem constant byte address 0x4 - core index']
  #allocation1 [shape = 'u32[144,128]{1,0:T(1,128)}', space=vmem, size = 0x12000, scoped, tag = 'internal scratch']
  #allocation2 [shape = 'f32[4,256]{1,0:T(4,128)}', space=vmem, size = 0x1000, scoped, tag = 'scratch operand']
  #allocation3 [shape = 'f32[1,64]{1,0:T(1,128)}', space=vmem, size = 0x200, scoped, tag = 'scratch operand']
  #allocation4 [shape = 'f32[1,64]{1,0:T(1,128)}', space=vmem, size = 0x200, scoped, tag = 'scratch operand']
  #allocation5 [shape = 'f32[4,64]{1,0:T(4,128)}', space=vmem, size = 0x800, scoped, tag = 'scratch operand']
  %s0 = inlined_call_operand.vmem [shape: bf16[4,32], index: 0, kind: input, shape index: {}]
  %s1 = inlined_call_operand.vmem [shape: bf16[32,32], index: 1, kind: input, shape index: {}]
  %s2 = inlined_call_operand.vmem [shape: f32[1,32], index: 2, kind: input, shape index: {}]
  %s3 = inlined_call_operand.vmem [shape: bf16[32,256], index: 3, kind: input, shape index: {}]
  %s4 = inlined_call_operand.hbm [shape: bf16[64,256], index: 4, kind: input, shape index: {}]
  %s5 = inlined_call_operand.vmem [shape: f32[1,256], index: 5, kind: input, shape index: {}]
  %s6 = inlined_call_operand.vmem [shape: f32[1,256], index: 6, kind: input, shape index: {}]
  %s7 = inlined_call_operand.vmem [shape: bf16[64,5], index: 7, kind: input, shape index: {}]
  %s8 = inlined_call_operand.hbm [shape: f32[1,5], index: 8, kind: input, shape index: {}]
  %s9 = inlined_call_operand.hbm [shape: f32[4,5], index: 9, kind: output, shape index: {}]
  %s10 = sld [smem:[#allocation0]]
  $region61: #{bert_lstm_forward.11} parent=0
    _
  %s12 = ssub.s32 1, %s10
  %s13 = scalar_select 0, %s12, %s10
  $region1: #{bert_lstm_forward.11} parent=0
    #allocation6 [shape = 'u8[32768]{0}', space=vmem, size = 0x8000, scoped, tag = 'input window, operand 4, single buffered']
    #allocation7 [shape = 's32[1]{0}', space=sflag, size = 0x4, scoped, tag = 'scoped memory for bert_lstm_forward.11']
    #allocation8 [shape = 's32[1]{0}', space=sflag, size = 0x4, scoped, tag = 'scoped memory for bert_lstm_forward.11']
    #allocation9 [shape = 'u8[512]{0}', space=vmem, size = 0x400, scoped, tag = 'input window, operand 8, single buffered']
    #allocation10 [shape = 's32[1]{0}', space=sflag, size = 0x4, scoped, tag = 'scoped memory for bert_lstm_forward.11']
    #allocation11 [shape = 'u8[2048]{0}', space=vmem, size = 0x800, scoped, tag = 'output window, operand 0, single buffered']
    %14 = vsyncpa [#allocation7], 0
    %15 = vsyncpa [#allocation10], 0
    %16 = vsyncpa [#allocation8], 0
    // Predicated region
    $region2: #{bert_lstm_forward.11} parent=1 // pred_check
      _
    $region3: #{bert_lstm_forward.11} parent=1 // pred_check_branch
      %18 = sbr.rel (0) target = $region5
    $region4: #{bert_lstm_forward.11} parent=1 // pred_region
      _
    $region5: #{bert_lstm_forward.11} parent=1 // pred_fallthru
      _
    // Predicated region
    $region6: #{bert_lstm_forward.11} parent=1 // pred_check
      _
    $region7: #{bert_lstm_forward.11} parent=1 // pred_check_branch
      %20 = sbr.rel (0) target = $region9
    $region8: #{bert_lstm_forward.11} parent=1 // pred_region
      _
    $region9: #{bert_lstm_forward.11} parent=1 // pred_fallthru
      _
    // Predicated region
    $region10: #{bert_lstm_forward.11} parent=1 // pred_check
      _
    $region11: #{bert_lstm_forward.11} parent=1 // pred_check_branch
      %22 = sbr.rel (0) target = $region13
    $region12: #{bert_lstm_forward.11} parent=1 // pred_region
      _
    $region13: #{bert_lstm_forward.11} parent=1 // pred_fallthru
      _
    // Predicated region
    $region14: #{bert_lstm_forward.11} parent=1 // pred_check
      _
    $region15: #{bert_lstm_forward.11} parent=1 // pred_check_branch
      %24 = sbr.rel (0) target = $region17
    $region16: #{bert_lstm_forward.11} parent=1 // pred_region
      _
    $region17: #{bert_lstm_forward.11} parent=1 // pred_fallthru
      _
    // Predicated region
    $region18: #{bert_lstm_forward.11} parent=1 // pred_check
      _
    $region19: #{bert_lstm_forward.11} parent=1 // pred_check_branch
      %26 = sbr.rel (0) target = $region21
    $region20: #{bert_lstm_forward.11} parent=1 // pred_region
      %s28 = ssub.s32 1024, 1024
      %29 = vsyncadd [#allocation7], %s28
      %s30 = sshll.u32 [#allocation6], 4
      %s31 = int_to_ptr.vmem [resolvable:$true] %s30
      %36 = dma.hbm_to_vmem [thread:$0]  %s4, 1024, %s31, [#allocation7], 128, 128, 8
    $region21: #{bert_lstm_forward.11} parent=1 // pred_fallthru
      _
    // Predicated region
    $region22: #{bert_lstm_forward.11} parent=1 // pred_check
      _
    $region23: #{bert_lstm_forward.11} parent=1 // pred_check_branch
      %38 = sbr.rel (0) target = $region25
    $region24: #{bert_lstm_forward.11} parent=1 // pred_region
      _
    $region25: #{bert_lstm_forward.11} parent=1 // pred_fallthru
      _
    // Predicated region
    $region26: #{bert_lstm_forward.11} parent=1 // pred_check
      _
    $region27: #{bert_lstm_forward.11} parent=1 // pred_check_branch
      %40 = sbr.rel (0) target = $region29
    $region28: #{bert_lstm_forward.11} parent=1 // pred_region
      _
    $region29: #{bert_lstm_forward.11} parent=1 // pred_fallthru
      _
    // Predicated region
    $region30: #{bert_lstm_forward.11} parent=1 // pred_check
      _
    $region31: #{bert_lstm_forward.11} parent=1 // pred_check_branch
      %42 = sbr.rel (0) target = $region33
    $region32: #{bert_lstm_forward.11} parent=1 // pred_region
      _
    $region33: #{bert_lstm_forward.11} parent=1 // pred_fallthru
      _
    // Predicated region
    $region34: #{bert_lstm_forward.11} parent=1 // pred_check
      _
    $region35: #{bert_lstm_forward.11} parent=1 // pred_check_branch
      %44 = sbr.rel (0) target = $region37
    $region36: #{bert_lstm_forward.11} parent=1 // pred_region
      %s46 = ssub.s32 16, 16
      %47 = vsyncadd [#allocation10], %s46
      %s49 = sshll.u32 [#allocation9], 4
      %s50 = int_to_ptr.vmem [resolvable:$true] %s49
      %52 = dma.hbm_to_vmem [thread:$0]  %s8, 16, %s50, [#allocation10]
    $region37: #{bert_lstm_forward.11} parent=1 // pred_fallthru
      _
    // Predicated region
    $region38: #{bert_lstm_forward.11} parent=1 // pred_check
      _
    $region39: #{bert_lstm_forward.11} parent=1 // pred_check_branch
      %54 = sbr.rel (0) target = $region41
    $region40: #{bert_lstm_forward.11} parent=1 // pred_region
      %55 = dma.done [#allocation7], 1024
    $region41: #{bert_lstm_forward.11} parent=1 // pred_fallthru
      _
    // Predicated region
    $region42: #{bert_lstm_forward.11} parent=1 // pred_check
      _
    $region43: #{bert_lstm_forward.11} parent=1 // pred_check_branch
      %57 = sbr.rel (0) target = $region45
    $region44: #{bert_lstm_forward.11} parent=1 // pred_region
      %58 = dma.done [#allocation10], 16
    $region45: #{bert_lstm_forward.11} parent=1 // pred_fallthru
      _
    %v60 = vld [vmem:[%s0] sm:$0x3]
    %v61 = vld [vmem:[%s1] sm:$0xf]
    %v62 = vld [vmem:[%s1 + $0x4] sm:$0xf]
    %v63 = vld [vmem:[%s1 + $0x8] sm:$0xf]
    %v64 = vld [vmem:[%s1 + $0xc] sm:$0xf]
    %v65 = vld [vmem:[%s2] sm:$0x1]
    %v67 = vlaneseq
    %v68 = vshrl.u32 %v67, 7
    %v69 = vsub.s32 0, %v68
    %v70 = vrot.slane %v65, %v69
    %v76 = vunpack.c.l.b16 %v61
    %v77 = vunpack.c.l.b16 %v62
    %v78 = vunpack.c.l.b16 %v63
    %v79 = vunpack.c.l.b16 %v64
    %v80 = vpack.c.b16 %v77, %v76
    %v81 = vpack.c.b16 %v79, %v78
    %vm84 = vcmask 261120
    %v86 = vsel %vm84, %v60, 0
    %88 = vmatprep.subr.bf16.mxu0 0
    %89 = vmatpush1.bf16.msra.mxu0 %v80
    %90 = vmatprep.subr.bf16.mxu0 0
    %91 = vmatpush1.bf16.msra.mxu0 %v81
    %92 = vmatprep.subr.bf16.mxu0 0
    %93 = vmatpush1.bf16.msra.mxu0 0
    %94 = vmatprep.subr.bf16.mxu0 0
    %95 = vmatpush1.bf16.msra.mxu0 0
    %96 = vmatprep.subr.bf16.mxu0 0
    %97 = vmatpush1.bf16.msra.mxu0 0
    %98 = vmatprep.subr.bf16.mxu0 0
    %99 = vmatpush1.bf16.msra.mxu0 0
    %100 = vmatprep.subr.bf16.mxu0 0
    %101 = vmatpush1.bf16.msra.mxu0 0
    %102 = vmatprep.subr.bf16.mxu0 0
    %103 = vmatpush1.bf16.msra.mxu0 0
    %104 = vmatprep.subr.bf16.mxu0 0
    %105 = vmatpush1.bf16.msra.mxu0 0
    %106 = vmatprep.subr.bf16.mxu0 0
    %107 = vmatpush1.bf16.msra.mxu0 0
    %108 = vmatprep.subr.bf16.mxu0 0
    %109 = vmatpush1.bf16.msra.mxu0 0
    %110 = vmatprep.subr.bf16.mxu0 0
    %111 = vmatpush1.bf16.msra.mxu0 0
    %112 = vmatprep.subr.bf16.mxu0 0
    %113 = vmatpush1.bf16.msra.mxu0 0
    %114 = vmatprep.subr.bf16.mxu0 0
    %115 = vmatpush1.bf16.msra.mxu0 0
    %116 = vmatprep.subr.bf16.mxu0 0
    %117 = vmatpush1.bf16.msra.mxu0 0
    %118 = vmatprep.subr.bf16.mxu0 0
    %119 = vmatpush1.bf16.msra.mxu0 0
    %120 = vmatprep.mubr.bf16.mxu0 0
    %121 = vmatmul.mubr.bf16.gmra.mrb[0].mxu0 %v86
    %v122 = vpop.f32.mrb[0].mxu0
    %v123 = vadd.f32 %v70, %v122
    %v124 = vpop.f32.mrb[0].mxu0
    %v125 = vpop.f32.mrb[0].mxu0
    %v126 = vpop.f32.mrb[0].mxu0
    %127 = vdwg.mxu0
    %v128 = vtanh.pop %v123
    %v129 = vpack.c.bf16 %v128, %v128
    %v130 = vld [vmem:[%s3] sm:$0xff]
    %v131 = vld [vmem:[%s3 + $0x8] sm:$0xff]
    %v132 = vld [vmem:[%s3 + $0x10] sm:$0xff]
    %v133 = vld [vmem:[%s3 + $0x18] sm:$0xff]
    %v134 = vld [vmem:[%s5] sm:$0x3]
    %v136 = vlaneseq
    %v137 = vshrl.u32 %v136, 7
    %v138 = vsub.s32 0, %v137
    %v139 = vrot.slane %v134, %v138
    %v140 = vlaneseq
    %v141 = vshrl.u32 %v140, 7
    %v142 = vsub.s32 1, %v141
    %v143 = vrot.slane %v134, %v142
    %v150 = vunpack.c.l.b16 %v130
    %v151 = vunpack.c.h.b16 %v130
    %v152 = vunpack.c.l.b16 %v131
    %v153 = vunpack.c.h.b16 %v131
    %v154 = vunpack.c.l.b16 %v132
    %v155 = vunpack.c.h.b16 %v132
    %v156 = vunpack.c.l.b16 %v133
    %v157 = vunpack.c.h.b16 %v133
    %v158 = vpack.c.b16 %v152, %v150
    %v159 = vpack.c.b16 %v153, %v151
    %v160 = vpack.c.b16 %v156, %v154
    %v161 = vpack.c.b16 %v157, %v155
    %v167 = vsel %vm84, %v129, 0
    %169 = vmatprep.subr.bf16.mxu0 %v159
    %170 = vmatpush1.bf16.msra.mxu0 %v158
    %171 = vmatprep.subr.bf16.mxu0 %v161
    %172 = vmatpush1.bf16.msra.mxu0 %v160
    %173 = vmatprep.subr.bf16.mxu0 0
    %174 = vmatpush1.bf16.msra.mxu0 0
    %175 = vmatprep.subr.bf16.mxu0 0
    %176 = vmatpush1.bf16.msra.mxu0 0
    %177 = vmatprep.subr.bf16.mxu0 0
    %178 = vmatpush1.bf16.msra.mxu0 0
    %179 = vmatprep.subr.bf16.mxu0 0
    %180 = vmatpush1.bf16.msra.mxu0 0
    %181 = vmatprep.subr.bf16.mxu0 0
    %182 = vmatpush1.bf16.msra.mxu0 0
    %183 = vmatprep.subr.bf16.mxu0 0
    %184 = vmatpush1.bf16.msra.mxu0 0
    %185 = vmatprep.subr.bf16.mxu0 0
    %186 = vmatpush1.bf16.msra.mxu0 0
    %187 = vmatprep.subr.bf16.mxu0 0
    %188 = vmatpush1.bf16.msra.mxu0 0
    %189 = vmatprep.subr.bf16.mxu0 0
    %190 = vmatpush1.bf16.msra.mxu0 0
    %191 = vmatprep.subr.bf16.mxu0 0
    %192 = vmatpush1.bf16.msra.mxu0 0
    %193 = vmatprep.subr.bf16.mxu0 0
    %194 = vmatpush1.bf16.msra.mxu0 0
    %195 = vmatprep.subr.bf16.mxu0 0
    %196 = vmatpush1.bf16.msra.mxu0 0
    %197 = vmatprep.subr.bf16.mxu0 0
    %198 = vmatpush1.bf16.msra.mxu0 0
    %199 = vmatprep.subr.bf16.mxu0 0
    %200 = vmatpush1.bf16.msra.mxu0 0
    %201 = vmatprep.mubr.bf16.mxu0 0
    %202 = vmatmul.mubr.bf16.gmra.mrb[0].mxu0 %v167
    %v203 = vpop.f32.mrb[0].mxu0
    %v204 = vadd.f32 %v139, %v203
    %v205 = vpop.f32.mrb[0].mxu0
    %v206 = vadd.f32 %v143, %v205
    %v207 = vpop.f32.mrb[0].mxu0
    %v208 = vpop.f32.mrb[0].mxu0
    %209 = vdwg.mxu0
    %v210 = vlaneseq
    %v211 = vshrl.u32 %v210, 7
    %v212 = vlaneseq
    %v213 = vand.u32 %v212, 127
    %v214 = vadd.s32 %v211, %v213
    %vm215 = vcmp.eq.s32.totalorder %v214, 3
    %v216 = vsel %vm215, 1, 0
    %v217 = vcvt.s32.f32 %v216
    %vm218 = vcmask 31744
    %v220 = vsel %vm218, %v217, 0
    %vm222 = vcmask 1043456
    %v224 = vsel %vm222, %v204, 0
    %v227 = vsel %vm222, %v206, 0
    %229 = vmatprep.subr.mxu0 %v227
    %230 = vmatpush1.msra.mxu0 %v224
    %231 = vmatprep.subr.mxu0 0.0
    %232 = vmatpush1.msra.mxu0 0.0
    %233 = vmatprep.subr.mxu0 0.0
    %234 = vmatpush1.msra.mxu0 0.0
    %235 = vmatprep.subr.mxu0 0.0
    %236 = vmatpush1.msra.mxu0 0.0
    %237 = vmatprep.subr.mxu0 0.0
    %238 = vmatpush1.msra.mxu0 0.0
    %239 = vmatprep.subr.mxu0 0.0
    %240 = vmatpush1.msra.mxu0 0.0
    %241 = vmatprep.subr.mxu0 0.0
    %242 = vmatpush1.msra.mxu0 0.0
    %243 = vmatprep.subr.mxu0 0.0
    %244 = vmatpush1.msra.mxu0 0.0
    %245 = vmatprep.subr.mxu0 0.0
    %246 = vmatpush1.msra.mxu0 0.0
    %247 = vmatprep.subr.mxu0 0.0
    %248 = vmatpush1.msra.mxu0 0.0
    %249 = vmatprep.subr.mxu0 0.0
    %250 = vmatpush1.msra.mxu0 0.0
    %251 = vmatprep.subr.mxu0 0.0
    %252 = vmatpush1.msra.mxu0 0.0
    %253 = vmatprep.subr.mxu0 0.0
    %254 = vmatpush1.msra.mxu0 0.0
    %255 = vmatprep.subr.mxu0 0.0
    %256 = vmatpush1.msra.mxu0 0.0
    %257 = vmatprep.subr.mxu0 0.0
    %258 = vmatpush1.msra.mxu0 0.0
    %259 = vmatprep.subr.mxu0 0.0
    %260 = vmatpush1.msra.mxu0 0.0
    %261 = vmatprep.subr.mxu0 0.0
    %262 = vmatpush1.msra.mxu0 0.0
    %263 = vmatprep.subr.mxu0 0.0
    %264 = vmatpush1.msra.mxu0 0.0
    %265 = vmatprep.subr.mxu0 0.0
    %266 = vmatpush1.msra.mxu0 0.0
    %267 = vmatprep.subr.mxu0 0.0
    %268 = vmatpush1.msra.mxu0 0.0
    %269 = vmatprep.subr.mxu0 0.0
    %270 = vmatpush1.msra.mxu0 0.0
    %271 = vmatprep.subr.mxu0 0.0
    %272 = vmatpush1.msra.mxu0 0.0
    %273 = vmatprep.subr.mxu0 0.0
    %274 = vmatpush1.msra.mxu0 0.0
    %275 = vmatprep.subr.mxu0 0.0
    %276 = vmatpush1.msra.mxu0 0.0
    %277 = vmatprep.subr.mxu0 0.0
    %278 = vmatpush1.msra.mxu0 0.0
    %279 = vmatprep.subr.mxu0 0.0
    %280 = vmatpush1.msra.mxu0 0.0
    %281 = vmatprep.subr.mxu0 0.0
    %282 = vmatpush1.msra.mxu0 0.0
    %283 = vmatprep.subr.mxu0 0.0
    %284 = vmatpush1.msra.mxu0 0.0
    %285 = vmatprep.subr.mxu0 0.0
    %286 = vmatpush1.msra.mxu0 0.0
    %287 = vmatprep.subr.mxu0 0.0
    %288 = vmatpush1.msra.mxu0 0.0
    %289 = vmatprep.subr.mxu0 0.0
    %290 = vmatpush1.msra.mxu0 0.0
    %291 = vmatprep.subr.mxu0 0.0
    %292 = vmatpush1.msra.mxu0 0.0
    %293 = vmatprep.mubr.f32.mxu0 0.0
    %294 = vmatmul.mubr.f32.gmra.mrb[0].mxu0 %v220
    %v295 = vpop.f32.mrb[0].mxu0
    %v296 = vadd.f32 0.0, %v295
    %v297 = vpop.f32.mrb[0].mxu0
    %v298 = vadd.f32 0.0, %v297
    %299 = vdwg.mxu0
    %v300 = vld [vmem:[%s6] sm:$0x3]
    %v302 = vlaneseq
    %v303 = vshrl.u32 %v302, 7
    %v304 = vsub.s32 0, %v303
    %v305 = vrot.slane %v300, %v304
    %v306 = vlaneseq
    %v307 = vshrl.u32 %v306, 7
    %v308 = vsub.s32 1, %v307
    %v309 = vrot.slane %v300, %v308
    %v312 = vmul.f32 %v305, %v204
    %v313 = vmul.f32 %v309, %v206
    %v314 = vsub.f32 1.0, %v300
    %v316 = vlaneseq
    %v317 = vshrl.u32 %v316, 7
    %v318 = vsub.s32 0, %v317
    %v319 = vrot.slane %v314, %v318
    %v320 = vlaneseq
    %v321 = vshrl.u32 %v320, 7
    %v322 = vsub.s32 1, %v321
    %v323 = vrot.slane %v314, %v322
    %v326 = vmul.f32 %v319, %v296
    %v327 = vmul.f32 %v323, %v298
    %v328 = vadd.f32 %v312, %v326
    %v329 = vadd.f32 %v313, %v327
    %v332 = vcombine.low %v328, %v329
    %334 = vst [vmem:[#allocation2] sm:$0xff] %v332
    %vm335 = vcmask 516096
    %336 = vst.msk [vmem:[#allocation3] sm:$0x1] %vm335, 0.0
    %337 = vst.msk [vmem:[#allocation4] sm:$0x1] %vm335, 0.0
    loop: start=0, step=1, limit=4
    $region46: #{bert_lstm_forward.11} parent=1 // loop_pre_header
      _
    $region47: #{bert_lstm_forward.11} parent=1 // loop_header
      %s339 = sphi 0, %s343
      %p340 = scmp.ge.s32.totalorder %s339, 4
    $region48: #{bert_lstm_forward.11} parent=1 // loop_header_branch
      %342 = sbr.rel (%p340) target = $region52
    $region49: #{bert_lstm_forward.11} parent=1 // loop_body
      %s344 = sshra.s32 %s339, 2
      %s345 = sand.u32 %s339, 3
      %s346 = sshra.s32 %s339, 2
      %s347 = sand.u32 %s339, 3
      %s348 = smul.u32 %s344, 2
      %s349 = smul.u32 %s348, 4
      %s350 = sadd.s32 %s349, %s347
      %s351 = scalar_lea.vmem [#allocation2], %s350
      %v352 = vld [vmem:[%s351] ss:$4 sm:$0x3]
      %v353 = vld [vmem:[#allocation3] sm:$0x1]
      %v354 = vpack.c.bf16 %v353, %v353
      %v355 = vld [vmem:[#allocation6] sm:$0xff]
      %v356 = vld [vmem:[#allocation6 + $0x8] sm:$0xff]
      %v357 = vld [vmem:[#allocation6 + $0x10] sm:$0xff]
      %v358 = vld [vmem:[#allocation6 + $0x18] sm:$0xff]
      %v359 = vld [vmem:[#allocation6 + $0x20] sm:$0xff]
      %v360 = vld [vmem:[#allocation6 + $0x28] sm:$0xff]
      %v361 = vld [vmem:[#allocation6 + $0x30] sm:$0xff]
      %v362 = vld [vmem:[#allocation6 + $0x38] sm:$0xff]
      %v371 = vunpack.c.l.b16 %v355
      %v372 = vunpack.c.h.b16 %v355
      %v373 = vunpack.c.l.b16 %v356
      %v374 = vunpack.c.h.b16 %v356
      %v375 = vunpack.c.l.b16 %v357
      %v376 = vunpack.c.h.b16 %v357
      %v377 = vunpack.c.l.b16 %v358
      %v378 = vunpack.c.h.b16 %v358
      %v379 = vunpack.c.l.b16 %v359
      %v380 = vunpack.c.h.b16 %v359
      %v381 = vunpack.c.l.b16 %v360
      %v382 = vunpack.c.h.b16 %v360
      %v383 = vunpack.c.l.b16 %v361
      %v384 = vunpack.c.h.b16 %v361
      %v385 = vunpack.c.l.b16 %v362
      %v386 = vunpack.c.h.b16 %v362
      %v387 = vpack.c.b16 %v373, %v371
      %v388 = vpack.c.b16 %v374, %v372
      %v389 = vpack.c.b16 %v377, %v375
      %v390 = vpack.c.b16 %v378, %v376
      %v391 = vpack.c.b16 %v381, %v379
      %v392 = vpack.c.b16 %v382, %v380
      %v393 = vpack.c.b16 %v385, %v383
      %v394 = vpack.c.b16 %v386, %v384
      %vm403 = vcmask 523264
      %v405 = vsel %vm403, %v354, 0
      %407 = vmatprep.subr.bf16.mxu0 %v388
      %408 = vmatpush1.bf16.msra.mxu0 %v387
      %409 = vmatprep.subr.bf16.mxu0 %v390
      %410 = vmatpush1.bf16.msra.mxu0 %v389
      %411 = vmatprep.subr.bf16.mxu0 %v392
      %412 = vmatpush1.bf16.msra.mxu0 %v391
      %413 = vmatprep.subr.bf16.mxu0 %v394
      %414 = vmatpush1.bf16.msra.mxu0 %v393
      %415 = vmatprep.subr.bf16.mxu0 0
      %416 = vmatpush1.bf16.msra.mxu0 0
      %417 = vmatprep.subr.bf16.mxu0 0
      %418 = vmatpush1.bf16.msra.mxu0 0
      %419 = vmatprep.subr.bf16.mxu0 0
      %420 = vmatpush1.bf16.msra.mxu0 0
      %421 = vmatprep.subr.bf16.mxu0 0
      %422 = vmatpush1.bf16.msra.mxu0 0
      %423 = vmatprep.subr.bf16.mxu0 0
      %424 = vmatpush1.bf16.msra.mxu0 0
      %425 = vmatprep.subr.bf16.mxu0 0
      %426 = vmatpush1.bf16.msra.mxu0 0
      %427 = vmatprep.subr.bf16.mxu0 0
      %428 = vmatpush1.bf16.msra.mxu0 0
      %429 = vmatprep.subr.bf16.mxu0 0
      %430 = vmatpush1.bf16.msra.mxu0 0
      %431 = vmatprep.subr.bf16.mxu0 0
      %432 = vmatpush1.bf16.msra.mxu0 0
      %433 = vmatprep.subr.bf16.mxu0 0
      %434 = vmatpush1.bf16.msra.mxu0 0
      %435 = vmatprep.subr.bf16.mxu0 0
      %436 = vmatpush1.bf16.msra.mxu0 0
      %437 = vmatprep.subr.bf16.mxu0 0
      %438 = vmatpush1.bf16.msra.mxu0 0
      %439 = vmatprep.mubr.bf16.mxu0 0
      %440 = vmatmul.mubr.bf16.gmra.mrb[0].mxu0 %v405
      %v441 = vpop.f32.mrb[0].mxu0
      %v442 = vadd.f32 0.0, %v441
      %v443 = vpop.f32.mrb[0].mxu0
      %v444 = vadd.f32 0.0, %v443
      %v445 = vpop.f32.mrb[0].mxu0
      %v446 = vpop.f32.mrb[0].mxu0
      %447 = vdwg.mxu0
      %v450 = vcombine.low %v442, %v444
      %v452 = vunpack.c.l.s4 1966171168
      %v453 = vunpack.c.0.s8 %v452
      %v454 = vlaneseq
      %v455 = vshrl.u32 %v454, 7
      %v456 = vsub.s32 %v453, %v455
      %v457 = vrot.slane %v450, %v456
      %v459 = vunpack.c.l.s4 1966171168
      %v460 = vunpack.c.0.s8 %v459
      %v461 = vlaneseq
      %v462 = vshrl.u32 %v461, 7
      %v463 = vsub.s32 %v460, %v462
      %v464 = vrot.slane %v457, %v463
      %v466 = vadd.f32 %v352, %v464
      %v467 = vxor.u32 %v466, 2147483648
      %v468 = vmul.f32 %v467, 1.442695
      %v469 = vpow.pop %v468
      %v470 = vadd.f32 %v469, 1.0
      %v471 = vrcp.pop %v470
      %v472 = vmul.f32 1.0, %v471
      %v474 = vrot.slane %v466, 1
      %v476 = vtanh.pop %v474
      %477 = vrot.lane.b32.xlu0 %v466, 64
      %v478 = vpop.permute.xlu0 %477
      %v479 = vrot.slane %v478, 1
      %v481 = vxor.u32 %v479, 2147483648
      %v482 = vmul.f32 %v481, 1.442695
      %v483 = vpow.pop %v482
      %v484 = vadd.f32 %v483, 1.0
      %v485 = vrcp.pop %v484
      %v486 = vmul.f32 1.0, %v485
      %v487 = vld [vmem:[#allocation4] sm:$0x1]
      %489 = vrot.lane.b32.xlu0 %v487, 64
      %v490 = vpop.permute.xlu0 %489
      %v492 = vmul.f32 %v472, %v490
      %v493 = vmul.f32 %v472, %v476
      %495 = vrot.lane.b32.xlu0 %v493, 64
      %v496 = vpop.permute.xlu0 %495
      %v498 = vadd.f32 %v492, %v496
      %v499 = vtanh.pop %v498
      %501 = vrot.lane.b32.xlu0 %v499, 64
      %v502 = vpop.permute.xlu0 %501
      %v504 = vmul.f32 %v486, %v502
      %v506 = vlaneseq
      %v507 = vshrl.u32 %v506, 7
      %v508 = vsub.s32 0, %v507
      %v509 = vrot.slane %v498, %v508
      %510 = vrot.lane.b32.xlu0 %v509, 64
      %v511 = vpop.permute.xlu0 %510
      %513 = vst.msk [vmem:[#allocation4] sm:$0x1] %vm335, %v511
      %514 = vst.msk [vmem:[#allocation3] sm:$0x1] %vm335, %v504
      %s515 = scalar_lea.vmem [#allocation5], %s339
      %516 = vst.msk [vmem:[%s515] sm:$0x1] %vm335, %v504
    $region50: #{bert_lstm_forward.11} parent=1 // loop_footer
      %s343 = sadd.s32 1, %s339
    $region51: #{bert_lstm_forward.11} parent=1 // loop_footer_branch
      %338 = sbr.rel target = $region47
    $region52: #{bert_lstm_forward.11} parent=1 // loop_exit
      _
    %v517 = vld [vmem:[#allocation5] sm:$0xf]
    %v519 = vsel %vm222, %v517, 0
    %521 = vmatprep.subr.mxu0 0.0
    %522 = vmatpush1.msra.mxu0 %v519
    %523 = vmatprep.subr.mxu0 0.0
    %524 = vmatpush1.msra.mxu0 0.0
    %525 = vmatprep.subr.mxu0 0.0
    %526 = vmatpush1.msra.mxu0 0.0
    %527 = vmatprep.subr.mxu0 0.0
    %528 = vmatpush1.msra.mxu0 0.0
    %529 = vmatprep.subr.mxu0 0.0
    %530 = vmatpush1.msra.mxu0 0.0
    %531 = vmatprep.subr.mxu0 0.0
    %532 = vmatpush1.msra.mxu0 0.0
    %533 = vmatprep.subr.mxu0 0.0
    %534 = vmatpush1.msra.mxu0 0.0
    %535 = vmatprep.subr.mxu0 0.0
    %536 = vmatpush1.msra.mxu0 0.0
    %537 = vmatprep.subr.mxu0 0.0
    %538 = vmatpush1.msra.mxu0 0.0
    %539 = vmatprep.subr.mxu0 0.0
    %540 = vmatpush1.msra.mxu0 0.0
    %541 = vmatprep.subr.mxu0 0.0
    %542 = vmatpush1.msra.mxu0 0.0
    %543 = vmatprep.subr.mxu0 0.0
    %544 = vmatpush1.msra.mxu0 0.0
    %545 = vmatprep.subr.mxu0 0.0
    %546 = vmatpush1.msra.mxu0 0.0
    %547 = vmatprep.subr.mxu0 0.0
    %548 = vmatpush1.msra.mxu0 0.0
    %549 = vmatprep.subr.mxu0 0.0
    %550 = vmatpush1.msra.mxu0 0.0
    %551 = vmatprep.subr.mxu0 0.0
    %552 = vmatpush1.msra.mxu0 0.0
    %553 = vmatprep.subr.mxu0 0.0
    %554 = vmatpush1.msra.mxu0 0.0
    %555 = vmatprep.subr.mxu0 0.0
    %556 = vmatpush1.msra.mxu0 0.0
    %557 = vmatprep.subr.mxu0 0.0
    %558 = vmatpush1.msra.mxu0 0.0
    %559 = vmatprep.subr.mxu0 0.0
    %560 = vmatpush1.msra.mxu0 0.0
    %561 = vmatprep.subr.mxu0 0.0
    %562 = vmatpush1.msra.mxu0 0.0
    %563 = vmatprep.subr.mxu0 0.0
    %564 = vmatpush1.msra.mxu0 0.0
    %565 = vmatprep.subr.mxu0 0.0
    %566 = vmatpush1.msra.mxu0 0.0
    %567 = vmatprep.subr.mxu0 0.0
    %568 = vmatpush1.msra.mxu0 0.0
    %569 = vmatprep.subr.mxu0 0.0
    %570 = vmatpush1.msra.mxu0 0.0
    %571 = vmatprep.subr.mxu0 0.0
    %572 = vmatpush1.msra.mxu0 0.0
    %573 = vmatprep.subr.mxu0 0.0
    %574 = vmatpush1.msra.mxu0 0.0
    %575 = vmatprep.subr.mxu0 0.0
    %576 = vmatpush1.msra.mxu0 0.0
    %577 = vmatprep.subr.mxu0 0.0
    %578 = vmatpush1.msra.mxu0 0.0
    %579 = vmatprep.subr.mxu0 0.0
    %580 = vmatpush1.msra.mxu0 0.0
    %581 = vmatprep.subr.mxu0 0.0
    %582 = vmatpush1.msra.mxu0 0.0
    %583 = vmatprep.subr.mxu0 0.0
    %584 = vmatpush1.msra.mxu0 0.0
    %585 = vmatprep.mubr.f32.mxu0 0.0
    %586 = vmatmul.mubr.f32.gmra.mrb[0].mxu0 %v220
    %v587 = vpop.f32.mrb[0].mxu0
    %v588 = vadd.f32 0.0, %v587
    %v589 = vpop.f32.mrb[0].mxu0
    %590 = vdwg.mxu0
    %vm591 = vcmp.lt.s32.totalorder %v213, 32
    %v592 = vsel %vm591, 1, 0
    %v593 = vcvt.s32.f32 %v592
    %v594 = vmul.f32 %v593, %v517
    %v595 = vsub.f32 1.0, %v593
    %v596 = vmul.f32 %v595, %v588
    %v597 = vadd.f32 %v594, %v596
    %v598 = vpack.c.bf16 %v597, %v597
    %v599 = vld [vmem:[%s7] sm:$0xf]
    %v600 = vld [vmem:[%s7 + $0x4] sm:$0xf]
    %v601 = vld [vmem:[%s7 + $0x8] sm:$0xf]
    %v602 = vld [vmem:[%s7 + $0xc] sm:$0xf]
    %v603 = vld [vmem:[%s7 + $0x10] sm:$0xf]
    %v604 = vld [vmem:[%s7 + $0x14] sm:$0xf]
    %v605 = vld [vmem:[%s7 + $0x18] sm:$0xf]
    %v606 = vld [vmem:[%s7 + $0x1c] sm:$0xf]
    %v607 = vld [vmem:[#allocation9] sm:$0x1]
    %v609 = vlaneseq
    %v610 = vshrl.u32 %v609, 7
    %v611 = vsub.s32 0, %v610
    %v612 = vrot.slane %v607, %v611
    %v622 = vunpack.c.l.b16 %v599
    %v623 = vunpack.c.l.b16 %v600
    %v624 = vunpack.c.l.b16 %v601
    %v625 = vunpack.c.l.b16 %v602
    %v626 = vunpack.c.l.b16 %v603
    %v627 = vunpack.c.l.b16 %v604
    %v628 = vunpack.c.l.b16 %v605
    %v629 = vunpack.c.l.b16 %v606
    %v630 = vpack.c.b16 %v623, %v622
    %v631 = vpack.c.b16 %v625, %v624
    %v632 = vpack.c.b16 %v627, %v626
    %v633 = vpack.c.b16 %v629, %v628
    %vm638 = vcmask 523264
    %v640 = vsel %vm638, %v598, 0
    %642 = vmatprep.subr.bf16.mxu0 0
    %643 = vmatpush1.bf16.msra.mxu0 %v630
    %644 = vmatprep.subr.bf16.mxu0 0
    %645 = vmatpush1.bf16.msra.mxu0 %v631
    %646 = vmatprep.subr.bf16.mxu0 0
    %647 = vmatpush1.bf16.msra.mxu0 %v632
    %648 = vmatprep.subr.bf16.mxu0 0
    %649 = vmatpush1.bf16.msra.mxu0 %v633
    %650 = vmatprep.subr.bf16.mxu0 0
    %651 = vmatpush1.bf16.msra.mxu0 0
    %652 = vmatprep.subr.bf16.mxu0 0
    %653 = vmatpush1.bf16.msra.mxu0 0
    %654 = vmatprep.subr.bf16.mxu0 0
    %655 = vmatpush1.bf16.msra.mxu0 0
    %656 = vmatprep.subr.bf16.mxu0 0
    %657 = vmatpush1.bf16.msra.mxu0 0
    %658 = vmatprep.subr.bf16.mxu0 0
    %659 = vmatpush1.bf16.msra.mxu0 0
    %660 = vmatprep.subr.bf16.mxu0 0
    %661 = vmatpush1.bf16.msra.mxu0 0
    %662 = vmatprep.subr.bf16.mxu0 0
    %663 = vmatpush1.bf16.msra.mxu0 0
    %664 = vmatprep.subr.bf16.mxu0 0
    %665 = vmatpush1.bf16.msra.mxu0 0
    %666 = vmatprep.subr.bf16.mxu0 0
    %667 = vmatpush1.bf16.msra.mxu0 0
    %668 = vmatprep.subr.bf16.mxu0 0
    %669 = vmatpush1.bf16.msra.mxu0 0
    %670 = vmatprep.subr.bf16.mxu0 0
    %671 = vmatpush1.bf16.msra.mxu0 0
    %672 = vmatprep.subr.bf16.mxu0 0
    %673 = vmatpush1.bf16.msra.mxu0 0
    %674 = vmatprep.mubr.bf16.mxu0 0
    %675 = vmatmul.mubr.bf16.gmra.mrb[0].mxu0 %v640
    %v676 = vpop.f32.mrb[0].mxu0
    %v677 = vadd.f32 %v612, %v676
    %v678 = vpop.f32.mrb[0].mxu0
    %v679 = vpop.f32.mrb[0].mxu0
    %v680 = vpop.f32.mrb[0].mxu0
    %681 = vdwg.mxu0
    %vm682 = vcmask 35840
    %683 = vst.msk [vmem:[#allocation11] sm:$0xf] %vm682, %v677
    // Predicated region
    $region53: #{bert_lstm_forward.11} parent=1 // pred_check
      _
    $region54: #{bert_lstm_forward.11} parent=1 // pred_check_branch
      %685 = sbr.rel (0) target = $region56
    $region55: #{bert_lstm_forward.11} parent=1 // pred_region
      %s687 = ssub.s32 64, 64
      %688 = vsyncadd [#allocation8], %s687
      %s690 = sshll.u32 [#allocation11], 4
      %s691 = int_to_ptr.vmem [resolvable:$true] %s690
      %693 = dma.vmem_to_hbm [thread:$0]  %s691, 64, %s9, [#allocation8]
    $region56: #{bert_lstm_forward.11} parent=1 // pred_fallthru
      _
    // Predicated region
    $region57: #{bert_lstm_forward.11} parent=1 // pred_check
      _
    $region58: #{bert_lstm_forward.11} parent=1 // pred_check_branch
      %695 = sbr.rel (0) target = $region60
    $region59: #{bert_lstm_forward.11} parent=1 // pred_region
      %696 = dma.done [#allocation8], 64
    $region60: #{bert_lstm_forward.11} parent=1 // pred_fallthru
      _
    %697 = vsyncpa [#allocation7], 1
    %698 = vsyncpa [#allocation10], 1
    %699 = vsyncpa [#allocation8], 1

</llo_original>
